<compile_context>
chip_gen: v7x
topology: tpu7x:2x2x1
jax: 0.10.0
libtpu: 0.0.40
codegen_flags: <defaults>
</compile_context>

<pallas_src>
import functools

import jax
import jax.numpy as jnp
from jax.experimental import pallas as pl
from jax.experimental.pallas import tpu as pltpu

LN_EPS = 1e-6
K = 7          # depthwise kernel size
PAD = 3        # depthwise padding

# Approximate (tanh) GELU routes the transcendental to the otherwise-idle EUP
# slot instead of a long erf VALU polynomial on the 4C-wide hidden tensor.
# TODO(synk): needs model-owner sign-off (nn.GELU default is exact erf).
USE_TANH_GELU = True


def convnext_block_kernel(x_ref, halo_ref, dw_w_ref, dw_b_ref, ln_w_ref,
                          ln_b_ref, w1_ref, b1_ref, w2_ref, b2_ref, gamma_ref,
                          out_ref, xp_ref, *, TH, W, C, Wp, bf16_mac):
    # x_ref:    (1, TH, W, C)    f32 row strip (conv interior AND residual)
    # halo_ref: (1, 2*PAD, W, C) f32 top/bottom halo rows (zeroed at borders)
    # xp_ref:   (TH+2*PAD, Wp, C) f32 scratch slab; Wp = round_up(W + 2*PAD, 8)
    # dw_w_ref: (K*K, C) depthwise taps (row-major); biases/ln/gamma: (1, C)
    # w1_ref:   (C, 4C) bf16; w2_ref: (4C, C) bf16
    x = x_ref[0]                                     # (TH, W, C) f32
    halo = halo_ref[0]                               # (2*PAD, W, C) f32

    # ---- padded slab: halo rows + interior; zero only the lane band [W, Wp) ---
    # Halo rows already carry zeros at the image top/bottom, so no full-slab
    # zero and no per-boundary pl.when is needed.  The band zero happens every
    # step (cheap, and megacore-safe unlike a "zero once at step 0" guard).
    xp_ref[:, W:Wp, :] = jnp.zeros((TH + 2 * PAD, Wp - W, C), xp_ref.dtype)
    xp_ref[0:PAD, 0:W, :] = halo[0:PAD]
    xp_ref[PAD:PAD + TH, 0:W, :] = x
    xp_ref[PAD + TH:PAD + 2 * PAD + TH, 0:W, :] = halo[PAD:2 * PAD]
    xp = xp_ref[...]                                  # (TH+2*PAD, Wp, C) f32

    mac_dt = jnp.bfloat16 if bf16_mac else jnp.float32
    dw_w = dw_w_ref[...].astype(mac_dt)               # (K*K, C)

    # ---- depthwise 7x7 conv ---------------------------------------------------
    # 7 aligned XLU sublane rotations (one per dx); dy shifts are free axis-0
    # slices.  Accumulation runs over the full Wp width (the circular-roll
    # wrap-around lands in the zero band [W, Wp) and is sliced off once below),
    # so no per-dx unaligned width slice is needed.
    acc = jnp.zeros((TH, Wp, C), jnp.float32)
    for dx in range(K):
        shift = (PAD - dx) % Wp
        sh = xp if shift == 0 else pltpu.roll(xp, shift, axis=1)
        if bf16_mac:
            # bf16 multiplies + 7-tap bf16 partial, upconverted once per dx.
            sh = sh.astype(jnp.bfloat16)
            part = jnp.zeros((TH, Wp, C), jnp.bfloat16)
            for dy in range(K):
                tap = dw_w[dy * K + dx:dy * K + dx + 1, :]        # (1, C)
                part = part + sh[dy:dy + TH, :, :] * tap
            acc = acc + part.astype(jnp.float32)
        else:
            for dy in range(K):
                tap = dw_w[dy * K + dx:dy * K + dx + 1, :]        # (1, C)
                acc = acc + sh[dy:dy + TH, :, :] * tap
    acc = acc[:, 0:W, :] + dw_b_ref[...]               # slice to W once

    # ---- LayerNorm over channels (last axis), eps=1e-6 -------------------------
    x2d = acc.reshape(TH * W, C)
    mu = jnp.mean(x2d, axis=-1, keepdims=True)
    xc = x2d - mu
    var = jnp.mean(xc * xc, axis=-1, keepdims=True)
    xn = xc * jax.lax.rsqrt(var + LN_EPS)
    xn = xn * ln_w_ref[...] + ln_b_ref[...]

    # ---- pointwise MLP: Linear(C->4C) -> GELU -> Linear(4C->C) on the MXU ------
    h = jnp.dot(xn.astype(jnp.bfloat16), w1_ref[...],
                preferred_element_type=jnp.float32) + b1_ref[...]
    h = jax.nn.gelu(h, approximate=USE_TANH_GELU)
    y = jnp.dot(h.astype(jnp.bfloat16), w2_ref[...],
                preferred_element_type=jnp.float32) + b2_ref[...]

    # ---- layer scale + residual -------------------------------------------------
    y = y * gamma_ref[...]
    out_ref[0] = (x + y.reshape(TH, W, C)).astype(out_ref.dtype)


def _tpu_generation():
    """Best-effort TPU generation (2..7); defaults to 6 if unknown."""
    try:
        kind = jax.devices()[0].device_kind.lower()
    except Exception:
        return 6
    if "v7" in kind or "7x" in kind:
        return 7
    for g in (6, 5, 4, 3, 2):
        if "v%d" % g in kind:
            return g
    return 6


def _vmem_capacity_bytes(gen):
    get_info = getattr(pltpu, "get_tpu_info", None)
    if get_info is not None:
        try:
            cap = getattr(get_info(), "vmem_capacity_bytes", None)
            if cap:
                return int(cap)
        except Exception:
            pass
    return (64 if gen >= 7 else 128) * 2 ** 20


def _pick_row_tile(H, W, Cm):
    """Largest divisor of H <= 32 keeping the f32 hidden activation <= ~8 MiB."""
    best = 1
    for t in range(1, min(H, 32) + 1):
        if H % t == 0 and t * W * Cm * 4 <= 8 * 2 ** 20:
            best = t
    return best


def convnext_block(x_nchw, params, row_tile=None):
    """x_nchw: (N, C, H, W) float32. Returns (N, C, H, W)."""
    N, C, H, W = x_nchw.shape
    Cm = params["w1"].shape[1]

    gen = _tpu_generation()
    bf16_mac = gen >= 6            # v5e has no bf16 VPU: keep the depthwise MAC f32
    TH = row_tile if row_tile is not None else _pick_row_tile(H, W, Cm)
    assert H % TH == 0, f"row_tile={TH} must divide H={H}"
    nH = H // TH
    Wp = ((W + 2 * PAD + 7) // 8) * 8      # padded width, sublane multiple

    # Layout: NCHW (torch) -> NHWC so channels sit on the lane axis.
    x = jnp.transpose(x_nchw, (0, 2, 3, 1))           # (N, H, W, C)

    # Per-row-tile 3-row top/bottom halos, pre-zeroed at the image borders, so
    # the kernel needs neither overlapping blocks nor boundary conditionals.
    xt = jnp.pad(x, ((0, 0), (PAD, 0), (0, 0), (0, 0)))[:, :H]        # shift down by PAD
    xb = jnp.pad(x, ((0, 0), (0, TH), (0, 0), (0, 0)))[:, TH:TH + H]  # shift up by TH
    top = xt.reshape(N, nH, TH, W, C)[:, :, :PAD]      # rows [h*TH-3, h*TH)
    bot = xb.reshape(N, nH, TH, W, C)[:, :, :PAD]      # rows [h*TH+TH, h*TH+TH+3)
    halos = jnp.concatenate([top, bot], axis=2).reshape(N * nH, 2 * PAD, W, C)

    # bf16 weights for the MXU matmuls (halves weight HBM/VMEM traffic).
    w1 = params["w1"].astype(jnp.bfloat16)
    w2 = params["w2"].astype(jnp.bfloat16)

    kernel = functools.partial(convnext_block_kernel, TH=TH, W=W, C=C, Wp=Wp,
                               bf16_mac=bf16_mac)

    # Rough per-step VMEM budget (double-buffered strip/halo/out blocks, padded
    # slab + rolled copy, accumulators, hidden activation, bf16 weights);
    # generation-aware cap at 3/4 of physical VMEM.
    cap = _vmem_capacity_bytes(gen)
    est = 4 * (6 * TH * W * C
               + 4 * 2 * PAD * W * C
               + 3 * (TH + 2 * PAD) * Wp * C
               + 2 * TH * Wp * C
               + 3 * TH * W * C
               + 3 * TH * W * Cm) + 4 * C * Cm * 2 * 2
    vmem_limit = int(min(max(2 * est, 32 * 2 ** 20), (3 * cap) // 4))

    halo_map = lambda n, h: (n * nH + h, 0, 0, 0)

    out_nhwc = pl.pallas_call(
        kernel,
        out_shape=jax.ShapeDtypeStruct((N, H, W, C), x.dtype),
        grid_spec=pltpu.PrefetchScalarGridSpec(
            num_scalar_prefetch=0,
            grid=(N, nH),
            in_specs=[
                pl.BlockSpec((1, TH, W, C), lambda n, h: (n, h, 0, 0)),       # x strip
                pl.BlockSpec((1, 2 * PAD, W, C), halo_map),                   # halos
                pl.BlockSpec((K * K, C), lambda n, h: (0, 0)),                # dw weight
                pl.BlockSpec((1, C), lambda n, h: (0, 0)),                    # dw bias
                pl.BlockSpec((1, C), lambda n, h: (0, 0)),                    # ln weight
                pl.BlockSpec((1, C), lambda n, h: (0, 0)),                    # ln bias
                pl.BlockSpec((C, Cm), lambda n, h: (0, 0)),                   # w1 (bf16)
                pl.BlockSpec((1, Cm), lambda n, h: (0, 0)),                   # b1
                pl.BlockSpec((Cm, C), lambda n, h: (0, 0)),                   # w2 (bf16)
                pl.BlockSpec((1, C), lambda n, h: (0, 0)),                    # b2
                pl.BlockSpec((1, C), lambda n, h: (0, 0)),                    # gamma
            ],
            out_specs=pl.BlockSpec((1, TH, W, C), lambda n, h: (n, h, 0, 0)),
            scratch_shapes=[pltpu.VMEM((TH + 2 * PAD, Wp, C), jnp.float32)],
        ),
        compiler_params=pltpu.CompilerParams(
            dimension_semantics=("parallel", "parallel"),
            vmem_limit_bytes=vmem_limit),
    )(x, halos, params["dw_w"], params["dw_b"], params["ln_w"], params["ln_b"],
      w1, params["b1"], w2, params["b2"], params["gamma"])

    return jnp.transpose(out_nhwc, (0, 3, 1, 2))      # back to NCHW


def reference_block(x_nchw, params):
    """Pure-JAX f32 reference mirroring the PyTorch forward (validation only)."""
    N, C, H, W = x_nchw.shape
    x = jnp.transpose(x_nchw, (0, 2, 3, 1))
    xpad = jnp.pad(x, ((0, 0), (PAD, PAD), (PAD, PAD), (0, 0)))
    dw = params["dw_w"].reshape(K, K, C)
    acc = jnp.zeros_like(x)
    for dy in range(K):
        for dx in range(K):
            acc = acc + xpad[:, dy:dy + H, dx:dx + W, :] * dw[dy, dx]
    acc = acc + params["dw_b"]
    mu = acc.mean(-1, keepdims=True)
    var = ((acc - mu) ** 2).mean(-1, keepdims=True)
    xn = (acc - mu) / jnp.sqrt(var + LN_EPS) * params["ln_w"] + params["ln_b"]
    h = xn @ params["w1"] + params["b1"]
    h = jax.nn.gelu(h, approximate=False)             # exact erf (nn.GELU default)
    y = h @ params["w2"] + params["b2"]
    y = y * params["gamma"]
    return jnp.transpose(x + y, (0, 3, 1, 2))


def init_params(key, C, mlp_ratio=4.0, layer_scale_init_value=1e-6):
    Cm = int(mlp_ratio * C)
    ks = jax.random.split(key, 6)
    return {
        # depthwise conv: torch weight (C,1,K,K) -> stored here as (K*K, C)
        "dw_w": 0.1 * jax.random.normal(ks[0], (K * K, C), jnp.float32),
        "dw_b": 0.1 * jax.random.normal(ks[1], (1, C), jnp.float32),
        "ln_w": jnp.ones((1, C), jnp.float32)
                + 0.05 * jax.random.normal(ks[2], (1, C), jnp.float32),
        "ln_b": 0.05 * jax.random.normal(ks[3], (1, C), jnp.float32),
        "w1": 0.2 * jax.random.normal(ks[4], (C, Cm), jnp.float32),
        "b1": jnp.zeros((1, Cm), jnp.float32),
        "w2": 0.2 * jax.random.normal(ks[5], (Cm, C), jnp.float32),
        "b2": jnp.zeros((1, C), jnp.float32),
        "gamma": layer_scale_init_value * jnp.ones((1, C), jnp.float32),
    }
    # NOTE: drop_path is identity at rate 0.0; GRN unused (use_grn=False).


if __name__ == "__main__":
    key = jax.random.PRNGKey(0)
    k_x, k_p, k_g = jax.random.split(key, 3)

    N, C, H, W = 2, 4, 16, 16
    x = jax.random.normal(k_x, (N, C, H, W), jnp.float32)
    params = init_params(k_p, C)
    # Use a non-trivial ("trained") layer-scale so the MLP branch meaningfully
    # contributes to the output and is actually exercised by the check.
    params["gamma"] = 0.5 + 0.05 * jax.random.normal(k_g, (1, C), jnp.float32)

    # row_tile=8 -> 2 row tiles per image: exercises the halo path explicitly.
    out = jax.block_until_ready(convnext_block(x, params, row_tile=8))
    ref = reference_block(x, params)

    assert out.shape == (N, C, H, W)
    # bf16 MXU matmuls, bf16 depthwise partials (v6e+/v7x) and tanh GELU in the
    # kernel vs an exact f32 reference -> relaxed tolerance.
    assert jnp.allclose(out, ref, atol=3e-2, rtol=3e-2), "mismatch vs reference"

    print("KERNEL_OK")
</pallas_src>

<mosaic_0001>
module attributes {stable_mosaic.version = 11 : i64} {
  func.func @convnext_block_kernel(%arg0: i32, %arg1: i32, %arg2: memref<1x8x16x4xf32, #tpu.memory_space<vmem>>, %arg3: memref<1x6x16x4xf32, #tpu.memory_space<vmem>>, %arg4: memref<49x4xf32, #tpu.memory_space<vmem>>, %arg5: memref<1x4xf32, #tpu.memory_space<vmem>>, %arg6: memref<1x4xf32, #tpu.memory_space<vmem>>, %arg7: memref<1x4xf32, #tpu.memory_space<vmem>>, %arg8: memref<4x16xbf16, #tpu.memory_space<vmem>>, %arg9: memref<1x16xf32, #tpu.memory_space<vmem>>, %arg10: memref<16x4xbf16, #tpu.memory_space<vmem>>, %arg11: memref<1x4xf32, #tpu.memory_space<vmem>>, %arg12: memref<1x4xf32, #tpu.memory_space<vmem>>, %arg13: memref<1x8x16x4xf32, #tpu.memory_space<vmem>>, %arg14: memref<14x24x4xf32, #tpu.memory_space<vmem>>) attributes {dimension_semantics = [#tpu.dimension_semantics<parallel>, #tpu.dimension_semantics<parallel>], iteration_bounds = array<i64: 2, 2>, scalar_prefetch = 0 : i64, scratch_operands = 1 : i64, tpu.core_type = #tpu.core_type<tc>, window_params = [{transform_indices = @transform_0, window_bounds = array<i64: 1, 8, 16, 4>}, {transform_indices = @transform_1, window_bounds = array<i64: 1, 6, 16, 4>}, {pipeline_mode = #tpu.pipeline_mode<synchronous>, transform_indices = @transform_2, window_bounds = array<i64: 49, 4>}, {pipeline_mode = #tpu.pipeline_mode<synchronous>, transform_indices = @transform_3, window_bounds = array<i64: 1, 4>}, {pipeline_mode = #tpu.pipeline_mode<synchronous>, transform_indices = @transform_4, window_bounds = array<i64: 1, 4>}, {pipeline_mode = #tpu.pipeline_mode<synchronous>, transform_indices = @transform_5, window_bounds = array<i64: 1, 4>}, {pipeline_mode = #tpu.pipeline_mode<synchronous>, transform_indices = @transform_6, window_bounds = array<i64: 4, 16>}, {pipeline_mode = #tpu.pipeline_mode<synchronous>, transform_indices = @transform_7, window_bounds = array<i64: 1, 16>}, {pipeline_mode = #tpu.pipeline_mode<synchronous>, transform_indices = @transform_8, window_bounds = array<i64: 16, 4>}, {pipeline_mode = #tpu.pipeline_mode<synchronous>, transform_indices = @transform_9, window_bounds = array<i64: 1, 4>}, {pipeline_mode = #tpu.pipeline_mode<synchronous>, transform_indices = @transform_10, window_bounds = array<i64: 1, 4>}, {transform_indices = @transform_11, window_bounds = array<i64: 1, 8, 16, 4>}]} {
    %c0 = arith.constant 0 : index
    %c0_0 = arith.constant 0 : index
    %c0_1 = arith.constant 0 : index
    %c0_2 = arith.constant 0 : index
    %0 = vector.load %arg2[%c0, %c0_0, %c0_1, %c0_2] : memref<1x8x16x4xf32, #tpu.memory_space<vmem>>, vector<1x8x16x4xf32>
    %1 = vector.shape_cast %0 : vector<1x8x16x4xf32> to vector<8x16x4xf32>
    %c0_3 = arith.constant 0 : index
    %c0_4 = arith.constant 0 : index
    %c0_5 = arith.constant 0 : index
    %c0_6 = arith.constant 0 : index
    %2 = vector.load %arg3[%c0_3, %c0_4, %c0_5, %c0_6] : memref<1x6x16x4xf32, #tpu.memory_space<vmem>>, vector<1x6x16x4xf32>
    %3 = vector.shape_cast %2 : vector<1x6x16x4xf32> to vector<6x16x4xf32>
    %cst = arith.constant 0.000000e+00 : f32
    %4 = vector.broadcast %cst : f32 to vector<14x8x4xf32>
    %c0_7 = arith.constant 0 : index
    %c16 = arith.constant 16 : index
    %c0_8 = arith.constant 0 : index
    %5 = vector.load %arg14[%c0_7, %c16, %c0_8] : memref<14x24x4xf32, #tpu.memory_space<vmem>>, vector<14x8x4xf32>
    tpu.vector_store %arg14[%c0_7, %c16, %c0_8], %4 {strides = array<i32>} : memref<14x24x4xf32, #tpu.memory_space<vmem>>, vector<14x8x4xf32>,
    %6 = vector.extract_strided_slice %3 {offsets = [0, 0, 0], sizes = [3, 16, 4], strides = [1, 1, 1]} : vector<6x16x4xf32> to vector<3x16x4xf32>
    %c0_9 = arith.constant 0 : index
    %c0_10 = arith.constant 0 : index
    %c0_11 = arith.constant 0 : index
    %7 = vector.load %arg14[%c0_9, %c0_10, %c0_11] : memref<14x24x4xf32, #tpu.memory_space<vmem>>, vector<3x16x4xf32>
    tpu.vector_store %arg14[%c0_9, %c0_10, %c0_11], %6 {strides = array<i32>} : memref<14x24x4xf32, #tpu.memory_space<vmem>>, vector<3x16x4xf32>,
    %c3 = arith.constant 3 : index
    %c0_12 = arith.constant 0 : index
    %c0_13 = arith.constant 0 : index
    %8 = vector.load %arg14[%c3, %c0_12, %c0_13] : memref<14x24x4xf32, #tpu.memory_space<vmem>>, vector<8x16x4xf32>
    tpu.vector_store %arg14[%c3, %c0_12, %c0_13], %1 {strides = array<i32>} : memref<14x24x4xf32, #tpu.memory_space<vmem>>, vector<8x16x4xf32>,
    %9 = vector.extract_strided_slice %3 {offsets = [3, 0, 0], sizes = [3, 16, 4], strides = [1, 1, 1]} : vector<6x16x4xf32> to vector<3x16x4xf32>
    %c11 = arith.constant 11 : index
    %c0_14 = arith.constant 0 : index
    %c0_15 = arith.constant 0 : index
    %10 = vector.load %arg14[%c11, %c0_14, %c0_15] : memref<14x24x4xf32, #tpu.memory_space<vmem>>, vector<3x16x4xf32>
    tpu.vector_store %arg14[%c11, %c0_14, %c0_15], %9 {strides = array<i32>} : memref<14x24x4xf32, #tpu.memory_space<vmem>>, vector<3x16x4xf32>,
    %c0_16 = arith.constant 0 : index
    %c0_17 = arith.constant 0 : index
    %c0_18 = arith.constant 0 : index
    %11 = vector.load %arg14[%c0_16, %c0_17, %c0_18] : memref<14x24x4xf32, #tpu.memory_space<vmem>>, vector<14x24x4xf32>
    %c0_19 = arith.constant 0 : index
    %c0_20 = arith.constant 0 : index
    %12 = vector.load %arg4[%c0_19, %c0_20] : memref<49x4xf32, #tpu.memory_space<vmem>>, vector<49x4xf32>
    %13 = arith.truncf %12 : vector<49x4xf32> to vector<49x4xbf16>
    %cst_21 = arith.constant 0.000000e+00 : f32
    %14 = vector.broadcast %cst_21 : f32 to vector<8x24x4xf32>
    %c3_i32 = arith.constant 3 : i32
    %15 = tpu.dynamic_rotate %11 by %c3_i32 dim 1 : vector<14x24x4xf32>, i32 -> vector<14x24x4xf32>
    %16 = arith.truncf %15 : vector<14x24x4xf32> to vector<14x24x4xbf16>
    %cst_22 = arith.constant 0.000000e+00 : bf16
    %17 = vector.broadcast %cst_22 : bf16 to vector<8x24x4xbf16>
    %18 = vector.extract_strided_slice %13 {offsets = [0, 0], sizes = [1, 4], strides = [1, 1]} : vector<49x4xbf16> to vector<1x4xbf16>
    %19 = vector.extract_strided_slice %16 {offsets = [0, 0, 0], sizes = [8, 24, 4], strides = [1, 1, 1]} : vector<14x24x4xbf16> to vector<8x24x4xbf16>
    %20 = vector.shape_cast %18 : vector<1x4xbf16> to vector<1x1x4xbf16>
    %21 = vector.broadcast %20 : vector<1x1x4xbf16> to vector<8x24x4xbf16>
    %22 = arith.mulf %19, %21 : vector<8x24x4xbf16>
    %23 = arith.addf %17, %22 : vector<8x24x4xbf16>
    %24 = vector.extract_strided_slice %13 {offsets = [7, 0], sizes = [1, 4], strides = [1, 1]} : vector<49x4xbf16> to vector<1x4xbf16>
    %25 = vector.extract_strided_slice %16 {offsets = [1, 0, 0], sizes = [8, 24, 4], strides = [1, 1, 1]} : vector<14x24x4xbf16> to vector<8x24x4xbf16>
    %26 = vector.shape_cast %24 : vector<1x4xbf16> to vector<1x1x4xbf16>
    %27 = vector.broadcast %26 : vector<1x1x4xbf16> to vector<8x24x4xbf16>
    %28 = arith.mulf %25, %27 : vector<8x24x4xbf16>
    %29 = arith.addf %23, %28 : vector<8x24x4xbf16>
    %30 = vector.extract_strided_slice %13 {offsets = [14, 0], sizes = [1, 4], strides = [1, 1]} : vector<49x4xbf16> to vector<1x4xbf16>
    %31 = vector.extract_strided_slice %16 {offsets = [2, 0, 0], sizes = [8, 24, 4], strides = [1, 1, 1]} : vector<14x24x4xbf16> to vector<8x24x4xbf16>
    %32 = vector.shape_cast %30 : vector<1x4xbf16> to vector<1x1x4xbf16>
    %33 = vector.broadcast %32 : vector<1x1x4xbf16> to vector<8x24x4xbf16>
    %34 = arith.mulf %31, %33 : vector<8x24x4xbf16>
    %35 = arith.addf %29, %34 : vector<8x24x4xbf16>
    %36 = vector.extract_strided_slice %13 {offsets = [21, 0], sizes = [1, 4], strides = [1, 1]} : vector<49x4xbf16> to vector<1x4xbf16>
    %37 = vector.extract_strided_slice %16 {offsets = [3, 0, 0], sizes = [8, 24, 4], strides = [1, 1, 1]} : vector<14x24x4xbf16> to vector<8x24x4xbf16>
    %38 = vector.shape_cast %36 : vector<1x4xbf16> to vector<1x1x4xbf16>
    %39 = vector.broadcast %38 : vector<1x1x4xbf16> to vector<8x24x4xbf16>
    %40 = arith.mulf %37, %39 : vector<8x24x4xbf16>
    %41 = arith.addf %35, %40 : vector<8x24x4xbf16>
    %42 = vector.extract_strided_slice %13 {offsets = [28, 0], sizes = [1, 4], strides = [1, 1]} : vector<49x4xbf16> to vector<1x4xbf16>
    %43 = vector.extract_strided_slice %16 {offsets = [4, 0, 0], sizes = [8, 24, 4], strides = [1, 1, 1]} : vector<14x24x4xbf16> to vector<8x24x4xbf16>
    %44 = vector.shape_cast %42 : vector<1x4xbf16> to vector<1x1x4xbf16>
    %45 = vector.broadcast %44 : vector<1x1x4xbf16> to vector<8x24x4xbf16>
    %46 = arith.mulf %43, %45 : vector<8x24x4xbf16>
    %47 = arith.addf %41, %46 : vector<8x24x4xbf16>
    %48 = vector.extract_strided_slice %13 {offsets = [35, 0], sizes = [1, 4], strides = [1, 1]} : vector<49x4xbf16> to vector<1x4xbf16>
    %49 = vector.extract_strided_slice %16 {offsets = [5, 0, 0], sizes = [8, 24, 4], strides = [1, 1, 1]} : vector<14x24x4xbf16> to vector<8x24x4xbf16>
    %50 = vector.shape_cast %48 : vector<1x4xbf16> to vector<1x1x4xbf16>
    %51 = vector.broadcast %50 : vector<1x1x4xbf16> to vector<8x24x4xbf16>
    %52 = arith.mulf %49, %51 : vector<8x24x4xbf16>
    %53 = arith.addf %47, %52 : vector<8x24x4xbf16>
    %54 = vector.extract_strided_slice %13 {offsets = [42, 0], sizes = [1, 4], strides = [1, 1]} : vector<49x4xbf16> to vector<1x4xbf16>
    %55 = vector.extract_strided_slice %16 {offsets = [6, 0, 0], sizes = [8, 24, 4], strides = [1, 1, 1]} : vector<14x24x4xbf16> to vector<8x24x4xbf16>
    %56 = vector.shape_cast %54 : vector<1x4xbf16> to vector<1x1x4xbf16>
    %57 = vector.broadcast %56 : vector<1x1x4xbf16> to vector<8x24x4xbf16>
    %58 = arith.mulf %55, %57 : vector<8x24x4xbf16>
    %59 = arith.addf %53, %58 : vector<8x24x4xbf16>
    %60 = arith.extf %59 : vector<8x24x4xbf16> to vector<8x24x4xf32>
    %61 = arith.addf %14, %60 : vector<8x24x4xf32>
    %c2_i32 = arith.constant 2 : i32
    %62 = tpu.dynamic_rotate %11 by %c2_i32 dim 1 : vector<14x24x4xf32>, i32 -> vector<14x24x4xf32>
    %63 = arith.truncf %62 : vector<14x24x4xf32> to vector<14x24x4xbf16>
    %cst_23 = arith.constant 0.000000e+00 : bf16
    %64 = vector.broadcast %cst_23 : bf16 to vector<8x24x4xbf16>
    %65 = vector.extract_strided_slice %13 {offsets = [1, 0], sizes = [1, 4], strides = [1, 1]} : vector<49x4xbf16> to vector<1x4xbf16>
    %66 = vector.extract_strided_slice %63 {offsets = [0, 0, 0], sizes = [8, 24, 4], strides = [1, 1, 1]} : vector<14x24x4xbf16> to vector<8x24x4xbf16>
    %67 = vector.shape_cast %65 : vector<1x4xbf16> to vector<1x1x4xbf16>
    %68 = vector.broadcast %67 : vector<1x1x4xbf16> to vector<8x24x4xbf16>
    %69 = arith.mulf %66, %68 : vector<8x24x4xbf16>
    %70 = arith.addf %64, %69 : vector<8x24x4xbf16>
    %71 = vector.extract_strided_slice %13 {offsets = [8, 0], sizes = [1, 4], strides = [1, 1]} : vector<49x4xbf16> to vector<1x4xbf16>
    %72 = vector.extract_strided_slice %63 {offsets = [1, 0, 0], sizes = [8, 24, 4], strides = [1, 1, 1]} : vector<14x24x4xbf16> to vector<8x24x4xbf16>
    %73 = vector.shape_cast %71 : vector<1x4xbf16> to vector<1x1x4xbf16>
    %74 = vector.broadcast %73 : vector<1x1x4xbf16> to vector<8x24x4xbf16>
    %75 = arith.mulf %72, %74 : vector<8x24x4xbf16>
    %76 = arith.addf %70, %75 : vector<8x24x4xbf16>
    %77 = vector.extract_strided_slice %13 {offsets = [15, 0], sizes = [1, 4], strides = [1, 1]} : vector<49x4xbf16> to vector<1x4xbf16>
    %78 = vector.extract_strided_slice %63 {offsets = [2, 0, 0], sizes = [8, 24, 4], strides = [1, 1, 1]} : vector<14x24x4xbf16> to vector<8x24x4xbf16>
    %79 = vector.shape_cast %77 : vector<1x4xbf16> to vector<1x1x4xbf16>
    %80 = vector.broadcast %79 : vector<1x1x4xbf16> to vector<8x24x4xbf16>
    %81 = arith.mulf %78, %80 : vector<8x24x4xbf16>
    %82 = arith.addf %76, %81 : vector<8x24x4xbf16>
    %83 = vector.extract_strided_slice %13 {offsets = [22, 0], sizes = [1, 4], strides = [1, 1]} : vector<49x4xbf16> to vector<1x4xbf16>
    %84 = vector.extract_strided_slice %63 {offsets = [3, 0, 0], sizes = [8, 24, 4], strides = [1, 1, 1]} : vector<14x24x4xbf16> to vector<8x24x4xbf16>
    %85 = vector.shape_cast %83 : vector<1x4xbf16> to vector<1x1x4xbf16>
    %86 = vector.broadcast %85 : vector<1x1x4xbf16> to vector<8x24x4xbf16>
    %87 = arith.mulf %84, %86 : vector<8x24x4xbf16>
    %88 = arith.addf %82, %87 : vector<8x24x4xbf16>
    %89 = vector.extract_strided_slice %13 {offsets = [29, 0], sizes = [1, 4], strides = [1, 1]} : vector<49x4xbf16> to vector<1x4xbf16>
    %90 = vector.extract_strided_slice %63 {offsets = [4, 0, 0], sizes = [8, 24, 4], strides = [1, 1, 1]} : vector<14x24x4xbf16> to vector<8x24x4xbf16>
    %91 = vector.shape_cast %89 : vector<1x4xbf16> to vector<1x1x4xbf16>
    %92 = vector.broadcast %91 : vector<1x1x4xbf16> to vector<8x24x4xbf16>
    %93 = arith.mulf %90, %92 : vector<8x24x4xbf16>
    %94 = arith.addf %88, %93 : vector<8x24x4xbf16>
    %95 = vector.extract_strided_slice %13 {offsets = [36, 0], sizes = [1, 4], strides = [1, 1]} : vector<49x4xbf16> to vector<1x4xbf16>
    %96 = vector.extract_strided_slice %63 {offsets = [5, 0, 0], sizes = [8, 24, 4], strides = [1, 1, 1]} : vector<14x24x4xbf16> to vector<8x24x4xbf16>
    %97 = vector.shape_cast %95 : vector<1x4xbf16> to vector<1x1x4xbf16>
    %98 = vector.broadcast %97 : vector<1x1x4xbf16> to vector<8x24x4xbf16>
    %99 = arith.mulf %96, %98 : vector<8x24x4xbf16>
    %100 = arith.addf %94, %99 : vector<8x24x4xbf16>
    %101 = vector.extract_strided_slice %13 {offsets = [43, 0], sizes = [1, 4], strides = [1, 1]} : vector<49x4xbf16> to vector<1x4xbf16>
    %102 = vector.extract_strided_slice %63 {offsets = [6, 0, 0], sizes = [8, 24, 4], strides = [1, 1, 1]} : vector<14x24x4xbf16> to vector<8x24x4xbf16>
    %103 = vector.shape_cast %101 : vector<1x4xbf16> to vector<1x1x4xbf16>
    %104 = vector.broadcast %103 : vector<1x1x4xbf16> to vector<8x24x4xbf16>
    %105 = arith.mulf %102, %104 : vector<8x24x4xbf16>
    %106 = arith.addf %100, %105 : vector<8x24x4xbf16>
    %107 = arith.extf %106 : vector<8x24x4xbf16> to vector<8x24x4xf32>
    %108 = arith.addf %61, %107 : vector<8x24x4xf32>
    %c1_i32 = arith.constant 1 : i32
    %109 = tpu.dynamic_rotate %11 by %c1_i32 dim 1 : vector<14x24x4xf32>, i32 -> vector<14x24x4xf32>
    %110 = arith.truncf %109 : vector<14x24x4xf32> to vector<14x24x4xbf16>
    %cst_24 = arith.constant 0.000000e+00 : bf16
    %111 = vector.broadcast %cst_24 : bf16 to vector<8x24x4xbf16>
    %112 = vector.extract_strided_slice %13 {offsets = [2, 0], sizes = [1, 4], strides = [1, 1]} : vector<49x4xbf16> to vector<1x4xbf16>
    %113 = vector.extract_strided_slice %110 {offsets = [0, 0, 0], sizes = [8, 24, 4], strides = [1, 1, 1]} : vector<14x24x4xbf16> to vector<8x24x4xbf16>
    %114 = vector.shape_cast %112 : vector<1x4xbf16> to vector<1x1x4xbf16>
    %115 = vector.broadcast %114 : vector<1x1x4xbf16> to vector<8x24x4xbf16>
    %116 = arith.mulf %113, %115 : vector<8x24x4xbf16>
    %117 = arith.addf %111, %116 : vector<8x24x4xbf16>
    %118 = vector.extract_strided_slice %13 {offsets = [9, 0], sizes = [1, 4], strides = [1, 1]} : vector<49x4xbf16> to vector<1x4xbf16>
    %119 = vector.extract_strided_slice %110 {offsets = [1, 0, 0], sizes = [8, 24, 4], strides = [1, 1, 1]} : vector<14x24x4xbf16> to vector<8x24x4xbf16>
    %120 = vector.shape_cast %118 : vector<1x4xbf16> to vector<1x1x4xbf16>
    %121 = vector.broadcast %120 : vector<1x1x4xbf16> to vector<8x24x4xbf16>
    %122 = arith.mulf %119, %121 : vector<8x24x4xbf16>
    %123 = arith.addf %117, %122 : vector<8x24x4xbf16>
    %124 = vector.extract_strided_slice %13 {offsets = [16, 0], sizes = [1, 4], strides = [1, 1]} : vector<49x4xbf16> to vector<1x4xbf16>
    %125 = vector.extract_strided_slice %110 {offsets = [2, 0, 0], sizes = [8, 24, 4], strides = [1, 1, 1]} : vector<14x24x4xbf16> to vector<8x24x4xbf16>
    %126 = vector.shape_cast %124 : vector<1x4xbf16> to vector<1x1x4xbf16>
    %127 = vector.broadcast %126 : vector<1x1x4xbf16> to vector<8x24x4xbf16>
    %128 = arith.mulf %125, %127 : vector<8x24x4xbf16>
    %129 = arith.addf %123, %128 : vector<8x24x4xbf16>
    %130 = vector.extract_strided_slice %13 {offsets = [23, 0], sizes = [1, 4], strides = [1, 1]} : vector<49x4xbf16> to vector<1x4xbf16>
    %131 = vector.extract_strided_slice %110 {offsets = [3, 0, 0], sizes = [8, 24, 4], strides = [1, 1, 1]} : vector<14x24x4xbf16> to vector<8x24x4xbf16>
    %132 = vector.shape_cast %130 : vector<1x4xbf16> to vector<1x1x4xbf16>
    %133 = vector.broadcast %132 : vector<1x1x4xbf16> to vector<8x24x4xbf16>
    %134 = arith.mulf %131, %133 : vector<8x24x4xbf16>
    %135 = arith.addf %129, %134 : vector<8x24x4xbf16>
    %136 = vector.extract_strided_slice %13 {offsets = [30, 0], sizes = [1, 4], strides = [1, 1]} : vector<49x4xbf16> to vector<1x4xbf16>
    %137 = vector.extract_strided_slice %110 {offsets = [4, 0, 0], sizes = [8, 24, 4], strides = [1, 1, 1]} : vector<14x24x4xbf16> to vector<8x24x4xbf16>
    %138 = vector.shape_cast %136 : vector<1x4xbf16> to vector<1x1x4xbf16>
    %139 = vector.broadcast %138 : vector<1x1x4xbf16> to vector<8x24x4xbf16>
    %140 = arith.mulf %137, %139 : vector<8x24x4xbf16>
    %141 = arith.addf %135, %140 : vector<8x24x4xbf16>
    %142 = vector.extract_strided_slice %13 {offsets = [37, 0], sizes = [1, 4], strides = [1, 1]} : vector<49x4xbf16> to vector<1x4xbf16>
    %143 = vector.extract_strided_slice %110 {offsets = [5, 0, 0], sizes = [8, 24, 4], strides = [1, 1, 1]} : vector<14x24x4xbf16> to vector<8x24x4xbf16>
    %144 = vector.shape_cast %142 : vector<1x4xbf16> to vector<1x1x4xbf16>
    %145 = vector.broadcast %144 : vector<1x1x4xbf16> to vector<8x24x4xbf16>
    %146 = arith.mulf %143, %145 : vector<8x24x4xbf16>
    %147 = arith.addf %141, %146 : vector<8x24x4xbf16>
    %148 = vector.extract_strided_slice %13 {offsets = [44, 0], sizes = [1, 4], strides = [1, 1]} : vector<49x4xbf16> to vector<1x4xbf16>
    %149 = vector.extract_strided_slice %110 {offsets = [6, 0, 0], sizes = [8, 24, 4], strides = [1, 1, 1]} : vector<14x24x4xbf16> to vector<8x24x4xbf16>
    %150 = vector.shape_cast %148 : vector<1x4xbf16> to vector<1x1x4xbf16>
    %151 = vector.broadcast %150 : vector<1x1x4xbf16> to vector<8x24x4xbf16>
    %152 = arith.mulf %149, %151 : vector<8x24x4xbf16>
    %153 = arith.addf %147, %152 : vector<8x24x4xbf16>
    %154 = arith.extf %153 : vector<8x24x4xbf16> to vector<8x24x4xf32>
    %155 = arith.addf %108, %154 : vector<8x24x4xf32>
    %156 = arith.truncf %11 : vector<14x24x4xf32> to vector<14x24x4xbf16>
    %cst_25 = arith.constant 0.000000e+00 : bf16
    %157 = vector.broadcast %cst_25 : bf16 to vector<8x24x4xbf16>
    %158 = vector.extract_strided_slice %13 {offsets = [3, 0], sizes = [1, 4], strides = [1, 1]} : vector<49x4xbf16> to vector<1x4xbf16>
    %159 = vector.extract_strided_slice %156 {offsets = [0, 0, 0], sizes = [8, 24, 4], strides = [1, 1, 1]} : vector<14x24x4xbf16> to vector<8x24x4xbf16>
    %160 = vector.shape_cast %158 : vector<1x4xbf16> to vector<1x1x4xbf16>
    %161 = vector.broadcast %160 : vector<1x1x4xbf16> to vector<8x24x4xbf16>
    %162 = arith.mulf %159, %161 : vector<8x24x4xbf16>
    %163 = arith.addf %157, %162 : vector<8x24x4xbf16>
    %164 = vector.extract_strided_slice %13 {offsets = [10, 0], sizes = [1, 4], strides = [1, 1]} : vector<49x4xbf16> to vector<1x4xbf16>
    %165 = vector.extract_strided_slice %156 {offsets = [1, 0, 0], sizes = [8, 24, 4], strides = [1, 1, 1]} : vector<14x24x4xbf16> to vector<8x24x4xbf16>
    %166 = vector.shape_cast %164 : vector<1x4xbf16> to vector<1x1x4xbf16>
    %167 = vector.broadcast %166 : vector<1x1x4xbf16> to vector<8x24x4xbf16>
    %168 = arith.mulf %165, %167 : vector<8x24x4xbf16>
    %169 = arith.addf %163, %168 : vector<8x24x4xbf16>
    %170 = vector.extract_strided_slice %13 {offsets = [17, 0], sizes = [1, 4], strides = [1, 1]} : vector<49x4xbf16> to vector<1x4xbf16>
    %171 = vector.extract_strided_slice %156 {offsets = [2, 0, 0], sizes = [8, 24, 4], strides = [1, 1, 1]} : vector<14x24x4xbf16> to vector<8x24x4xbf16>
    %172 = vector.shape_cast %170 : vector<1x4xbf16> to vector<1x1x4xbf16>
    %173 = vector.broadcast %172 : vector<1x1x4xbf16> to vector<8x24x4xbf16>
    %174 = arith.mulf %171, %173 : vector<8x24x4xbf16>
    %175 = arith.addf %169, %174 : vector<8x24x4xbf16>
    %176 = vector.extract_strided_slice %13 {offsets = [24, 0], sizes = [1, 4], strides = [1, 1]} : vector<49x4xbf16> to vector<1x4xbf16>
    %177 = vector.extract_strided_slice %156 {offsets = [3, 0, 0], sizes = [8, 24, 4], strides = [1, 1, 1]} : vector<14x24x4xbf16> to vector<8x24x4xbf16>
    %178 = vector.shape_cast %176 : vector<1x4xbf16> to vector<1x1x4xbf16>
    %179 = vector.broadcast %178 : vector<1x1x4xbf16> to vector<8x24x4xbf16>
    %180 = arith.mulf %177, %179 : vector<8x24x4xbf16>
    %181 = arith.addf %175, %180 : vector<8x24x4xbf16>
    %182 = vector.extract_strided_slice %13 {offsets = [31, 0], sizes = [1, 4], strides = [1, 1]} : vector<49x4xbf16> to vector<1x4xbf16>
    %183 = vector.extract_strided_slice %156 {offsets = [4, 0, 0], sizes = [8, 24, 4], strides = [1, 1, 1]} : vector<14x24x4xbf16> to vector<8x24x4xbf16>
    %184 = vector.shape_cast %182 : vector<1x4xbf16> to vector<1x1x4xbf16>
    %185 = vector.broadcast %184 : vector<1x1x4xbf16> to vector<8x24x4xbf16>
    %186 = arith.mulf %183, %185 : vector<8x24x4xbf16>
    %187 = arith.addf %181, %186 : vector<8x24x4xbf16>
    %188 = vector.extract_strided_slice %13 {offsets = [38, 0], sizes = [1, 4], strides = [1, 1]} : vector<49x4xbf16> to vector<1x4xbf16>
    %189 = vector.extract_strided_slice %156 {offsets = [5, 0, 0], sizes = [8, 24, 4], strides = [1, 1, 1]} : vector<14x24x4xbf16> to vector<8x24x4xbf16>
    %190 = vector.shape_cast %188 : vector<1x4xbf16> to vector<1x1x4xbf16>
    %191 = vector.broadcast %190 : vector<1x1x4xbf16> to vector<8x24x4xbf16>
    %192 = arith.mulf %189, %191 : vector<8x24x4xbf16>
    %193 = arith.addf %187, %192 : vector<8x24x4xbf16>
    %194 = vector.extract_strided_slice %13 {offsets = [45, 0], sizes = [1, 4], strides = [1, 1]} : vector<49x4xbf16> to vector<1x4xbf16>
    %195 = vector.extract_strided_slice %156 {offsets = [6, 0, 0], sizes = [8, 24, 4], strides = [1, 1, 1]} : vector<14x24x4xbf16> to vector<8x24x4xbf16>
    %196 = vector.shape_cast %194 : vector<1x4xbf16> to vector<1x1x4xbf16>
    %197 = vector.broadcast %196 : vector<1x1x4xbf16> to vector<8x24x4xbf16>
    %198 = arith.mulf %195, %197 : vector<8x24x4xbf16>
    %199 = arith.addf %193, %198 : vector<8x24x4xbf16>
    %200 = arith.extf %199 : vector<8x24x4xbf16> to vector<8x24x4xf32>
    %201 = arith.addf %155, %200 : vector<8x24x4xf32>
    %c23_i32 = arith.constant 23 : i32
    %202 = tpu.dynamic_rotate %11 by %c23_i32 dim 1 : vector<14x24x4xf32>, i32 -> vector<14x24x4xf32>
    %203 = arith.truncf %202 : vector<14x24x4xf32> to vector<14x24x4xbf16>
    %cst_26 = arith.constant 0.000000e+00 : bf16
    %204 = vector.broadcast %cst_26 : bf16 to vector<8x24x4xbf16>
    %205 = vector.extract_strided_slice %13 {offsets = [4, 0], sizes = [1, 4], strides = [1, 1]} : vector<49x4xbf16> to vector<1x4xbf16>
    %206 = vector.extract_strided_slice %203 {offsets = [0, 0, 0], sizes = [8, 24, 4], strides = [1, 1, 1]} : vector<14x24x4xbf16> to vector<8x24x4xbf16>
    %207 = vector.shape_cast %205 : vector<1x4xbf16> to vector<1x1x4xbf16>
    %208 = vector.broadcast %207 : vector<1x1x4xbf16> to vector<8x24x4xbf16>
    %209 = arith.mulf %206, %208 : vector<8x24x4xbf16>
    %210 = arith.addf %204, %209 : vector<8x24x4xbf16>
    %211 = vector.extract_strided_slice %13 {offsets = [11, 0], sizes = [1, 4], strides = [1, 1]} : vector<49x4xbf16> to vector<1x4xbf16>
    %212 = vector.extract_strided_slice %203 {offsets = [1, 0, 0], sizes = [8, 24, 4], strides = [1, 1, 1]} : vector<14x24x4xbf16> to vector<8x24x4xbf16>
    %213 = vector.shape_cast %211 : vector<1x4xbf16> to vector<1x1x4xbf16>
    %214 = vector.broadcast %213 : vector<1x1x4xbf16> to vector<8x24x4xbf16>
    %215 = arith.mulf %212, %214 : vector<8x24x4xbf16>
    %216 = arith.addf %210, %215 : vector<8x24x4xbf16>
    %217 = vector.extract_strided_slice %13 {offsets = [18, 0], sizes = [1, 4], strides = [1, 1]} : vector<49x4xbf16> to vector<1x4xbf16>
    %218 = vector.extract_strided_slice %203 {offsets = [2, 0, 0], sizes = [8, 24, 4], strides = [1, 1, 1]} : vector<14x24x4xbf16> to vector<8x24x4xbf16>
    %219 = vector.shape_cast %217 : vector<1x4xbf16> to vector<1x1x4xbf16>
    %220 = vector.broadcast %219 : vector<1x1x4xbf16> to vector<8x24x4xbf16>
    %221 = arith.mulf %218, %220 : vector<8x24x4xbf16>
    %222 = arith.addf %216, %221 : vector<8x24x4xbf16>
    %223 = vector.extract_strided_slice %13 {offsets = [25, 0], sizes = [1, 4], strides = [1, 1]} : vector<49x4xbf16> to vector<1x4xbf16>
    %224 = vector.extract_strided_slice %203 {offsets = [3, 0, 0], sizes = [8, 24, 4], strides = [1, 1, 1]} : vector<14x24x4xbf16> to vector<8x24x4xbf16>
    %225 = vector.shape_cast %223 : vector<1x4xbf16> to vector<1x1x4xbf16>
    %226 = vector.broadcast %225 : vector<1x1x4xbf16> to vector<8x24x4xbf16>
    %227 = arith.mulf %224, %226 : vector<8x24x4xbf16>
    %228 = arith.addf %222, %227 : vector<8x24x4xbf16>
    %229 = vector.extract_strided_slice %13 {offsets = [32, 0], sizes = [1, 4], strides = [1, 1]} : vector<49x4xbf16> to vector<1x4xbf16>
    %230 = vector.extract_strided_slice %203 {offsets = [4, 0, 0], sizes = [8, 24, 4], strides = [1, 1, 1]} : vector<14x24x4xbf16> to vector<8x24x4xbf16>
    %231 = vector.shape_cast %229 : vector<1x4xbf16> to vector<1x1x4xbf16>
    %232 = vector.broadcast %231 : vector<1x1x4xbf16> to vector<8x24x4xbf16>
    %233 = arith.mulf %230, %232 : vector<8x24x4xbf16>
    %234 = arith.addf %228, %233 : vector<8x24x4xbf16>
    %235 = vector.extract_strided_slice %13 {offsets = [39, 0], sizes = [1, 4], strides = [1, 1]} : vector<49x4xbf16> to vector<1x4xbf16>
    %236 = vector.extract_strided_slice %203 {offsets = [5, 0, 0], sizes = [8, 24, 4], strides = [1, 1, 1]} : vector<14x24x4xbf16> to vector<8x24x4xbf16>
    %237 = vector.shape_cast %235 : vector<1x4xbf16> to vector<1x1x4xbf16>
    %238 = vector.broadcast %237 : vector<1x1x4xbf16> to vector<8x24x4xbf16>
    %239 = arith.mulf %236, %238 : vector<8x24x4xbf16>
    %240 = arith.addf %234, %239 : vector<8x24x4xbf16>
    %241 = vector.extract_strided_slice %13 {offsets = [46, 0], sizes = [1, 4], strides = [1, 1]} : vector<49x4xbf16> to vector<1x4xbf16>
    %242 = vector.extract_strided_slice %203 {offsets = [6, 0, 0], sizes = [8, 24, 4], strides = [1, 1, 1]} : vector<14x24x4xbf16> to vector<8x24x4xbf16>
    %243 = vector.shape_cast %241 : vector<1x4xbf16> to vector<1x1x4xbf16>
    %244 = vector.broadcast %243 : vector<1x1x4xbf16> to vector<8x24x4xbf16>
    %245 = arith.mulf %242, %244 : vector<8x24x4xbf16>
    %246 = arith.addf %240, %245 : vector<8x24x4xbf16>
    %247 = arith.extf %246 : vector<8x24x4xbf16> to vector<8x24x4xf32>
    %248 = arith.addf %201, %247 : vector<8x24x4xf32>
    %c22_i32 = arith.constant 22 : i32
    %249 = tpu.dynamic_rotate %11 by %c22_i32 dim 1 : vector<14x24x4xf32>, i32 -> vector<14x24x4xf32>
    %250 = arith.truncf %249 : vector<14x24x4xf32> to vector<14x24x4xbf16>
    %cst_27 = arith.constant 0.000000e+00 : bf16
    %251 = vector.broadcast %cst_27 : bf16 to vector<8x24x4xbf16>
    %252 = vector.extract_strided_slice %13 {offsets = [5, 0], sizes = [1, 4], strides = [1, 1]} : vector<49x4xbf16> to vector<1x4xbf16>
    %253 = vector.extract_strided_slice %250 {offsets = [0, 0, 0], sizes = [8, 24, 4], strides = [1, 1, 1]} : vector<14x24x4xbf16> to vector<8x24x4xbf16>
    %254 = vector.shape_cast %252 : vector<1x4xbf16> to vector<1x1x4xbf16>
    %255 = vector.broadcast %254 : vector<1x1x4xbf16> to vector<8x24x4xbf16>
    %256 = arith.mulf %253, %255 : vector<8x24x4xbf16>
    %257 = arith.addf %251, %256 : vector<8x24x4xbf16>
    %258 = vector.extract_strided_slice %13 {offsets = [12, 0], sizes = [1, 4], strides = [1, 1]} : vector<49x4xbf16> to vector<1x4xbf16>
    %259 = vector.extract_strided_slice %250 {offsets = [1, 0, 0], sizes = [8, 24, 4], strides = [1, 1, 1]} : vector<14x24x4xbf16> to vector<8x24x4xbf16>
    %260 = vector.shape_cast %258 : vector<1x4xbf16> to vector<1x1x4xbf16>
    %261 = vector.broadcast %260 : vector<1x1x4xbf16> to vector<8x24x4xbf16>
    %262 = arith.mulf %259, %261 : vector<8x24x4xbf16>
    %263 = arith.addf %257, %262 : vector<8x24x4xbf16>
    %264 = vector.extract_strided_slice %13 {offsets = [19, 0], sizes = [1, 4], strides = [1, 1]} : vector<49x4xbf16> to vector<1x4xbf16>
    %265 = vector.extract_strided_slice %250 {offsets = [2, 0, 0], sizes = [8, 24, 4], strides = [1, 1, 1]} : vector<14x24x4xbf16> to vector<8x24x4xbf16>
    %266 = vector.shape_cast %264 : vector<1x4xbf16> to vector<1x1x4xbf16>
    %267 = vector.broadcast %266 : vector<1x1x4xbf16> to vector<8x24x4xbf16>
    %268 = arith.mulf %265, %267 : vector<8x24x4xbf16>
    %269 = arith.addf %263, %268 : vector<8x24x4xbf16>
    %270 = vector.extract_strided_slice %13 {offsets = [26, 0], sizes = [1, 4], strides = [1, 1]} : vector<49x4xbf16> to vector<1x4xbf16>
    %271 = vector.extract_strided_slice %250 {offsets = [3, 0, 0], sizes = [8, 24, 4], strides = [1, 1, 1]} : vector<14x24x4xbf16> to vector<8x24x4xbf16>
    %272 = vector.shape_cast %270 : vector<1x4xbf16> to vector<1x1x4xbf16>
    %273 = vector.broadcast %272 : vector<1x1x4xbf16> to vector<8x24x4xbf16>
    %274 = arith.mulf %271, %273 : vector<8x24x4xbf16>
    %275 = arith.addf %269, %274 : vector<8x24x4xbf16>
    %276 = vector.extract_strided_slice %13 {offsets = [33, 0], sizes = [1, 4], strides = [1, 1]} : vector<49x4xbf16> to vector<1x4xbf16>
    %277 = vector.extract_strided_slice %250 {offsets = [4, 0, 0], sizes = [8, 24, 4], strides = [1, 1, 1]} : vector<14x24x4xbf16> to vector<8x24x4xbf16>
    %278 = vector.shape_cast %276 : vector<1x4xbf16> to vector<1x1x4xbf16>
    %279 = vector.broadcast %278 : vector<1x1x4xbf16> to vector<8x24x4xbf16>
    %280 = arith.mulf %277, %279 : vector<8x24x4xbf16>
    %281 = arith.addf %275, %280 : vector<8x24x4xbf16>
    %282 = vector.extract_strided_slice %13 {offsets = [40, 0], sizes = [1, 4], strides = [1, 1]} : vector<49x4xbf16> to vector<1x4xbf16>
    %283 = vector.extract_strided_slice %250 {offsets = [5, 0, 0], sizes = [8, 24, 4], strides = [1, 1, 1]} : vector<14x24x4xbf16> to vector<8x24x4xbf16>
    %284 = vector.shape_cast %282 : vector<1x4xbf16> to vector<1x1x4xbf16>
    %285 = vector.broadcast %284 : vector<1x1x4xbf16> to vector<8x24x4xbf16>
    %286 = arith.mulf %283, %285 : vector<8x24x4xbf16>
    %287 = arith.addf %281, %286 : vector<8x24x4xbf16>
    %288 = vector.extract_strided_slice %13 {offsets = [47, 0], sizes = [1, 4], strides = [1, 1]} : vector<49x4xbf16> to vector<1x4xbf16>
    %289 = vector.extract_strided_slice %250 {offsets = [6, 0, 0], sizes = [8, 24, 4], strides = [1, 1, 1]} : vector<14x24x4xbf16> to vector<8x24x4xbf16>
    %290 = vector.shape_cast %288 : vector<1x4xbf16> to vector<1x1x4xbf16>
    %291 = vector.broadcast %290 : vector<1x1x4xbf16> to vector<8x24x4xbf16>
    %292 = arith.mulf %289, %291 : vector<8x24x4xbf16>
    %293 = arith.addf %287, %292 : vector<8x24x4xbf16>
    %294 = arith.extf %293 : vector<8x24x4xbf16> to vector<8x24x4xf32>
    %295 = arith.addf %248, %294 : vector<8x24x4xf32>
    %c21_i32 = arith.constant 21 : i32
    %296 = tpu.dynamic_rotate %11 by %c21_i32 dim 1 : vector<14x24x4xf32>, i32 -> vector<14x24x4xf32>
    %297 = arith.truncf %296 : vector<14x24x4xf32> to vector<14x24x4xbf16>
    %cst_28 = arith.constant 0.000000e+00 : bf16
    %298 = vector.broadcast %cst_28 : bf16 to vector<8x24x4xbf16>
    %299 = vector.extract_strided_slice %13 {offsets = [6, 0], sizes = [1, 4], strides = [1, 1]} : vector<49x4xbf16> to vector<1x4xbf16>
    %300 = vector.extract_strided_slice %297 {offsets = [0, 0, 0], sizes = [8, 24, 4], strides = [1, 1, 1]} : vector<14x24x4xbf16> to vector<8x24x4xbf16>
    %301 = vector.shape_cast %299 : vector<1x4xbf16> to vector<1x1x4xbf16>
    %302 = vector.broadcast %301 : vector<1x1x4xbf16> to vector<8x24x4xbf16>
    %303 = arith.mulf %300, %302 : vector<8x24x4xbf16>
    %304 = arith.addf %298, %303 : vector<8x24x4xbf16>
    %305 = vector.extract_strided_slice %13 {offsets = [13, 0], sizes = [1, 4], strides = [1, 1]} : vector<49x4xbf16> to vector<1x4xbf16>
    %306 = vector.extract_strided_slice %297 {offsets = [1, 0, 0], sizes = [8, 24, 4], strides = [1, 1, 1]} : vector<14x24x4xbf16> to vector<8x24x4xbf16>
    %307 = vector.shape_cast %305 : vector<1x4xbf16> to vector<1x1x4xbf16>
    %308 = vector.broadcast %307 : vector<1x1x4xbf16> to vector<8x24x4xbf16>
    %309 = arith.mulf %306, %308 : vector<8x24x4xbf16>
    %310 = arith.addf %304, %309 : vector<8x24x4xbf16>
    %311 = vector.extract_strided_slice %13 {offsets = [20, 0], sizes = [1, 4], strides = [1, 1]} : vector<49x4xbf16> to vector<1x4xbf16>
    %312 = vector.extract_strided_slice %297 {offsets = [2, 0, 0], sizes = [8, 24, 4], strides = [1, 1, 1]} : vector<14x24x4xbf16> to vector<8x24x4xbf16>
    %313 = vector.shape_cast %311 : vector<1x4xbf16> to vector<1x1x4xbf16>
    %314 = vector.broadcast %313 : vector<1x1x4xbf16> to vector<8x24x4xbf16>
    %315 = arith.mulf %312, %314 : vector<8x24x4xbf16>
    %316 = arith.addf %310, %315 : vector<8x24x4xbf16>
    %317 = vector.extract_strided_slice %13 {offsets = [27, 0], sizes = [1, 4], strides = [1, 1]} : vector<49x4xbf16> to vector<1x4xbf16>
    %318 = vector.extract_strided_slice %297 {offsets = [3, 0, 0], sizes = [8, 24, 4], strides = [1, 1, 1]} : vector<14x24x4xbf16> to vector<8x24x4xbf16>
    %319 = vector.shape_cast %317 : vector<1x4xbf16> to vector<1x1x4xbf16>
    %320 = vector.broadcast %319 : vector<1x1x4xbf16> to vector<8x24x4xbf16>
    %321 = arith.mulf %318, %320 : vector<8x24x4xbf16>
    %322 = arith.addf %316, %321 : vector<8x24x4xbf16>
    %323 = vector.extract_strided_slice %13 {offsets = [34, 0], sizes = [1, 4], strides = [1, 1]} : vector<49x4xbf16> to vector<1x4xbf16>
    %324 = vector.extract_strided_slice %297 {offsets = [4, 0, 0], sizes = [8, 24, 4], strides = [1, 1, 1]} : vector<14x24x4xbf16> to vector<8x24x4xbf16>
    %325 = vector.shape_cast %323 : vector<1x4xbf16> to vector<1x1x4xbf16>
    %326 = vector.broadcast %325 : vector<1x1x4xbf16> to vector<8x24x4xbf16>
    %327 = arith.mulf %324, %326 : vector<8x24x4xbf16>
    %328 = arith.addf %322, %327 : vector<8x24x4xbf16>
    %329 = vector.extract_strided_slice %13 {offsets = [41, 0], sizes = [1, 4], strides = [1, 1]} : vector<49x4xbf16> to vector<1x4xbf16>
    %330 = vector.extract_strided_slice %297 {offsets = [5, 0, 0], sizes = [8, 24, 4], strides = [1, 1, 1]} : vector<14x24x4xbf16> to vector<8x24x4xbf16>
    %331 = vector.shape_cast %329 : vector<1x4xbf16> to vector<1x1x4xbf16>
    %332 = vector.broadcast %331 : vector<1x1x4xbf16> to vector<8x24x4xbf16>
    %333 = arith.mulf %330, %332 : vector<8x24x4xbf16>
    %334 = arith.addf %328, %333 : vector<8x24x4xbf16>
    %335 = vector.extract_strided_slice %13 {offsets = [48, 0], sizes = [1, 4], strides = [1, 1]} : vector<49x4xbf16> to vector<1x4xbf16>
    %336 = vector.extract_strided_slice %297 {offsets = [6, 0, 0], sizes = [8, 24, 4], strides = [1, 1, 1]} : vector<14x24x4xbf16> to vector<8x24x4xbf16>
    %337 = vector.shape_cast %335 : vector<1x4xbf16> to vector<1x1x4xbf16>
    %338 = vector.broadcast %337 : vector<1x1x4xbf16> to vector<8x24x4xbf16>
    %339 = arith.mulf %336, %338 : vector<8x24x4xbf16>
    %340 = arith.addf %334, %339 : vector<8x24x4xbf16>
    %341 = arith.extf %340 : vector<8x24x4xbf16> to vector<8x24x4xf32>
    %342 = arith.addf %295, %341 : vector<8x24x4xf32>
    %343 = vector.extract_strided_slice %342 {offsets = [0, 0, 0], sizes = [8, 16, 4], strides = [1, 1, 1]} : vector<8x24x4xf32> to vector<8x16x4xf32>
    %c0_29 = arith.constant 0 : index
    %c0_30 = arith.constant 0 : index
    %344 = vector.load %arg5[%c0_29, %c0_30] : memref<1x4xf32, #tpu.memory_space<vmem>>, vector<1x4xf32>
    %345 = vector.shape_cast %344 : vector<1x4xf32> to vector<1x1x4xf32>
    %346 = vector.broadcast %345 : vector<1x1x4xf32> to vector<8x16x4xf32>
    %347 = arith.addf %343, %346 : vector<8x16x4xf32>
    %348 = vector.shape_cast %347 : vector<8x16x4xf32> to vector<128x4xf32>
    %cst_31 = arith.constant dense<0.000000e+00> : vector<128xf32>
    %349 = vector.multi_reduction <add>, %348, %cst_31 [1] : vector<128x4xf32> to vector<128xf32>
    %350 = vector.shape_cast %349 : vector<128xf32> to vector<128x1xf32>
    %cst_32 = arith.constant 4.000000e+00 : f32
    %351 = vector.broadcast %cst_32 : f32 to vector<128x1xf32>
    %352 = arith.divf %350, %351 : vector<128x1xf32>
    %353 = vector.broadcast %352 : vector<128x1xf32> to vector<128x4xf32>
    %354 = arith.subf %348, %353 : vector<128x4xf32>
    %355 = arith.mulf %354, %354 : vector<128x4xf32>
    %cst_33 = arith.constant dense<0.000000e+00> : vector<128xf32>
    %356 = vector.multi_reduction <add>, %355, %cst_33 [1] : vector<128x4xf32> to vector<128xf32>
    %357 = vector.shape_cast %356 : vector<128xf32> to vector<128x1xf32>
    %cst_34 = arith.constant 4.000000e+00 : f32
    %358 = vector.broadcast %cst_34 : f32 to vector<128x1xf32>
    %359 = arith.divf %357, %358 : vector<128x1xf32>
    %cst_35 = arith.constant 9.99999997E-7 : f32
    %360 = vector.broadcast %cst_35 : f32 to vector<128x1xf32>
    %361 = arith.addf %359, %360 : vector<128x1xf32>
    %362 = math.rsqrt %361 : vector<128x1xf32>
    %363 = vector.broadcast %362 : vector<128x1xf32> to vector<128x4xf32>
    %364 = arith.mulf %354, %363 : vector<128x4xf32>
    %c0_36 = arith.constant 0 : index
    %c0_37 = arith.constant 0 : index
    %365 = vector.load %arg6[%c0_36, %c0_37] : memref<1x4xf32, #tpu.memory_space<vmem>>, vector<1x4xf32>
    %366 = vector.broadcast %365 : vector<1x4xf32> to vector<128x4xf32>
    %367 = arith.mulf %364, %366 : vector<128x4xf32>
    %c0_38 = arith.constant 0 : index
    %c0_39 = arith.constant 0 : index
    %368 = vector.load %arg7[%c0_38, %c0_39] : memref<1x4xf32, #tpu.memory_space<vmem>>, vector<1x4xf32>
    %369 = vector.broadcast %368 : vector<1x4xf32> to vector<128x4xf32>
    %370 = arith.addf %367, %369 : vector<128x4xf32>
    %371 = arith.truncf %370 : vector<128x4xf32> to vector<128x4xbf16>
    %c0_40 = arith.constant 0 : index
    %c0_41 = arith.constant 0 : index
    %372 = vector.load %arg8[%c0_40, %c0_41] : memref<4x16xbf16, #tpu.memory_space<vmem>>, vector<4x16xbf16>
    %cst_42 = arith.constant dense<0.000000e+00> : vector<128x16xf32>
    %373 = tpu.matmul %371, %372, %cst_42 {dimension_numbers = #tpu.dot_dimension_numbers<[1], [0], [0], [1], [0, 0, 1, 1], [], []>} : vector<128x4xbf16>, vector<4x16xbf16>, vector<128x16xf32> -> vector<128x16xf32>
    %c0_43 = arith.constant 0 : index
    %c0_44 = arith.constant 0 : index
    %374 = vector.load %arg9[%c0_43, %c0_44] : memref<1x16xf32, #tpu.memory_space<vmem>>, vector<1x16xf32>
    %375 = vector.broadcast %374 : vector<1x16xf32> to vector<128x16xf32>
    %376 = arith.addf %373, %375 : vector<128x16xf32>
    %377 = arith.mulf %376, %376 : vector<128x16xf32>
    %378 = arith.mulf %376, %377 : vector<128x16xf32>
    %cst_45 = arith.constant 4.471500e-02 : f32
    %379 = vector.broadcast %cst_45 : f32 to vector<128x16xf32>
    %380 = arith.mulf %379, %378 : vector<128x16xf32>
    %381 = arith.addf %376, %380 : vector<128x16xf32>
    %cst_46 = arith.constant 0.797884583 : f32
    %382 = vector.broadcast %cst_46 : f32 to vector<128x16xf32>
    %383 = arith.mulf %382, %381 : vector<128x16xf32>
    %384 = math.tanh %383 : vector<128x16xf32>
    %cst_47 = arith.constant 1.000000e+00 : f32
    %385 = vector.broadcast %cst_47 : f32 to vector<128x16xf32>
    %386 = arith.addf %385, %384 : vector<128x16xf32>
    %cst_48 = arith.constant 5.000000e-01 : f32
    %387 = vector.broadcast %cst_48 : f32 to vector<128x16xf32>
    %388 = arith.mulf %387, %386 : vector<128x16xf32>
    %389 = arith.mulf %376, %388 : vector<128x16xf32>
    %390 = arith.truncf %389 : vector<128x16xf32> to vector<128x16xbf16>
    %c0_49 = arith.constant 0 : index
    %c0_50 = arith.constant 0 : index
    %391 = vector.load %arg10[%c0_49, %c0_50] : memref<16x4xbf16, #tpu.memory_space<vmem>>, vector<16x4xbf16>
    %cst_51 = arith.constant dense<0.000000e+00> : vector<128x4xf32>
    %392 = tpu.matmul %390, %391, %cst_51 {dimension_numbers = #tpu.dot_dimension_numbers<[1], [0], [0], [1], [0, 0, 1, 1], [], []>} : vector<128x16xbf16>, vector<16x4xbf16>, vector<128x4xf32> -> vector<128x4xf32>
    %c0_52 = arith.constant 0 : index
    %c0_53 = arith.constant 0 : index
    %393 = vector.load %arg11[%c0_52, %c0_53] : memref<1x4xf32, #tpu.memory_space<vmem>>, vector<1x4xf32>
    %394 = vector.broadcast %393 : vector<1x4xf32> to vector<128x4xf32>
    %395 = arith.addf %392, %394 : vector<128x4xf32>
    %c0_54 = arith.constant 0 : index
    %c0_55 = arith.constant 0 : index
    %396 = vector.load %arg12[%c0_54, %c0_55] : memref<1x4xf32, #tpu.memory_space<vmem>>, vector<1x4xf32>
    %397 = vector.broadcast %396 : vector<1x4xf32> to vector<128x4xf32>
    %398 = arith.mulf %395, %397 : vector<128x4xf32>
    %399 = vector.shape_cast %398 : vector<128x4xf32> to vector<8x16x4xf32>
    %400 = arith.addf %1, %399 : vector<8x16x4xf32>
    %c0_56 = arith.constant 0 : index
    %c0_57 = arith.constant 0 : index
    %c0_58 = arith.constant 0 : index
    %c0_59 = arith.constant 0 : index
    %401 = vector.load %arg13[%c0_56, %c0_57, %c0_58, %c0_59] : memref<1x8x16x4xf32, #tpu.memory_space<vmem>>, vector<1x8x16x4xf32>
    %402 = vector.shape_cast %401 : vector<1x8x16x4xf32> to vector<8x16x4xf32>
    %403 = vector.shape_cast %400 : vector<8x16x4xf32> to vector<1x8x16x4xf32>
    tpu.vector_store %arg13[%c0_56, %c0_57, %c0_58, %c0_59], %403 {strides = array<i32>} : memref<1x8x16x4xf32, #tpu.memory_space<vmem>>, vector<1x8x16x4xf32>,
    return
  }
  func.func @transform_0(%arg0: i32, %arg1: i32) -> (i32, i32, i32, i32) {
    %c0_i32 = arith.constant 0 : i32
    %c0_i32_0 = arith.constant 0 : i32
    %c0_i32_1 = arith.constant 0 : i32
    return %arg0, %arg1, %c0_i32, %c0_i32_0 : i32, i32, i32, i32
  }
  func.func @transform_1(%arg0: i32, %arg1: i32) -> (i32, i32, i32, i32) {
    %c2_i32 = arith.constant 2 : i32
    %0 = arith.muli %arg0, %c2_i32 : i32
    %1 = arith.addi %0, %arg1 : i32
    %c0_i32 = arith.constant 0 : i32
    %c0_i32_0 = arith.constant 0 : i32
    %c0_i32_1 = arith.constant 0 : i32
    %c0_i32_2 = arith.constant 0 : i32
    return %1, %c0_i32, %c0_i32_0, %c0_i32_1 : i32, i32, i32, i32
  }
  func.func @transform_2(%arg0: i32, %arg1: i32) -> (i32, i32) {
    %c0_i32 = arith.constant 0 : i32
    %c0_i32_0 = arith.constant 0 : i32
    %c0_i32_1 = arith.constant 0 : i32
    return %c0_i32, %c0_i32_0 : i32, i32
  }
  func.func @transform_3(%arg0: i32, %arg1: i32) -> (i32, i32) {
    %c0_i32 = arith.constant 0 : i32
    %c0_i32_0 = arith.constant 0 : i32
    %c0_i32_1 = arith.constant 0 : i32
    return %c0_i32, %c0_i32_0 : i32, i32
  }
  func.func @transform_4(%arg0: i32, %arg1: i32) -> (i32, i32) {
    %c0_i32 = arith.constant 0 : i32
    %c0_i32_0 = arith.constant 0 : i32
    %c0_i32_1 = arith.constant 0 : i32
    return %c0_i32, %c0_i32_0 : i32, i32
  }
  func.func @transform_5(%arg0: i32, %arg1: i32) -> (i32, i32) {
    %c0_i32 = arith.constant 0 : i32
    %c0_i32_0 = arith.constant 0 : i32
    %c0_i32_1 = arith.constant 0 : i32
    return %c0_i32, %c0_i32_0 : i32, i32
  }
  func.func @transform_6(%arg0: i32, %arg1: i32) -> (i32, i32) {
    %c0_i32 = arith.constant 0 : i32
    %c0_i32_0 = arith.constant 0 : i32
    %c0_i32_1 = arith.constant 0 : i32
    return %c0_i32, %c0_i32_0 : i32, i32
  }
  func.func @transform_7(%arg0: i32, %arg1: i32) -> (i32, i32) {
    %c0_i32 = arith.constant 0 : i32
    %c0_i32_0 = arith.constant 0 : i32
    %c0_i32_1 = arith.constant 0 : i32
    return %c0_i32, %c0_i32_0 : i32, i32
  }
  func.func @transform_8(%arg0: i32, %arg1: i32) -> (i32, i32) {
    %c0_i32 = arith.constant 0 : i32
    %c0_i32_0 = arith.constant 0 : i32
    %c0_i32_1 = arith.constant 0 : i32
    return %c0_i32, %c0_i32_0 : i32, i32
  }
  func.func @transform_9(%arg0: i32, %arg1: i32) -> (i32, i32) {
    %c0_i32 = arith.constant 0 : i32
    %c0_i32_0 = arith.constant 0 : i32
    %c0_i32_1 = arith.constant 0 : i32
    return %c0_i32, %c0_i32_0 : i32, i32
  }
  func.func @transform_10(%arg0: i32, %arg1: i32) -> (i32, i32) {
    %c0_i32 = arith.constant 0 : i32
    %c0_i32_0 = arith.constant 0 : i32
    %c0_i32_1 = arith.constant 0 : i32
    return %c0_i32, %c0_i32_0 : i32, i32
  }
  func.func @transform_11(%arg0: i32, %arg1: i32) -> (i32, i32, i32, i32) {
    %c0_i32 = arith.constant 0 : i32
    %c0_i32_0 = arith.constant 0 : i32
    %c0_i32_1 = arith.constant 0 : i32
    return %arg0, %arg1, %c0_i32, %c0_i32_0 : i32, i32, i32, i32
  }
}

</mosaic_0001>

<llo_original>
// kernel: tpu_custom_call.1
$region0: #{tpu_custom_call.1}
  #allocation0 [shape = 'u32[]', space=smem, size = 0x4, offset = 0x4, fixed_abs, tag = 'smem constant byte address 0x4 - core index']
  #allocation1 [shape = 'u32[144,128]{1,0:T(1,128)}', space=vmem, size = 0x12000, scoped, tag = 'internal scratch']
  #allocation2 [shape = 'f32[14,24,4]{2,1,0:T(8,128)}', space=vmem, size = 0x2a000, scoped, tag = 'scratch operand']
  %s0 = inlined_call_operand.vmem [shape: f32[2,16,16,4], index: 0, kind: input, shape index: {}]
  %s1 = inlined_call_operand.vmem [shape: f32[4,6,16,4], index: 1, kind: input, shape index: {}]
  %s2 = inlined_call_operand.vmem [shape: f32[49,4], index: 2, kind: input, shape index: {}]
  %s3 = inlined_call_operand.vmem [shape: f32[1,4], index: 3, kind: input, shape index: {}]
  %s4 = inlined_call_operand.vmem [shape: f32[1,4], index: 4, kind: input, shape index: {}]
  %s5 = inlined_call_operand.vmem [shape: f32[1,4], index: 5, kind: input, shape index: {}]
  %s6 = inlined_call_operand.vmem [shape: bf16[4,16], index: 6, kind: input, shape index: {}]
  %s7 = inlined_call_operand.vmem [shape: f32[1,16], index: 7, kind: input, shape index: {}]
  %s8 = inlined_call_operand.vmem [shape: bf16[16,4], index: 8, kind: input, shape index: {}]
  %s9 = inlined_call_operand.vmem [shape: f32[1,4], index: 9, kind: input, shape index: {}]
  %s10 = inlined_call_operand.vmem [shape: f32[1,4], index: 10, kind: input, shape index: {}]
  %s11 = inlined_call_operand.vmem [shape: f32[2,16,16,4], index: 11, kind: output, shape index: {}]
  %s12 = sld [smem:[#allocation0]]
  $region77: #{tpu_custom_call.1} parent=0
    _
  %s14 = ssub.s32 1, %s12
  %s15 = scalar_select 0, %s14, %s12
  loop: start=0, step=1, limit=6
  $region2: #{tpu_custom_call.1} parent=0 // loop_pre_header
    _
  $region3: #{tpu_custom_call.1} parent=0 // loop_header
    %s17 = sphi 0, %s21
    %p18 = scmp.ge.s32.totalorder %s17, 6
    %s24 = sphi 0, %s36
    %s25 = sphi 0, %s32
    %s26 = sphi 0, %s24
    %s27 = sphi 0, %s25
    %s28 = sphi 0, %s26
    %s29 = sphi 0, %s27
    %s41 = sphi 0, %s43
    %s44 = sphi 0, %s41
    %s45 = sphi 0, %s44
    %s61 = sphi 0, %s45
    %s71 = sphi 0, %s73
    %s74 = sphi 0, %s71
    %s75 = sphi 0, %s74
    %s91 = sphi 0, %s75
    %s95 = sphi 0, %s95
    %s97 = sphi 0, %s95
    %s98 = sphi 0, %s97
    %s112 = sphi 0, %s98
    %s116 = sphi 0, %s116
    %s118 = sphi 0, %s116
    %s119 = sphi 0, %s118
    %s133 = sphi 0, %s119
    %s137 = sphi 0, %s137
    %s139 = sphi 0, %s137
    %s140 = sphi 0, %s139
    %s154 = sphi 0, %s140
    %s158 = sphi 0, %s158
    %s160 = sphi 0, %s158
    %s161 = sphi 0, %s160
    %s175 = sphi 0, %s161
    %s179 = sphi 0, %s179
    %s181 = sphi 0, %s179
    %s182 = sphi 0, %s181
    %s196 = sphi 0, %s182
    %s200 = sphi 0, %s200
    %s202 = sphi 0, %s200
    %s203 = sphi 0, %s202
    %s217 = sphi 0, %s203
    %s221 = sphi 0, %s221
    %s223 = sphi 0, %s221
    %s224 = sphi 0, %s223
    %s238 = sphi 0, %s224
    %s242 = sphi 0, %s242
    %s244 = sphi 0, %s242
    %s245 = sphi 0, %s244
    %s259 = sphi 0, %s245
    %s263 = sphi 0, %s263
    %s265 = sphi 0, %s263
    %s266 = sphi 0, %s265
    %s280 = sphi 0, %s266
    %s288 = sphi 0, %s290
    %s291 = sphi 0, %s288
    %s292 = sphi 0, %s291
    %s308 = sphi 0, %s292
  $region4: #{tpu_custom_call.1} parent=0 // loop_header_branch
    %20 = sbr.rel (%p18) target = $region8
  $region5: #{tpu_custom_call.1} parent=0 // loop_body
    %s22 = ssub.s32 %s17, 1
    %s23 = ssub.s32 %s17, 2
    %s30 = sadd.s32 1, %s25
    %p31 = scmp.ge.s32.totalorder %s30, 2
    %s32 = scalar_select %p31, 0, %s30
    %s33 = sadd.s32 1, %s24
    %s34 = scalar_select %p31, %s33, %s24
    %p35 = scmp.ge.s32.totalorder %s34, 2
    %s36 = scalar_select %p35, 0, %s34
    %s37 = ssub.s32 %s24, %s36
    %s38 = ssub.s32 %s25, %s32
    %s39 = sor.u32 %s37, %s38
    %p40 = scmp.eq.s32.totalorder %s39, 0
    %s42 = sadd.s32 %s41, 1
    %s43 = scalar_select %p40, %s41, %s42
    %p46 = pneg %p40
    %p47 = scmp.eq.s32.totalorder %s17, 3
    %p48 = por %p46, %p47
    %p49 = scmp.ne.s32.totalorder %s41, %s44
    %p50 = scmp.eq.s32.totalorder %s17, 0
    %p51 = por %p49, %p50
    %p52 = scmp.ne.s32.totalorder %s41, %s44
    %p53 = scmp.eq.s32.totalorder %s22, 3
    %p54 = por %p52, %p53
    %p55 = scmp.ne.s32.totalorder %s44, %s45
    %p56 = scmp.eq.s32.totalorder %s22, 0
    %p57 = por %p55, %p56
    %p58 = scmp.ne.s32.totalorder %s44, %s45
    %p59 = scmp.eq.s32.totalorder %s23, 3
    %p60 = por %p58, %p59
    %p62 = scmp.ne.s32.totalorder %s45, %s61
    %p63 = scmp.eq.s32.totalorder %s23, 0
    %p64 = por %p62, %p63
    %s65 = smul.u32 %s24, 2
    %s66 = sadd.s32 %s65, %s25
    %s67 = smul.u32 %s36, 2
    %s68 = sadd.s32 %s67, %s32
    %s69 = ssub.s32 %s66, %s68
    %p70 = scmp.eq.s32.totalorder %s69, 0
    %s72 = sadd.s32 %s71, 1
    %s73 = scalar_select %p70, %s71, %s72
    %p76 = pneg %p70
    %p77 = scmp.eq.s32.totalorder %s17, 3
    %p78 = por %p76, %p77
    %p79 = scmp.ne.s32.totalorder %s71, %s74
    %p80 = scmp.eq.s32.totalorder %s17, 0
    %p81 = por %p79, %p80
    %p82 = scmp.ne.s32.totalorder %s71, %s74
    %p83 = scmp.eq.s32.totalorder %s22, 3
    %p84 = por %p82, %p83
    %p85 = scmp.ne.s32.totalorder %s74, %s75
    %p86 = scmp.eq.s32.totalorder %s22, 0
    %p87 = por %p85, %p86
    %p88 = scmp.ne.s32.totalorder %s74, %s75
    %p89 = scmp.eq.s32.totalorder %s23, 3
    %p90 = por %p88, %p89
    %p92 = scmp.ne.s32.totalorder %s75, %s91
    %p93 = scmp.eq.s32.totalorder %s23, 0
    %p94 = por %p92, %p93
    %s96 = sadd.s32 %s95, 1
    %p99 = scmp.eq.s32.totalorder %s17, 3
    %p100 = scmp.ne.s32.totalorder %s95, %s97
    %p101 = scmp.eq.s32.totalorder %s17, 0
    %p102 = por %p100, %p101
    %p103 = scmp.ne.s32.totalorder %s95, %s97
    %p104 = scmp.eq.s32.totalorder %s22, 3
    %p105 = por %p103, %p104
    %p106 = scmp.ne.s32.totalorder %s97, %s98
    %p107 = scmp.eq.s32.totalorder %s22, 0
    %p108 = por %p106, %p107
    %p109 = scmp.ne.s32.totalorder %s97, %s98
    %p110 = scmp.eq.s32.totalorder %s23, 3
    %p111 = por %p109, %p110
    %p113 = scmp.ne.s32.totalorder %s98, %s112
    %p114 = scmp.eq.s32.totalorder %s23, 0
    %p115 = por %p113, %p114
    %s117 = sadd.s32 %s116, 1
    %p120 = scmp.eq.s32.totalorder %s17, 3
    %p121 = scmp.ne.s32.totalorder %s116, %s118
    %p122 = scmp.eq.s32.totalorder %s17, 0
    %p123 = por %p121, %p122
    %p124 = scmp.ne.s32.totalorder %s116, %s118
    %p125 = scmp.eq.s32.totalorder %s22, 3
    %p126 = por %p124, %p125
    %p127 = scmp.ne.s32.totalorder %s118, %s119
    %p128 = scmp.eq.s32.totalorder %s22, 0
    %p129 = por %p127, %p128
    %p130 = scmp.ne.s32.totalorder %s118, %s119
    %p131 = scmp.eq.s32.totalorder %s23, 3
    %p132 = por %p130, %p131
    %p134 = scmp.ne.s32.totalorder %s119, %s133
    %p135 = scmp.eq.s32.totalorder %s23, 0
    %p136 = por %p134, %p135
    %s138 = sadd.s32 %s137, 1
    %p141 = scmp.eq.s32.totalorder %s17, 3
    %p142 = scmp.ne.s32.totalorder %s137, %s139
    %p143 = scmp.eq.s32.totalorder %s17, 0
    %p144 = por %p142, %p143
    %p145 = scmp.ne.s32.totalorder %s137, %s139
    %p146 = scmp.eq.s32.totalorder %s22, 3
    %p147 = por %p145, %p146
    %p148 = scmp.ne.s32.totalorder %s139, %s140
    %p149 = scmp.eq.s32.totalorder %s22, 0
    %p150 = por %p148, %p149
    %p151 = scmp.ne.s32.totalorder %s139, %s140
    %p152 = scmp.eq.s32.totalorder %s23, 3
    %p153 = por %p151, %p152
    %p155 = scmp.ne.s32.totalorder %s140, %s154
    %p156 = scmp.eq.s32.totalorder %s23, 0
    %p157 = por %p155, %p156
    %s159 = sadd.s32 %s158, 1
    %p162 = scmp.eq.s32.totalorder %s17, 3
    %p163 = scmp.ne.s32.totalorder %s158, %s160
    %p164 = scmp.eq.s32.totalorder %s17, 0
    %p165 = por %p163, %p164
    %p166 = scmp.ne.s32.totalorder %s158, %s160
    %p167 = scmp.eq.s32.totalorder %s22, 3
    %p168 = por %p166, %p167
    %p169 = scmp.ne.s32.totalorder %s160, %s161
    %p170 = scmp.eq.s32.totalorder %s22, 0
    %p171 = por %p169, %p170
    %p172 = scmp.ne.s32.totalorder %s160, %s161
    %p173 = scmp.eq.s32.totalorder %s23, 3
    %p174 = por %p172, %p173
    %p176 = scmp.ne.s32.totalorder %s161, %s175
    %p177 = scmp.eq.s32.totalorder %s23, 0
    %p178 = por %p176, %p177
    %s180 = sadd.s32 %s179, 1
    %p183 = scmp.eq.s32.totalorder %s17, 3
    %p184 = scmp.ne.s32.totalorder %s179, %s181
    %p185 = scmp.eq.s32.totalorder %s17, 0
    %p186 = por %p184, %p185
    %p187 = scmp.ne.s32.totalorder %s179, %s181
    %p188 = scmp.eq.s32.totalorder %s22, 3
    %p189 = por %p187, %p188
    %p190 = scmp.ne.s32.totalorder %s181, %s182
    %p191 = scmp.eq.s32.totalorder %s22, 0
    %p192 = por %p190, %p191
    %p193 = scmp.ne.s32.totalorder %s181, %s182
    %p194 = scmp.eq.s32.totalorder %s23, 3
    %p195 = por %p193, %p194
    %p197 = scmp.ne.s32.totalorder %s182, %s196
    %p198 = scmp.eq.s32.totalorder %s23, 0
    %p199 = por %p197, %p198
    %s201 = sadd.s32 %s200, 1
    %p204 = scmp.eq.s32.totalorder %s17, 3
    %p205 = scmp.ne.s32.totalorder %s200, %s202
    %p206 = scmp.eq.s32.totalorder %s17, 0
    %p207 = por %p205, %p206
    %p208 = scmp.ne.s32.totalorder %s200, %s202
    %p209 = scmp.eq.s32.totalorder %s22, 3
    %p210 = por %p208, %p209
    %p211 = scmp.ne.s32.totalorder %s202, %s203
    %p212 = scmp.eq.s32.totalorder %s22, 0
    %p213 = por %p211, %p212
    %p214 = scmp.ne.s32.totalorder %s202, %s203
    %p215 = scmp.eq.s32.totalorder %s23, 3
    %p216 = por %p214, %p215
    %p218 = scmp.ne.s32.totalorder %s203, %s217
    %p219 = scmp.eq.s32.totalorder %s23, 0
    %p220 = por %p218, %p219
    %s222 = sadd.s32 %s221, 1
    %p225 = scmp.eq.s32.totalorder %s17, 3
    %p226 = scmp.ne.s32.totalorder %s221, %s223
    %p227 = scmp.eq.s32.totalorder %s17, 0
    %p228 = por %p226, %p227
    %p229 = scmp.ne.s32.totalorder %s221, %s223
    %p230 = scmp.eq.s32.totalorder %s22, 3
    %p231 = por %p229, %p230
    %p232 = scmp.ne.s32.totalorder %s223, %s224
    %p233 = scmp.eq.s32.totalorder %s22, 0
    %p234 = por %p232, %p233
    %p235 = scmp.ne.s32.totalorder %s223, %s224
    %p236 = scmp.eq.s32.totalorder %s23, 3
    %p237 = por %p235, %p236
    %p239 = scmp.ne.s32.totalorder %s224, %s238
    %p240 = scmp.eq.s32.totalorder %s23, 0
    %p241 = por %p239, %p240
    %s243 = sadd.s32 %s242, 1
    %p246 = scmp.eq.s32.totalorder %s17, 3
    %p247 = scmp.ne.s32.totalorder %s242, %s244
    %p248 = scmp.eq.s32.totalorder %s17, 0
    %p249 = por %p247, %p248
    %p250 = scmp.ne.s32.totalorder %s242, %s244
    %p251 = scmp.eq.s32.totalorder %s22, 3
    %p252 = por %p250, %p251
    %p253 = scmp.ne.s32.totalorder %s244, %s245
    %p254 = scmp.eq.s32.totalorder %s22, 0
    %p255 = por %p253, %p254
    %p256 = scmp.ne.s32.totalorder %s244, %s245
    %p257 = scmp.eq.s32.totalorder %s23, 3
    %p258 = por %p256, %p257
    %p260 = scmp.ne.s32.totalorder %s245, %s259
    %p261 = scmp.eq.s32.totalorder %s23, 0
    %p262 = por %p260, %p261
    %s264 = sadd.s32 %s263, 1
    %p267 = scmp.eq.s32.totalorder %s17, 3
    %p268 = scmp.ne.s32.totalorder %s263, %s265
    %p269 = scmp.eq.s32.totalorder %s17, 0
    %p270 = por %p268, %p269
    %p271 = scmp.ne.s32.totalorder %s263, %s265
    %p272 = scmp.eq.s32.totalorder %s22, 3
    %p273 = por %p271, %p272
    %p274 = scmp.ne.s32.totalorder %s265, %s266
    %p275 = scmp.eq.s32.totalorder %s22, 0
    %p276 = por %p274, %p275
    %p277 = scmp.ne.s32.totalorder %s265, %s266
    %p278 = scmp.eq.s32.totalorder %s23, 3
    %p279 = por %p277, %p278
    %p281 = scmp.ne.s32.totalorder %s266, %s280
    %p282 = scmp.eq.s32.totalorder %s23, 0
    %p283 = por %p281, %p282
    %s284 = ssub.s32 %s24, %s36
    %s285 = ssub.s32 %s25, %s32
    %s286 = sor.u32 %s284, %s285
    %p287 = scmp.eq.s32.totalorder %s286, 0
    %s289 = sadd.s32 %s288, 1
    %s290 = scalar_select %p287, %s288, %s289
    %p293 = pneg %p287
    %p294 = scmp.eq.s32.totalorder %s17, 3
    %p295 = por %p293, %p294
    %p296 = scmp.ne.s32.totalorder %s288, %s291
    %p297 = scmp.eq.s32.totalorder %s17, 0
    %p298 = por %p296, %p297
    %p299 = scmp.ne.s32.totalorder %s288, %s291
    %p300 = scmp.eq.s32.totalorder %s22, 3
    %p301 = por %p299, %p300
    %p302 = scmp.ne.s32.totalorder %s291, %s292
    %p303 = scmp.eq.s32.totalorder %s22, 0
    %p304 = por %p302, %p303
    %p305 = scmp.ne.s32.totalorder %s291, %s292
    %p306 = scmp.eq.s32.totalorder %s23, 3
    %p307 = por %p305, %p306
    %p309 = scmp.ne.s32.totalorder %s292, %s308
    %p310 = scmp.eq.s32.totalorder %s23, 0
    %p311 = por %p309, %p310
    %p312 = scmp.le.s32.totalorder 1, %s17
    %p313 = scmp.lt.s32.totalorder %s17, 5
    %p314 = pnand %p312, %p313
    %p315 = pneg %p314
    // Predicated region
    $region9: #{tpu_custom_call.1} parent=5 // pred_check
      _
    $region10: #{tpu_custom_call.1} parent=5 // pred_check_branch
      %317 = sbr.rel (%p314) target = $region12
    $region11: #{tpu_custom_call.1} parent=5 // pred_region
      %s318 = ssub.s32 %s17, 1
      // Predicated region
      $region13: #{tpu_custom_call.1} parent=11 // pred_check
        %p319 = pneg %p108
      $region14: #{tpu_custom_call.1} parent=11 // pred_check_branch
        %321 = sbr.rel (%p319) target = $region16
      $region15: #{tpu_custom_call.1} parent=11 // pred_region
        _
      $region16: #{tpu_custom_call.1} parent=11 // pred_fallthru
        _
      // Predicated region
      $region17: #{tpu_custom_call.1} parent=11 // pred_check
        %p322 = pneg %p129
      $region18: #{tpu_custom_call.1} parent=11 // pred_check_branch
        %324 = sbr.rel (%p322) target = $region20
      $region19: #{tpu_custom_call.1} parent=11 // pred_region
        _
      $region20: #{tpu_custom_call.1} parent=11 // pred_fallthru
        _
      // Predicated region
      $region21: #{tpu_custom_call.1} parent=11 // pred_check
        %p325 = pneg %p150
      $region22: #{tpu_custom_call.1} parent=11 // pred_check_branch
        %327 = sbr.rel (%p325) target = $region24
      $region23: #{tpu_custom_call.1} parent=11 // pred_region
        _
      $region24: #{tpu_custom_call.1} parent=11 // pred_fallthru
        _
      // Predicated region
      $region25: #{tpu_custom_call.1} parent=11 // pred_check
        %p328 = pneg %p171
      $region26: #{tpu_custom_call.1} parent=11 // pred_check_branch
        %330 = sbr.rel (%p328) target = $region28
      $region27: #{tpu_custom_call.1} parent=11 // pred_region
        _
      $region28: #{tpu_custom_call.1} parent=11 // pred_fallthru
        _
      // Predicated region
      $region29: #{tpu_custom_call.1} parent=11 // pred_check
        %p331 = pneg %p192
      $region30: #{tpu_custom_call.1} parent=11 // pred_check_branch
        %333 = sbr.rel (%p331) target = $region32
      $region31: #{tpu_custom_call.1} parent=11 // pred_region
        _
      $region32: #{tpu_custom_call.1} parent=11 // pred_fallthru
        _
      // Predicated region
      $region33: #{tpu_custom_call.1} parent=11 // pred_check
        %p334 = pneg %p213
      $region34: #{tpu_custom_call.1} parent=11 // pred_check_branch
        %336 = sbr.rel (%p334) target = $region36
      $region35: #{tpu_custom_call.1} parent=11 // pred_region
        _
      $region36: #{tpu_custom_call.1} parent=11 // pred_fallthru
        _
      // Predicated region
      $region37: #{tpu_custom_call.1} parent=11 // pred_check
        %p337 = pneg %p234
      $region38: #{tpu_custom_call.1} parent=11 // pred_check_branch
        %339 = sbr.rel (%p337) target = $region40
      $region39: #{tpu_custom_call.1} parent=11 // pred_region
        _
      $region40: #{tpu_custom_call.1} parent=11 // pred_fallthru
        _
      // Predicated region
      $region41: #{tpu_custom_call.1} parent=11 // pred_check
        %p340 = pneg %p255
      $region42: #{tpu_custom_call.1} parent=11 // pred_check_branch
        %342 = sbr.rel (%p340) target = $region44
      $region43: #{tpu_custom_call.1} parent=11 // pred_region
        _
      $region44: #{tpu_custom_call.1} parent=11 // pred_fallthru
        _
      // Predicated region
      $region45: #{tpu_custom_call.1} parent=11 // pred_check
        %p343 = pneg %p276
      $region46: #{tpu_custom_call.1} parent=11 // pred_check_branch
        %345 = sbr.rel (%p343) target = $region48
      $region47: #{tpu_custom_call.1} parent=11 // pred_region
        _
      $region48: #{tpu_custom_call.1} parent=11 // pred_fallthru
        _
    $region12: #{tpu_custom_call.1} parent=5 // pred_fallthru
      _
    %p346 = scmp.lt.s32.totalorder %s17, 4
    // Predicated region
    $region49: #{tpu_custom_call.1} parent=5 // pred_check
      %p347 = pneg %p346
    $region50: #{tpu_custom_call.1} parent=5 // pred_check_branch
      %349 = sbr.rel (%p347) target = $region52
    $region51: #{tpu_custom_call.1} parent=5 // pred_region
      // Predicated region
      $region53: #{tpu_custom_call.1} parent=51 // pred_check
        %p350 = pneg %p51
      $region54: #{tpu_custom_call.1} parent=51 // pred_check_branch
        %352 = sbr.rel (%p350) target = $region56
      $region55: #{tpu_custom_call.1} parent=51 // pred_region
        %s353 = smul.u32 8, %s25
        %p354 = scmp.lt.s32.totalorder %s24, 1
        %s355 = scalar_select %p354, %s24, 1
        %p356 = scmp.lt.s32.totalorder %s353, 15
        %s357 = scalar_select %p356, %s353, 15
        %s358 = smul.addr %s357, 2
        %s359 = smul.addr %s355, 32
        %s360 = sadd.s32 %s358, %s359
        %s361 = smul.addr %s360, 8
        %s362 = scalar_lea.vmem %s0, %s361
        %s363 = smul.u32 8, %s25
      $region56: #{tpu_custom_call.1} parent=51 // pred_fallthru
        _
      // Predicated region
      $region57: #{tpu_custom_call.1} parent=51 // pred_check
        %p364 = pneg %p81
      $region58: #{tpu_custom_call.1} parent=51 // pred_check_branch
        %366 = sbr.rel (%p364) target = $region60
      $region59: #{tpu_custom_call.1} parent=51 // pred_region
        %s367 = smul.u32 %s24, 2
        %s368 = sadd.s32 %s367, %s25
        %p369 = scmp.lt.s32.totalorder %s368, 3
        %s370 = scalar_select %p369, %s368, 3
        %s371 = smul.addr %s370, 12
        %s372 = smul.addr %s371, 8
        %s373 = scalar_lea.vmem %s1, %s372
        %s374 = smul.u32 %s24, 2
        %s375 = sadd.s32 %s374, %s25
      $region60: #{tpu_custom_call.1} parent=51 // pred_fallthru
        _
    $region52: #{tpu_custom_call.1} parent=5 // pred_fallthru
      _
    %p376 = scmp.le.s32.totalorder 1, %s17
    %p377 = scmp.lt.s32.totalorder %s17, 5
    %p378 = pnand %p376, %p377
    %p379 = pneg %p378
    // Predicated region
    $region61: #{tpu_custom_call.1} parent=5 // pred_check
      _
    $region62: #{tpu_custom_call.1} parent=5 // pred_check_branch
      %381 = sbr.rel (%p378) target = $region64
    $region63: #{tpu_custom_call.1} parent=5 // pred_region
      %s382 = ssub.s32 %s17, 1
      %s383 = smul.u32 8, %s27
      %p384 = scmp.lt.s32.totalorder %s26, 1
      %s385 = scalar_select %p384, %s26, 1
      %p386 = scmp.lt.s32.totalorder %s383, 15
      %s387 = scalar_select %p386, %s383, 15
      %s388 = smul.addr %s387, 2
      %s389 = smul.addr %s385, 32
      %s390 = sadd.s32 %s388, %s389
      %s391 = smul.addr %s390, 8
      %s392 = scalar_lea.vmem %s0, %s391
      %p393 = pneg %p57
      %p394 = pneg %p54
      %s395 = smul.u32 %s26, 2
      %s396 = sadd.s32 %s395, %s27
      %p397 = scmp.lt.s32.totalorder %s396, 3
      %s398 = scalar_select %p397, %s396, 3
      %s399 = smul.addr %s398, 12
      %s400 = smul.addr %s399, 8
      %s401 = scalar_lea.vmem %s1, %s400
      %p402 = pneg %p87
      %p403 = pneg %p84
      %p404 = pneg %p108
      %p405 = pneg %p105
      %p406 = pneg %p129
      %p407 = pneg %p126
      %p408 = pneg %p150
      %p409 = pneg %p147
      %p410 = pneg %p171
      %p411 = pneg %p168
      %p412 = pneg %p192
      %p413 = pneg %p189
      %p414 = pneg %p213
      %p415 = pneg %p210
      %p416 = pneg %p234
      %p417 = pneg %p231
      %p418 = pneg %p255
      %p419 = pneg %p252
      %p420 = pneg %p276
      %p421 = pneg %p273
      %p422 = pneg %p304
      %p423 = pneg %p301
      %s424 = smul.u32 8, %s27
      %p425 = scmp.lt.s32.totalorder %s26, 1
      %s426 = scalar_select %p425, %s26, 1
      %p427 = scmp.lt.s32.totalorder %s424, 15
      %s428 = scalar_select %p427, %s424, 15
      %s429 = smul.addr %s428, 2
      %s430 = smul.addr %s426, 32
      %s431 = sadd.s32 %s429, %s430
      %s432 = smul.addr %s431, 8
      %s433 = scalar_lea.vmem %s11, %s432
      %s434 = smul.u32 8, %s27
      %p435 = scmp.lt.s32.totalorder %s26, 1
      %s436 = scalar_select %p435, %s26, 1
      %p437 = scmp.lt.s32.totalorder %s434, 15
      %s438 = scalar_select %p437, %s434, 15
      %s439 = smul.addr %s438, 2
      %s440 = smul.addr %s436, 32
      %s441 = sadd.s32 %s439, %s440
      %s442 = smul.addr %s441, 8
      %s443 = scalar_lea.vmem %s0, %s442
      %s444 = smul.u32 8, %s27
      %s445 = smul.u32 %s26, 2
      %s446 = sadd.s32 %s445, %s27
      %p447 = scmp.lt.s32.totalorder %s446, 3
      %s448 = scalar_select %p447, %s446, 3
      %s449 = smul.addr %s448, 12
      %s450 = smul.addr %s449, 8
      %s451 = scalar_lea.vmem %s1, %s450
      %s452 = smul.u32 %s26, 2
      %s453 = sadd.s32 %s452, %s27
      %s454 = smul.u32 8, %s27
      %p455 = scmp.lt.s32.totalorder %s26, 1
      %s456 = scalar_select %p455, %s26, 1
      %p457 = scmp.lt.s32.totalorder %s454, 15
      %s458 = scalar_select %p457, %s454, 15
      %s459 = smul.addr %s458, 2
      %s460 = smul.addr %s456, 32
      %s461 = sadd.s32 %s459, %s460
      %s462 = smul.addr %s461, 8
      %s463 = scalar_lea.vmem %s11, %s462
      %s464 = smul.u32 8, %s27
      %v466 = vld [vmem:[%s443] sm:$0xff]
      %v467 = vld [vmem:[%s443 + $0x8] sm:$0xff]
      %v468 = vld [vmem:[%s443 + $0x10] sm:$0xff]
      %v469 = vld [vmem:[%s443 + $0x18] sm:$0xff]
      %v470 = vld [vmem:[%s443 + $0x20] sm:$0xff]
      %v471 = vld [vmem:[%s443 + $0x28] sm:$0xff]
      %v472 = vld [vmem:[%s443 + $0x30] sm:$0xff]
      %v473 = vld [vmem:[%s443 + $0x38] sm:$0xff]
      %v474 = vld [vmem:[%s443 + $0x40] sm:$0xff]
      %v475 = vld [vmem:[%s443 + $0x48] sm:$0xff]
      %v476 = vld [vmem:[%s443 + $0x50] sm:$0xff]
      %v477 = vld [vmem:[%s443 + $0x58] sm:$0xff]
      %v478 = vld [vmem:[%s443 + $0x60] sm:$0xff]
      %v479 = vld [vmem:[%s443 + $0x68] sm:$0xff]
      %v480 = vld [vmem:[%s443 + $0x70] sm:$0xff]
      %v481 = vld [vmem:[%s443 + $0x78] sm:$0xff]
      %v482 = vld [vmem:[%s451] sm:$0xff]
      %v483 = vld [vmem:[%s451 + $0x8] sm:$0xff]
      %v484 = vld [vmem:[%s451 + $0x10] sm:$0xff]
      %v485 = vld [vmem:[%s451 + $0x18] sm:$0xff]
      %v486 = vld [vmem:[%s451 + $0x20] sm:$0xff]
      %v487 = vld [vmem:[%s451 + $0x28] sm:$0xff]
      %v488 = vld [vmem:[%s451 + $0x30] sm:$0xff]
      %v489 = vld [vmem:[%s451 + $0x38] sm:$0xff]
      %v490 = vld [vmem:[%s451 + $0x40] sm:$0xff]
      %v491 = vld [vmem:[%s451 + $0x48] sm:$0xff]
      %v492 = vld [vmem:[%s451 + $0x50] sm:$0xff]
      %v493 = vld [vmem:[%s451 + $0x58] sm:$0xff]
      %vm494 = vcmask 31744
      %495 = vst.msk [vmem:[#allocation2 + $0x10] sm:$0xff] %vm494, 0.0
      %496 = vst.msk [vmem:[#allocation2 + $0x28] sm:$0xff] %vm494, 0.0
      %497 = vst.msk [vmem:[#allocation2 + $0x40] sm:$0xff] %vm494, 0.0
      %498 = vst.msk [vmem:[#allocation2 + $0x58] sm:$0xff] %vm494, 0.0
      %499 = vst.msk [vmem:[#allocation2 + $0x70] sm:$0xff] %vm494, 0.0
      %500 = vst.msk [vmem:[#allocation2 + $0x88] sm:$0xff] %vm494, 0.0
      %501 = vst.msk [vmem:[#allocation2 + $0xa0] sm:$0xff] %vm494, 0.0
      %502 = vst.msk [vmem:[#allocation2 + $0xb8] sm:$0xff] %vm494, 0.0
      %503 = vst.msk [vmem:[#allocation2 + $0xd0] sm:$0xff] %vm494, 0.0
      %504 = vst.msk [vmem:[#allocation2 + $0xe8] sm:$0xff] %vm494, 0.0
      %505 = vst.msk [vmem:[#allocation2 + $0x100] sm:$0xff] %vm494, 0.0
      %506 = vst.msk [vmem:[#allocation2 + $0x118] sm:$0xff] %vm494, 0.0
      %507 = vst.msk [vmem:[#allocation2 + $0x130] sm:$0xff] %vm494, 0.0
      %508 = vst.msk [vmem:[#allocation2 + $0x148] sm:$0xff] %vm494, 0.0
      %509 = vst.msk [vmem:[#allocation2] sm:$0xff] %vm494, %v482
      %510 = vst.msk [vmem:[#allocation2 + $0x8] sm:$0xff] %vm494, %v483
      %511 = vst.msk [vmem:[#allocation2 + $0x18] sm:$0xff] %vm494, %v484
      %512 = vst.msk [vmem:[#allocation2 + $0x20] sm:$0xff] %vm494, %v485
      %513 = vst.msk [vmem:[#allocation2 + $0x30] sm:$0xff] %vm494, %v486
      %514 = vst.msk [vmem:[#allocation2 + $0x38] sm:$0xff] %vm494, %v487
      %s515 = scalar_lea.vmem [#allocation2], 72
      %516 = vst.msk [vmem:[%s515] sm:$0xff] %vm494, %v466
      %517 = vst.msk [vmem:[%s515 + $0x8] sm:$0xff] %vm494, %v467
      %518 = vst.msk [vmem:[%s515 + $0x18] sm:$0xff] %vm494, %v468
      %519 = vst.msk [vmem:[%s515 + $0x20] sm:$0xff] %vm494, %v469
      %520 = vst.msk [vmem:[%s515 + $0x30] sm:$0xff] %vm494, %v470
      %521 = vst.msk [vmem:[%s515 + $0x38] sm:$0xff] %vm494, %v471
      %522 = vst.msk [vmem:[%s515 + $0x48] sm:$0xff] %vm494, %v472
      %523 = vst.msk [vmem:[%s515 + $0x50] sm:$0xff] %vm494, %v473
      %524 = vst.msk [vmem:[%s515 + $0x60] sm:$0xff] %vm494, %v474
      %525 = vst.msk [vmem:[%s515 + $0x68] sm:$0xff] %vm494, %v475
      %526 = vst.msk [vmem:[%s515 + $0x78] sm:$0xff] %vm494, %v476
      %527 = vst.msk [vmem:[%s515 + $0x80] sm:$0xff] %vm494, %v477
      %528 = vst.msk [vmem:[%s515 + $0x90] sm:$0xff] %vm494, %v478
      %529 = vst.msk [vmem:[%s515 + $0x98] sm:$0xff] %vm494, %v479
      %530 = vst.msk [vmem:[%s515 + $0xa8] sm:$0xff] %vm494, %v480
      %531 = vst.msk [vmem:[%s515 + $0xb0] sm:$0xff] %vm494, %v481
      %s532 = scalar_lea.vmem [#allocation2], 264
      %533 = vst.msk [vmem:[%s532] sm:$0xff] %vm494, %v488
      %534 = vst.msk [vmem:[%s532 + $0x8] sm:$0xff] %vm494, %v489
      %535 = vst.msk [vmem:[%s532 + $0x18] sm:$0xff] %vm494, %v490
      %536 = vst.msk [vmem:[%s532 + $0x20] sm:$0xff] %vm494, %v491
      %537 = vst.msk [vmem:[%s532 + $0x30] sm:$0xff] %vm494, %v492
      %538 = vst.msk [vmem:[%s532 + $0x38] sm:$0xff] %vm494, %v493
      %v539 = vld [vmem:[#allocation2] sm:$0xff]
      %v540 = vld [vmem:[#allocation2 + $0x8] sm:$0xff]
      %v541 = vld [vmem:[#allocation2 + $0x10] sm:$0xff]
      %v542 = vld [vmem:[#allocation2 + $0x18] sm:$0xff]
      %v543 = vld [vmem:[#allocation2 + $0x20] sm:$0xff]
      %v544 = vld [vmem:[#allocation2 + $0x28] sm:$0xff]
      %v545 = vld [vmem:[#allocation2 + $0x30] sm:$0xff]
      %v546 = vld [vmem:[#allocation2 + $0x38] sm:$0xff]
      %v547 = vld [vmem:[#allocation2 + $0x40] sm:$0xff]
      %v548 = vld [vmem:[#allocation2 + $0x48] sm:$0xff]
      %v549 = vld [vmem:[#allocation2 + $0x50] sm:$0xff]
      %v550 = vld [vmem:[#allocation2 + $0x58] sm:$0xff]
      %v551 = vld [vmem:[#allocation2 + $0x60] sm:$0xff]
      %v552 = vld [vmem:[#allocation2 + $0x68] sm:$0xff]
      %v553 = vld [vmem:[#allocation2 + $0x70] sm:$0xff]
      %v554 = vld [vmem:[#allocation2 + $0x78] sm:$0xff]
      %v555 = vld [vmem:[#allocation2 + $0x80] sm:$0xff]
      %v556 = vld [vmem:[#allocation2 + $0x88] sm:$0xff]
      %v557 = vld [vmem:[#allocation2 + $0x90] sm:$0xff]
      %v558 = vld [vmem:[#allocation2 + $0x98] sm:$0xff]
      %v559 = vld [vmem:[#allocation2 + $0xa0] sm:$0xff]
      %v560 = vld [vmem:[#allocation2 + $0xa8] sm:$0xff]
      %v561 = vld [vmem:[#allocation2 + $0xb0] sm:$0xff]
      %v562 = vld [vmem:[#allocation2 + $0xb8] sm:$0xff]
      %v563 = vld [vmem:[#allocation2 + $0xc0] sm:$0xff]
      %v564 = vld [vmem:[#allocation2 + $0xc8] sm:$0xff]
      %v565 = vld [vmem:[#allocation2 + $0xd0] sm:$0xff]
      %v566 = vld [vmem:[#allocation2 + $0xd8] sm:$0xff]
      %v567 = vld [vmem:[#allocation2 + $0xe0] sm:$0xff]
      %v568 = vld [vmem:[#allocation2 + $0xe8] sm:$0xff]
      %v569 = vld [vmem:[#allocation2 + $0xf0] sm:$0xff]
      %v570 = vld [vmem:[#allocation2 + $0xf8] sm:$0xff]
      %v571 = vld [vmem:[#allocation2 + $0x100] sm:$0xff]
      %v572 = vld [vmem:[#allocation2 + $0x108] sm:$0xff]
      %v573 = vld [vmem:[#allocation2 + $0x110] sm:$0xff]
      %v574 = vld [vmem:[#allocation2 + $0x118] sm:$0xff]
      %v575 = vld [vmem:[#allocation2 + $0x120] sm:$0xff]
      %v576 = vld [vmem:[#allocation2 + $0x128] sm:$0xff]
      %v577 = vld [vmem:[#allocation2 + $0x130] sm:$0xff]
      %v578 = vld [vmem:[#allocation2 + $0x138] sm:$0xff]
      %v579 = vld [vmem:[#allocation2 + $0x140] sm:$0xff]
      %v580 = vld [vmem:[#allocation2 + $0x148] sm:$0xff]
      %v581 = vld [vmem:[%s2] sm:$0xff]
      %v582 = vld [vmem:[%s2 + $0x8] sm:$0xff]
      %v583 = vld [vmem:[%s2 + $0x10] sm:$0xff]
      %v584 = vld [vmem:[%s2 + $0x18] sm:$0xff]
      %v585 = vld [vmem:[%s2 + $0x20] sm:$0xff]
      %v586 = vld [vmem:[%s2 + $0x28] sm:$0xff]
      %v587 = vld [vmem:[%s2 + $0x30] sm:$0x1]
      %v588 = vpack.c.bf16 %v582, %v581
      %v589 = vpack.c.bf16 %v584, %v583
      %v590 = vpack.c.bf16 %v586, %v585
      %v591 = vpack.c.bf16 %v587, %v587
      %v592 = vrot.slane %v539, 5
      %v593 = vrot.slane %v542, 5
      %v594 = vrot.slane %v545, 5
      %v595 = vrot.slane %v548, 5
      %v596 = vrot.slane %v551, 5
      %v597 = vrot.slane %v554, 5
      %v598 = vrot.slane %v557, 5
      %v599 = vrot.slane %v560, 5
      %v600 = vrot.slane %v563, 5
      %v601 = vrot.slane %v566, 5
      %v602 = vrot.slane %v569, 5
      %v603 = vrot.slane %v572, 5
      %v604 = vrot.slane %v575, 5
      %v605 = vrot.slane %v578, 5
      %v606 = vrot.slane %v540, 5
      %v607 = vrot.slane %v543, 5
      %v608 = vrot.slane %v546, 5
      %v609 = vrot.slane %v549, 5
      %v610 = vrot.slane %v552, 5
      %v611 = vrot.slane %v555, 5
      %v612 = vrot.slane %v558, 5
      %v613 = vrot.slane %v561, 5
      %v614 = vrot.slane %v564, 5
      %v615 = vrot.slane %v567, 5
      %v616 = vrot.slane %v570, 5
      %v617 = vrot.slane %v573, 5
      %v618 = vrot.slane %v576, 5
      %v619 = vrot.slane %v579, 5
      %v620 = vrot.slane %v541, 5
      %v621 = vrot.slane %v544, 5
      %v622 = vrot.slane %v547, 5
      %v623 = vrot.slane %v550, 5
      %v624 = vrot.slane %v553, 5
      %v625 = vrot.slane %v556, 5
      %v626 = vrot.slane %v559, 5
      %v627 = vrot.slane %v562, 5
      %v628 = vrot.slane %v565, 5
      %v629 = vrot.slane %v568, 5
      %v630 = vrot.slane %v571, 5
      %v631 = vrot.slane %v574, 5
      %v632 = vrot.slane %v577, 5
      %v633 = vrot.slane %v580, 5
      %v634 = vlaneseq
      %v635 = vshrl.u32 %v634, 7
      %vm636 = vcmp.lt.s32.totalorder %v635, 3
      %v637 = vsel %vm636, %v592, %v606
      %v638 = vsel %vm636, %v593, %v607
      %v639 = vsel %vm636, %v594, %v608
      %v640 = vsel %vm636, %v595, %v609
      %v641 = vsel %vm636, %v596, %v610
      %v642 = vsel %vm636, %v597, %v611
      %v643 = vsel %vm636, %v598, %v612
      %v644 = vsel %vm636, %v599, %v613
      %v645 = vsel %vm636, %v600, %v614
      %v646 = vsel %vm636, %v601, %v615
      %v647 = vsel %vm636, %v602, %v616
      %v648 = vsel %vm636, %v603, %v617
      %v649 = vsel %vm636, %v604, %v618
      %v650 = vsel %vm636, %v605, %v619
      %v651 = vsel %vm636, %v620, %v592
      %v652 = vsel %vm636, %v621, %v593
      %v653 = vsel %vm636, %v622, %v594
      %v654 = vsel %vm636, %v623, %v595
      %v655 = vsel %vm636, %v624, %v596
      %v656 = vsel %vm636, %v625, %v597
      %v657 = vsel %vm636, %v626, %v598
      %v658 = vsel %vm636, %v627, %v599
      %v659 = vsel %vm636, %v628, %v600
      %v660 = vsel %vm636, %v629, %v601
      %v661 = vsel %vm636, %v630, %v602
      %v662 = vsel %vm636, %v631, %v603
      %v663 = vsel %vm636, %v632, %v604
      %v664 = vsel %vm636, %v633, %v605
      %v665 = vpack.c.bf16 %v637, %v651
      %v666 = vpack.c.bf16 %v638, %v652
      %v667 = vpack.c.bf16 %v639, %v653
      %v668 = vpack.c.bf16 %v640, %v654
      %v669 = vpack.c.bf16 %v641, %v655
      %v670 = vpack.c.bf16 %v642, %v656
      %v671 = vpack.c.bf16 %v643, %v657
      %v672 = vpack.c.bf16 %v644, %v658
      %v673 = vpack.c.bf16 %v645, %v659
      %v674 = vpack.c.bf16 %v646, %v660
      %v675 = vpack.c.bf16 %v647, %v661
      %v676 = vpack.c.bf16 %v648, %v662
      %v677 = vpack.c.bf16 %v649, %v663
      %v678 = vpack.c.bf16 %v650, %v664
      %v680 = vpack.i.b16 %v588, %v588
      %v682 = vlaneseq
      %v683 = vshrl.u32 %v682, 7
      %v684 = vsub.s32 0, %v683
      %v685 = vrot.slane %v680, %v684
      %v686 = vmul.bf16 %v665, %v685
      %v687 = vmul.bf16 %v666, %v685
      %v688 = vmul.bf16 %v667, %v685
      %v689 = vmul.bf16 %v668, %v685
      %v690 = vmul.bf16 %v669, %v685
      %v691 = vmul.bf16 %v670, %v685
      %v692 = vmul.bf16 %v671, %v685
      %v693 = vmul.bf16 %v672, %v685
      %v694 = vadd.bf16 %v686, 0
      %v695 = vadd.bf16 %v687, 0
      %v696 = vadd.bf16 %v688, 0
      %v697 = vadd.bf16 %v689, 0
      %v698 = vadd.bf16 %v690, 0
      %v699 = vadd.bf16 %v691, 0
      %v700 = vadd.bf16 %v692, 0
      %v701 = vadd.bf16 %v693, 0
      %v702 = vshrl.u32 %v588, 16
      %v703 = vpack.i.b16 %v702, %v702
      %v705 = vlaneseq
      %v706 = vshrl.u32 %v705, 7
      %v707 = vsub.s32 3, %v706
      %v708 = vrot.slane %v703, %v707
      %v709 = vmul.bf16 %v666, %v708
      %v710 = vmul.bf16 %v667, %v708
      %v711 = vmul.bf16 %v668, %v708
      %v712 = vmul.bf16 %v669, %v708
      %v713 = vmul.bf16 %v670, %v708
      %v714 = vmul.bf16 %v671, %v708
      %v715 = vmul.bf16 %v672, %v708
      %v716 = vmul.bf16 %v673, %v708
      %v717 = vadd.bf16 %v694, %v709
      %v718 = vadd.bf16 %v695, %v710
      %v719 = vadd.bf16 %v696, %v711
      %v720 = vadd.bf16 %v697, %v712
      %v721 = vadd.bf16 %v698, %v713
      %v722 = vadd.bf16 %v699, %v714
      %v723 = vadd.bf16 %v700, %v715
      %v724 = vadd.bf16 %v701, %v716
      %v725 = vlaneseq
      %v726 = vshrl.u32 %v725, 7
      %v727 = vsub.s32 7, %v726
      %v728 = vrot.slane %v680, %v727
      %v729 = vmul.bf16 %v667, %v728
      %v730 = vmul.bf16 %v668, %v728
      %v731 = vmul.bf16 %v669, %v728
      %v732 = vmul.bf16 %v670, %v728
      %v733 = vmul.bf16 %v671, %v728
      %v734 = vmul.bf16 %v672, %v728
      %v735 = vmul.bf16 %v673, %v728
      %v736 = vmul.bf16 %v674, %v728
      %v737 = vadd.bf16 %v717, %v729
      %v738 = vadd.bf16 %v718, %v730
      %v739 = vadd.bf16 %v719, %v731
      %v740 = vadd.bf16 %v720, %v732
      %v741 = vadd.bf16 %v721, %v733
      %v742 = vadd.bf16 %v722, %v734
      %v743 = vadd.bf16 %v723, %v735
      %v744 = vadd.bf16 %v724, %v736
      %v746 = vshrl.u32 %v589, 16
      %v747 = vpack.i.b16 %v746, %v746
      %v749 = vlaneseq
      %v750 = vshrl.u32 %v749, 7
      %v751 = vsub.s32 2, %v750
      %v752 = vrot.slane %v747, %v751
      %v753 = vmul.bf16 %v668, %v752
      %v754 = vmul.bf16 %v669, %v752
      %v755 = vmul.bf16 %v670, %v752
      %v756 = vmul.bf16 %v671, %v752
      %v757 = vmul.bf16 %v672, %v752
      %v758 = vmul.bf16 %v673, %v752
      %v759 = vmul.bf16 %v674, %v752
      %v760 = vmul.bf16 %v675, %v752
      %v761 = vadd.bf16 %v737, %v753
      %v762 = vadd.bf16 %v738, %v754
      %v763 = vadd.bf16 %v739, %v755
      %v764 = vadd.bf16 %v740, %v756
      %v765 = vadd.bf16 %v741, %v757
      %v766 = vadd.bf16 %v742, %v758
      %v767 = vadd.bf16 %v743, %v759
      %v768 = vadd.bf16 %v744, %v760
      %v769 = vpack.i.b16 %v589, %v589
      %v771 = vlaneseq
      %v772 = vshrl.u32 %v771, 7
      %v773 = vsub.s32 6, %v772
      %v774 = vrot.slane %v769, %v773
      %v775 = vmul.bf16 %v669, %v774
      %v776 = vmul.bf16 %v670, %v774
      %v777 = vmul.bf16 %v671, %v774
      %v778 = vmul.bf16 %v672, %v774
      %v779 = vmul.bf16 %v673, %v774
      %v780 = vmul.bf16 %v674, %v774
      %v781 = vmul.bf16 %v675, %v774
      %v782 = vmul.bf16 %v676, %v774
      %v783 = vadd.bf16 %v761, %v775
      %v784 = vadd.bf16 %v762, %v776
      %v785 = vadd.bf16 %v763, %v777
      %v786 = vadd.bf16 %v764, %v778
      %v787 = vadd.bf16 %v765, %v779
      %v788 = vadd.bf16 %v766, %v780
      %v789 = vadd.bf16 %v767, %v781
      %v790 = vadd.bf16 %v768, %v782
      %v792 = vshrl.u32 %v590, 16
      %v793 = vpack.i.b16 %v792, %v792
      %v795 = vlaneseq
      %v796 = vshrl.u32 %v795, 7
      %v797 = vsub.s32 1, %v796
      %v798 = vrot.slane %v793, %v797
      %v799 = vmul.bf16 %v670, %v798
      %v800 = vmul.bf16 %v671, %v798
      %v801 = vmul.bf16 %v672, %v798
      %v802 = vmul.bf16 %v673, %v798
      %v803 = vmul.bf16 %v674, %v798
      %v804 = vmul.bf16 %v675, %v798
      %v805 = vmul.bf16 %v676, %v798
      %v806 = vmul.bf16 %v677, %v798
      %v807 = vadd.bf16 %v783, %v799
      %v808 = vadd.bf16 %v784, %v800
      %v809 = vadd.bf16 %v785, %v801
      %v810 = vadd.bf16 %v786, %v802
      %v811 = vadd.bf16 %v787, %v803
      %v812 = vadd.bf16 %v788, %v804
      %v813 = vadd.bf16 %v789, %v805
      %v814 = vadd.bf16 %v790, %v806
      %v815 = vpack.i.b16 %v590, %v590
      %v817 = vlaneseq
      %v818 = vshrl.u32 %v817, 7
      %v819 = vsub.s32 5, %v818
      %v820 = vrot.slane %v815, %v819
      %v821 = vmul.bf16 %v671, %v820
      %v822 = vmul.bf16 %v672, %v820
      %v823 = vmul.bf16 %v673, %v820
      %v824 = vmul.bf16 %v674, %v820
      %v825 = vmul.bf16 %v675, %v820
      %v826 = vmul.bf16 %v676, %v820
      %v827 = vmul.bf16 %v677, %v820
      %v828 = vmul.bf16 %v678, %v820
      %v829 = vadd.bf16 %v807, %v821
      %v830 = vadd.bf16 %v808, %v822
      %v831 = vadd.bf16 %v809, %v823
      %v832 = vadd.bf16 %v810, %v824
      %v833 = vadd.bf16 %v811, %v825
      %v834 = vadd.bf16 %v812, %v826
      %v835 = vadd.bf16 %v813, %v827
      %v836 = vadd.bf16 %v814, %v828
      %v837 = vunpack.c.l.bf16 %v829
      %v838 = vunpack.c.h.bf16 %v829
      %v839 = vunpack.c.l.bf16 %v830
      %v840 = vunpack.c.h.bf16 %v830
      %v841 = vunpack.c.l.bf16 %v831
      %v842 = vunpack.c.h.bf16 %v831
      %v843 = vunpack.c.l.bf16 %v832
      %v844 = vunpack.c.h.bf16 %v832
      %v845 = vunpack.c.l.bf16 %v833
      %v846 = vunpack.c.h.bf16 %v833
      %v847 = vunpack.c.l.bf16 %v834
      %v848 = vunpack.c.h.bf16 %v834
      %v849 = vunpack.c.l.bf16 %v835
      %v850 = vunpack.c.h.bf16 %v835
      %v851 = vunpack.c.l.bf16 %v836
      %v852 = vunpack.c.h.bf16 %v836
      %v853 = vadd.f32 %v837, 0.0
      %v854 = vadd.f32 %v838, 0.0
      %v855 = vadd.f32 %v839, 0.0
      %v856 = vadd.f32 %v840, 0.0
      %v857 = vadd.f32 %v841, 0.0
      %v858 = vadd.f32 %v842, 0.0
      %v859 = vadd.f32 %v843, 0.0
      %v860 = vadd.f32 %v844, 0.0
      %v861 = vadd.f32 %v845, 0.0
      %v862 = vadd.f32 %v846, 0.0
      %v863 = vadd.f32 %v847, 0.0
      %v864 = vadd.f32 %v848, 0.0
      %v865 = vadd.f32 %v849, 0.0
      %v866 = vadd.f32 %v850, 0.0
      %v867 = vadd.f32 %v851, 0.0
      %v868 = vadd.f32 %v852, 0.0
      %v869 = vrot.slane %v539, 6
      %v870 = vrot.slane %v542, 6
      %v871 = vrot.slane %v545, 6
      %v872 = vrot.slane %v548, 6
      %v873 = vrot.slane %v551, 6
      %v874 = vrot.slane %v554, 6
      %v875 = vrot.slane %v557, 6
      %v876 = vrot.slane %v560, 6
      %v877 = vrot.slane %v563, 6
      %v878 = vrot.slane %v566, 6
      %v879 = vrot.slane %v569, 6
      %v880 = vrot.slane %v572, 6
      %v881 = vrot.slane %v575, 6
      %v882 = vrot.slane %v578, 6
      %v883 = vrot.slane %v540, 6
      %v884 = vrot.slane %v543, 6
      %v885 = vrot.slane %v546, 6
      %v886 = vrot.slane %v549, 6
      %v887 = vrot.slane %v552, 6
      %v888 = vrot.slane %v555, 6
      %v889 = vrot.slane %v558, 6
      %v890 = vrot.slane %v561, 6
      %v891 = vrot.slane %v564, 6
      %v892 = vrot.slane %v567, 6
      %v893 = vrot.slane %v570, 6
      %v894 = vrot.slane %v573, 6
      %v895 = vrot.slane %v576, 6
      %v896 = vrot.slane %v579, 6
      %v897 = vrot.slane %v541, 6
      %v898 = vrot.slane %v544, 6
      %v899 = vrot.slane %v547, 6
      %v900 = vrot.slane %v550, 6
      %v901 = vrot.slane %v553, 6
      %v902 = vrot.slane %v556, 6
      %v903 = vrot.slane %v559, 6
      %v904 = vrot.slane %v562, 6
      %v905 = vrot.slane %v565, 6
      %v906 = vrot.slane %v568, 6
      %v907 = vrot.slane %v571, 6
      %v908 = vrot.slane %v574, 6
      %v909 = vrot.slane %v577, 6
      %v910 = vrot.slane %v580, 6
      %vm911 = vcmp.lt.s32.totalorder %v635, 2
      %v912 = vsel %vm911, %v869, %v883
      %v913 = vsel %vm911, %v870, %v884
      %v914 = vsel %vm911, %v871, %v885
      %v915 = vsel %vm911, %v872, %v886
      %v916 = vsel %vm911, %v873, %v887
      %v917 = vsel %vm911, %v874, %v888
      %v918 = vsel %vm911, %v875, %v889
      %v919 = vsel %vm911, %v876, %v890
      %v920 = vsel %vm911, %v877, %v891
      %v921 = vsel %vm911, %v878, %v892
      %v922 = vsel %vm911, %v879, %v893
      %v923 = vsel %vm911, %v880, %v894
      %v924 = vsel %vm911, %v881, %v895
      %v925 = vsel %vm911, %v882, %v896
      %v926 = vsel %vm911, %v897, %v869
      %v927 = vsel %vm911, %v898, %v870
      %v928 = vsel %vm911, %v899, %v871
      %v929 = vsel %vm911, %v900, %v872
      %v930 = vsel %vm911, %v901, %v873
      %v931 = vsel %vm911, %v902, %v874
      %v932 = vsel %vm911, %v903, %v875
      %v933 = vsel %vm911, %v904, %v876
      %v934 = vsel %vm911, %v905, %v877
      %v935 = vsel %vm911, %v906, %v878
      %v936 = vsel %vm911, %v907, %v879
      %v937 = vsel %vm911, %v908, %v880
      %v938 = vsel %vm911, %v909, %v881
      %v939 = vsel %vm911, %v910, %v882
      %v940 = vpack.c.bf16 %v912, %v926
      %v941 = vpack.c.bf16 %v913, %v927
      %v942 = vpack.c.bf16 %v914, %v928
      %v943 = vpack.c.bf16 %v915, %v929
      %v944 = vpack.c.bf16 %v916, %v930
      %v945 = vpack.c.bf16 %v917, %v931
      %v946 = vpack.c.bf16 %v918, %v932
      %v947 = vpack.c.bf16 %v919, %v933
      %v948 = vpack.c.bf16 %v920, %v934
      %v949 = vpack.c.bf16 %v921, %v935
      %v950 = vpack.c.bf16 %v922, %v936
      %v951 = vpack.c.bf16 %v923, %v937
      %v952 = vpack.c.bf16 %v924, %v938
      %v953 = vpack.c.bf16 %v925, %v939
      %v954 = vlaneseq
      %v955 = vshrl.u32 %v954, 7
      %v956 = vsub.s32 0, %v955
      %v957 = vrot.slane %v703, %v956
      %v958 = vmul.bf16 %v940, %v957
      %v959 = vmul.bf16 %v941, %v957
      %v960 = vmul.bf16 %v942, %v957
      %v961 = vmul.bf16 %v943, %v957
      %v962 = vmul.bf16 %v944, %v957
      %v963 = vmul.bf16 %v945, %v957
      %v964 = vmul.bf16 %v946, %v957
      %v965 = vmul.bf16 %v947, %v957
      %v966 = vadd.bf16 %v958, 0
      %v967 = vadd.bf16 %v959, 0
      %v968 = vadd.bf16 %v960, 0
      %v969 = vadd.bf16 %v961, 0
      %v970 = vadd.bf16 %v962, 0
      %v971 = vadd.bf16 %v963, 0
      %v972 = vadd.bf16 %v964, 0
      %v973 = vadd.bf16 %v965, 0
      %v974 = vlaneseq
      %v975 = vshrl.u32 %v974, 7
      %v976 = vsub.s32 4, %v975
      %v977 = vrot.slane %v680, %v976
      %v978 = vmul.bf16 %v941, %v977
      %v979 = vmul.bf16 %v942, %v977
      %v980 = vmul.bf16 %v943, %v977
      %v981 = vmul.bf16 %v944, %v977
      %v982 = vmul.bf16 %v945, %v977
      %v983 = vmul.bf16 %v946, %v977
      %v984 = vmul.bf16 %v947, %v977
      %v985 = vmul.bf16 %v948, %v977
      %v986 = vadd.bf16 %v966, %v978
      %v987 = vadd.bf16 %v967, %v979
      %v988 = vadd.bf16 %v968, %v980
      %v989 = vadd.bf16 %v969, %v981
      %v990 = vadd.bf16 %v970, %v982
      %v991 = vadd.bf16 %v971, %v983
      %v992 = vadd.bf16 %v972, %v984
      %v993 = vadd.bf16 %v973, %v985
      %v994 = vlaneseq
      %v995 = vshrl.u32 %v994, 7
      %v996 = vsub.s32 7, %v995
      %v997 = vrot.slane %v703, %v996
      %v998 = vmul.bf16 %v942, %v997
      %v999 = vmul.bf16 %v943, %v997
      %v1000 = vmul.bf16 %v944, %v997
      %v1001 = vmul.bf16 %v945, %v997
      %v1002 = vmul.bf16 %v946, %v997
      %v1003 = vmul.bf16 %v947, %v997
      %v1004 = vmul.bf16 %v948, %v997
      %v1005 = vmul.bf16 %v949, %v997
      %v1006 = vadd.bf16 %v986, %v998
      %v1007 = vadd.bf16 %v987, %v999
      %v1008 = vadd.bf16 %v988, %v1000
      %v1009 = vadd.bf16 %v989, %v1001
      %v1010 = vadd.bf16 %v990, %v1002
      %v1011 = vadd.bf16 %v991, %v1003
      %v1012 = vadd.bf16 %v992, %v1004
      %v1013 = vadd.bf16 %v993, %v1005
      %v1014 = vlaneseq
      %v1015 = vshrl.u32 %v1014, 7
      %v1016 = vsub.s32 3, %v1015
      %v1017 = vrot.slane %v769, %v1016
      %v1018 = vmul.bf16 %v943, %v1017
      %v1019 = vmul.bf16 %v944, %v1017
      %v1020 = vmul.bf16 %v945, %v1017
      %v1021 = vmul.bf16 %v946, %v1017
      %v1022 = vmul.bf16 %v947, %v1017
      %v1023 = vmul.bf16 %v948, %v1017
      %v1024 = vmul.bf16 %v949, %v1017
      %v1025 = vmul.bf16 %v950, %v1017
      %v1026 = vadd.bf16 %v1006, %v1018
      %v1027 = vadd.bf16 %v1007, %v1019
      %v1028 = vadd.bf16 %v1008, %v1020
      %v1029 = vadd.bf16 %v1009, %v1021
      %v1030 = vadd.bf16 %v1010, %v1022
      %v1031 = vadd.bf16 %v1011, %v1023
      %v1032 = vadd.bf16 %v1012, %v1024
      %v1033 = vadd.bf16 %v1013, %v1025
      %v1034 = vlaneseq
      %v1035 = vshrl.u32 %v1034, 7
      %v1036 = vsub.s32 6, %v1035
      %v1037 = vrot.slane %v747, %v1036
      %v1038 = vmul.bf16 %v944, %v1037
      %v1039 = vmul.bf16 %v945, %v1037
      %v1040 = vmul.bf16 %v946, %v1037
      %v1041 = vmul.bf16 %v947, %v1037
      %v1042 = vmul.bf16 %v948, %v1037
      %v1043 = vmul.bf16 %v949, %v1037
      %v1044 = vmul.bf16 %v950, %v1037
      %v1045 = vmul.bf16 %v951, %v1037
      %v1046 = vadd.bf16 %v1026, %v1038
      %v1047 = vadd.bf16 %v1027, %v1039
      %v1048 = vadd.bf16 %v1028, %v1040
      %v1049 = vadd.bf16 %v1029, %v1041
      %v1050 = vadd.bf16 %v1030, %v1042
      %v1051 = vadd.bf16 %v1031, %v1043
      %v1052 = vadd.bf16 %v1032, %v1044
      %v1053 = vadd.bf16 %v1033, %v1045
      %v1054 = vlaneseq
      %v1055 = vshrl.u32 %v1054, 7
      %v1056 = vsub.s32 2, %v1055
      %v1057 = vrot.slane %v815, %v1056
      %v1058 = vmul.bf16 %v945, %v1057
      %v1059 = vmul.bf16 %v946, %v1057
      %v1060 = vmul.bf16 %v947, %v1057
      %v1061 = vmul.bf16 %v948, %v1057
      %v1062 = vmul.bf16 %v949, %v1057
      %v1063 = vmul.bf16 %v950, %v1057
      %v1064 = vmul.bf16 %v951, %v1057
      %v1065 = vmul.bf16 %v952, %v1057
      %v1066 = vadd.bf16 %v1046, %v1058
      %v1067 = vadd.bf16 %v1047, %v1059
      %v1068 = vadd.bf16 %v1048, %v1060
      %v1069 = vadd.bf16 %v1049, %v1061
      %v1070 = vadd.bf16 %v1050, %v1062
      %v1071 = vadd.bf16 %v1051, %v1063
      %v1072 = vadd.bf16 %v1052, %v1064
      %v1073 = vadd.bf16 %v1053, %v1065
      %v1074 = vlaneseq
      %v1075 = vshrl.u32 %v1074, 7
      %v1076 = vsub.s32 5, %v1075
      %v1077 = vrot.slane %v793, %v1076
      %v1078 = vmul.bf16 %v946, %v1077
      %v1079 = vmul.bf16 %v947, %v1077
      %v1080 = vmul.bf16 %v948, %v1077
      %v1081 = vmul.bf16 %v949, %v1077
      %v1082 = vmul.bf16 %v950, %v1077
      %v1083 = vmul.bf16 %v951, %v1077
      %v1084 = vmul.bf16 %v952, %v1077
      %v1085 = vmul.bf16 %v953, %v1077
      %v1086 = vadd.bf16 %v1066, %v1078
      %v1087 = vadd.bf16 %v1067, %v1079
      %v1088 = vadd.bf16 %v1068, %v1080
      %v1089 = vadd.bf16 %v1069, %v1081
      %v1090 = vadd.bf16 %v1070, %v1082
      %v1091 = vadd.bf16 %v1071, %v1083
      %v1092 = vadd.bf16 %v1072, %v1084
      %v1093 = vadd.bf16 %v1073, %v1085
      %v1094 = vunpack.c.l.bf16 %v1086
      %v1095 = vunpack.c.h.bf16 %v1086
      %v1096 = vunpack.c.l.bf16 %v1087
      %v1097 = vunpack.c.h.bf16 %v1087
      %v1098 = vunpack.c.l.bf16 %v1088
      %v1099 = vunpack.c.h.bf16 %v1088
      %v1100 = vunpack.c.l.bf16 %v1089
      %v1101 = vunpack.c.h.bf16 %v1089
      %v1102 = vunpack.c.l.bf16 %v1090
      %v1103 = vunpack.c.h.bf16 %v1090
      %v1104 = vunpack.c.l.bf16 %v1091
      %v1105 = vunpack.c.h.bf16 %v1091
      %v1106 = vunpack.c.l.bf16 %v1092
      %v1107 = vunpack.c.h.bf16 %v1092
      %v1108 = vunpack.c.l.bf16 %v1093
      %v1109 = vunpack.c.h.bf16 %v1093
      %v1110 = vadd.f32 %v853, %v1094
      %v1111 = vadd.f32 %v854, %v1095
      %v1112 = vadd.f32 %v855, %v1096
      %v1113 = vadd.f32 %v856, %v1097
      %v1114 = vadd.f32 %v857, %v1098
      %v1115 = vadd.f32 %v858, %v1099
      %v1116 = vadd.f32 %v859, %v1100
      %v1117 = vadd.f32 %v860, %v1101
      %v1118 = vadd.f32 %v861, %v1102
      %v1119 = vadd.f32 %v862, %v1103
      %v1120 = vadd.f32 %v863, %v1104
      %v1121 = vadd.f32 %v864, %v1105
      %v1122 = vadd.f32 %v865, %v1106
      %v1123 = vadd.f32 %v866, %v1107
      %v1124 = vadd.f32 %v867, %v1108
      %v1125 = vadd.f32 %v868, %v1109
      %v1126 = vrot.slane %v539, 7
      %v1127 = vrot.slane %v542, 7
      %v1128 = vrot.slane %v545, 7
      %v1129 = vrot.slane %v548, 7
      %v1130 = vrot.slane %v551, 7
      %v1131 = vrot.slane %v554, 7
      %v1132 = vrot.slane %v557, 7
      %v1133 = vrot.slane %v560, 7
      %v1134 = vrot.slane %v563, 7
      %v1135 = vrot.slane %v566, 7
      %v1136 = vrot.slane %v569, 7
      %v1137 = vrot.slane %v572, 7
      %v1138 = vrot.slane %v575, 7
      %v1139 = vrot.slane %v578, 7
      %v1140 = vrot.slane %v540, 7
      %v1141 = vrot.slane %v543, 7
      %v1142 = vrot.slane %v546, 7
      %v1143 = vrot.slane %v549, 7
      %v1144 = vrot.slane %v552, 7
      %v1145 = vrot.slane %v555, 7
      %v1146 = vrot.slane %v558, 7
      %v1147 = vrot.slane %v561, 7
      %v1148 = vrot.slane %v564, 7
      %v1149 = vrot.slane %v567, 7
      %v1150 = vrot.slane %v570, 7
      %v1151 = vrot.slane %v573, 7
      %v1152 = vrot.slane %v576, 7
      %v1153 = vrot.slane %v579, 7
      %v1154 = vrot.slane %v541, 7
      %v1155 = vrot.slane %v544, 7
      %v1156 = vrot.slane %v547, 7
      %v1157 = vrot.slane %v550, 7
      %v1158 = vrot.slane %v553, 7
      %v1159 = vrot.slane %v556, 7
      %v1160 = vrot.slane %v559, 7
      %v1161 = vrot.slane %v562, 7
      %v1162 = vrot.slane %v565, 7
      %v1163 = vrot.slane %v568, 7
      %v1164 = vrot.slane %v571, 7
      %v1165 = vrot.slane %v574, 7
      %v1166 = vrot.slane %v577, 7
      %v1167 = vrot.slane %v580, 7
      %vm1168 = vcmp.lt.s32.totalorder %v635, 1
      %v1169 = vsel %vm1168, %v1126, %v1140
      %v1170 = vsel %vm1168, %v1127, %v1141
      %v1171 = vsel %vm1168, %v1128, %v1142
      %v1172 = vsel %vm1168, %v1129, %v1143
      %v1173 = vsel %vm1168, %v1130, %v1144
      %v1174 = vsel %vm1168, %v1131, %v1145
      %v1175 = vsel %vm1168, %v1132, %v1146
      %v1176 = vsel %vm1168, %v1133, %v1147
      %v1177 = vsel %vm1168, %v1134, %v1148
      %v1178 = vsel %vm1168, %v1135, %v1149
      %v1179 = vsel %vm1168, %v1136, %v1150
      %v1180 = vsel %vm1168, %v1137, %v1151
      %v1181 = vsel %vm1168, %v1138, %v1152
      %v1182 = vsel %vm1168, %v1139, %v1153
      %v1183 = vsel %vm1168, %v1154, %v1126
      %v1184 = vsel %vm1168, %v1155, %v1127
      %v1185 = vsel %vm1168, %v1156, %v1128
      %v1186 = vsel %vm1168, %v1157, %v1129
      %v1187 = vsel %vm1168, %v1158, %v1130
      %v1188 = vsel %vm1168, %v1159, %v1131
      %v1189 = vsel %vm1168, %v1160, %v1132
      %v1190 = vsel %vm1168, %v1161, %v1133
      %v1191 = vsel %vm1168, %v1162, %v1134
      %v1192 = vsel %vm1168, %v1163, %v1135
      %v1193 = vsel %vm1168, %v1164, %v1136
      %v1194 = vsel %vm1168, %v1165, %v1137
      %v1195 = vsel %vm1168, %v1166, %v1138
      %v1196 = vsel %vm1168, %v1167, %v1139
      %v1197 = vpack.c.bf16 %v1169, %v1183
      %v1198 = vpack.c.bf16 %v1170, %v1184
      %v1199 = vpack.c.bf16 %v1171, %v1185
      %v1200 = vpack.c.bf16 %v1172, %v1186
      %v1201 = vpack.c.bf16 %v1173, %v1187
      %v1202 = vpack.c.bf16 %v1174, %v1188
      %v1203 = vpack.c.bf16 %v1175, %v1189
      %v1204 = vpack.c.bf16 %v1176, %v1190
      %v1205 = vpack.c.bf16 %v1177, %v1191
      %v1206 = vpack.c.bf16 %v1178, %v1192
      %v1207 = vpack.c.bf16 %v1179, %v1193
      %v1208 = vpack.c.bf16 %v1180, %v1194
      %v1209 = vpack.c.bf16 %v1181, %v1195
      %v1210 = vpack.c.bf16 %v1182, %v1196
      %v1211 = vlaneseq
      %v1212 = vshrl.u32 %v1211, 7
      %v1213 = vsub.s32 1, %v1212
      %v1214 = vrot.slane %v680, %v1213
      %v1215 = vmul.bf16 %v1197, %v1214
      %v1216 = vmul.bf16 %v1198, %v1214
      %v1217 = vmul.bf16 %v1199, %v1214
      %v1218 = vmul.bf16 %v1200, %v1214
      %v1219 = vmul.bf16 %v1201, %v1214
      %v1220 = vmul.bf16 %v1202, %v1214
      %v1221 = vmul.bf16 %v1203, %v1214
      %v1222 = vmul.bf16 %v1204, %v1214
      %v1223 = vadd.bf16 %v1215, 0
      %v1224 = vadd.bf16 %v1216, 0
      %v1225 = vadd.bf16 %v1217, 0
      %v1226 = vadd.bf16 %v1218, 0
      %v1227 = vadd.bf16 %v1219, 0
      %v1228 = vadd.bf16 %v1220, 0
      %v1229 = vadd.bf16 %v1221, 0
      %v1230 = vadd.bf16 %v1222, 0
      %v1231 = vlaneseq
      %v1232 = vshrl.u32 %v1231, 7
      %v1233 = vsub.s32 4, %v1232
      %v1234 = vrot.slane %v703, %v1233
      %v1235 = vmul.bf16 %v1198, %v1234
      %v1236 = vmul.bf16 %v1199, %v1234
      %v1237 = vmul.bf16 %v1200, %v1234
      %v1238 = vmul.bf16 %v1201, %v1234
      %v1239 = vmul.bf16 %v1202, %v1234
      %v1240 = vmul.bf16 %v1203, %v1234
      %v1241 = vmul.bf16 %v1204, %v1234
      %v1242 = vmul.bf16 %v1205, %v1234
      %v1243 = vadd.bf16 %v1223, %v1235
      %v1244 = vadd.bf16 %v1224, %v1236
      %v1245 = vadd.bf16 %v1225, %v1237
      %v1246 = vadd.bf16 %v1226, %v1238
      %v1247 = vadd.bf16 %v1227, %v1239
      %v1248 = vadd.bf16 %v1228, %v1240
      %v1249 = vadd.bf16 %v1229, %v1241
      %v1250 = vadd.bf16 %v1230, %v1242
      %v1251 = vlaneseq
      %v1252 = vshrl.u32 %v1251, 7
      %v1253 = vsub.s32 0, %v1252
      %v1254 = vrot.slane %v769, %v1253
      %v1255 = vmul.bf16 %v1199, %v1254
      %v1256 = vmul.bf16 %v1200, %v1254
      %v1257 = vmul.bf16 %v1201, %v1254
      %v1258 = vmul.bf16 %v1202, %v1254
      %v1259 = vmul.bf16 %v1203, %v1254
      %v1260 = vmul.bf16 %v1204, %v1254
      %v1261 = vmul.bf16 %v1205, %v1254
      %v1262 = vmul.bf16 %v1206, %v1254
      %v1263 = vadd.bf16 %v1243, %v1255
      %v1264 = vadd.bf16 %v1244, %v1256
      %v1265 = vadd.bf16 %v1245, %v1257
      %v1266 = vadd.bf16 %v1246, %v1258
      %v1267 = vadd.bf16 %v1247, %v1259
      %v1268 = vadd.bf16 %v1248, %v1260
      %v1269 = vadd.bf16 %v1249, %v1261
      %v1270 = vadd.bf16 %v1250, %v1262
      %v1271 = vlaneseq
      %v1272 = vshrl.u32 %v1271, 7
      %v1273 = vsub.s32 3, %v1272
      %v1274 = vrot.slane %v747, %v1273
      %v1275 = vmul.bf16 %v1200, %v1274
      %v1276 = vmul.bf16 %v1201, %v1274
      %v1277 = vmul.bf16 %v1202, %v1274
      %v1278 = vmul.bf16 %v1203, %v1274
      %v1279 = vmul.bf16 %v1204, %v1274
      %v1280 = vmul.bf16 %v1205, %v1274
      %v1281 = vmul.bf16 %v1206, %v1274
      %v1282 = vmul.bf16 %v1207, %v1274
      %v1283 = vadd.bf16 %v1263, %v1275
      %v1284 = vadd.bf16 %v1264, %v1276
      %v1285 = vadd.bf16 %v1265, %v1277
      %v1286 = vadd.bf16 %v1266, %v1278
      %v1287 = vadd.bf16 %v1267, %v1279
      %v1288 = vadd.bf16 %v1268, %v1280
      %v1289 = vadd.bf16 %v1269, %v1281
      %v1290 = vadd.bf16 %v1270, %v1282
      %v1291 = vlaneseq
      %v1292 = vshrl.u32 %v1291, 7
      %v1293 = vsub.s32 7, %v1292
      %v1294 = vrot.slane %v769, %v1293
      %v1295 = vmul.bf16 %v1201, %v1294
      %v1296 = vmul.bf16 %v1202, %v1294
      %v1297 = vmul.bf16 %v1203, %v1294
      %v1298 = vmul.bf16 %v1204, %v1294
      %v1299 = vmul.bf16 %v1205, %v1294
      %v1300 = vmul.bf16 %v1206, %v1294
      %v1301 = vmul.bf16 %v1207, %v1294
      %v1302 = vmul.bf16 %v1208, %v1294
      %v1303 = vadd.bf16 %v1283, %v1295
      %v1304 = vadd.bf16 %v1284, %v1296
      %v1305 = vadd.bf16 %v1285, %v1297
      %v1306 = vadd.bf16 %v1286, %v1298
      %v1307 = vadd.bf16 %v1287, %v1299
      %v1308 = vadd.bf16 %v1288, %v1300
      %v1309 = vadd.bf16 %v1289, %v1301
      %v1310 = vadd.bf16 %v1290, %v1302
      %v1311 = vlaneseq
      %v1312 = vshrl.u32 %v1311, 7
      %v1313 = vsub.s32 2, %v1312
      %v1314 = vrot.slane %v793, %v1313
      %v1315 = vmul.bf16 %v1202, %v1314
      %v1316 = vmul.bf16 %v1203, %v1314
      %v1317 = vmul.bf16 %v1204, %v1314
      %v1318 = vmul.bf16 %v1205, %v1314
      %v1319 = vmul.bf16 %v1206, %v1314
      %v1320 = vmul.bf16 %v1207, %v1314
      %v1321 = vmul.bf16 %v1208, %v1314
      %v1322 = vmul.bf16 %v1209, %v1314
      %v1323 = vadd.bf16 %v1303, %v1315
      %v1324 = vadd.bf16 %v1304, %v1316
      %v1325 = vadd.bf16 %v1305, %v1317
      %v1326 = vadd.bf16 %v1306, %v1318
      %v1327 = vadd.bf16 %v1307, %v1319
      %v1328 = vadd.bf16 %v1308, %v1320
      %v1329 = vadd.bf16 %v1309, %v1321
      %v1330 = vadd.bf16 %v1310, %v1322
      %v1331 = vlaneseq
      %v1332 = vshrl.u32 %v1331, 7
      %v1333 = vsub.s32 6, %v1332
      %v1334 = vrot.slane %v815, %v1333
      %v1335 = vmul.bf16 %v1203, %v1334
      %v1336 = vmul.bf16 %v1204, %v1334
      %v1337 = vmul.bf16 %v1205, %v1334
      %v1338 = vmul.bf16 %v1206, %v1334
      %v1339 = vmul.bf16 %v1207, %v1334
      %v1340 = vmul.bf16 %v1208, %v1334
      %v1341 = vmul.bf16 %v1209, %v1334
      %v1342 = vmul.bf16 %v1210, %v1334
      %v1343 = vadd.bf16 %v1323, %v1335
      %v1344 = vadd.bf16 %v1324, %v1336
      %v1345 = vadd.bf16 %v1325, %v1337
      %v1346 = vadd.bf16 %v1326, %v1338
      %v1347 = vadd.bf16 %v1327, %v1339
      %v1348 = vadd.bf16 %v1328, %v1340
      %v1349 = vadd.bf16 %v1329, %v1341
      %v1350 = vadd.bf16 %v1330, %v1342
      %v1351 = vunpack.c.l.bf16 %v1343
      %v1352 = vunpack.c.h.bf16 %v1343
      %v1353 = vunpack.c.l.bf16 %v1344
      %v1354 = vunpack.c.h.bf16 %v1344
      %v1355 = vunpack.c.l.bf16 %v1345
      %v1356 = vunpack.c.h.bf16 %v1345
      %v1357 = vunpack.c.l.bf16 %v1346
      %v1358 = vunpack.c.h.bf16 %v1346
      %v1359 = vunpack.c.l.bf16 %v1347
      %v1360 = vunpack.c.h.bf16 %v1347
      %v1361 = vunpack.c.l.bf16 %v1348
      %v1362 = vunpack.c.h.bf16 %v1348
      %v1363 = vunpack.c.l.bf16 %v1349
      %v1364 = vunpack.c.h.bf16 %v1349
      %v1365 = vunpack.c.l.bf16 %v1350
      %v1366 = vunpack.c.h.bf16 %v1350
      %v1367 = vadd.f32 %v1110, %v1351
      %v1368 = vadd.f32 %v1111, %v1352
      %v1369 = vadd.f32 %v1112, %v1353
      %v1370 = vadd.f32 %v1113, %v1354
      %v1371 = vadd.f32 %v1114, %v1355
      %v1372 = vadd.f32 %v1115, %v1356
      %v1373 = vadd.f32 %v1116, %v1357
      %v1374 = vadd.f32 %v1117, %v1358
      %v1375 = vadd.f32 %v1118, %v1359
      %v1376 = vadd.f32 %v1119, %v1360
      %v1377 = vadd.f32 %v1120, %v1361
      %v1378 = vadd.f32 %v1121, %v1362
      %v1379 = vadd.f32 %v1122, %v1363
      %v1380 = vadd.f32 %v1123, %v1364
      %v1381 = vadd.f32 %v1124, %v1365
      %v1382 = vadd.f32 %v1125, %v1366
      %v1383 = vpack.c.bf16 %v540, %v539
      %v1384 = vpack.c.bf16 %v543, %v542
      %v1385 = vpack.c.bf16 %v546, %v545
      %v1386 = vpack.c.bf16 %v549, %v548
      %v1387 = vpack.c.bf16 %v552, %v551
      %v1388 = vpack.c.bf16 %v555, %v554
      %v1389 = vpack.c.bf16 %v558, %v557
      %v1390 = vpack.c.bf16 %v561, %v560
      %v1391 = vpack.c.bf16 %v564, %v563
      %v1392 = vpack.c.bf16 %v567, %v566
      %v1393 = vpack.c.bf16 %v570, %v569
      %v1394 = vpack.c.bf16 %v573, %v572
      %v1395 = vpack.c.bf16 %v576, %v575
      %v1396 = vpack.c.bf16 %v579, %v578
      %v1397 = vlaneseq
      %v1398 = vshrl.u32 %v1397, 7
      %v1399 = vsub.s32 1, %v1398
      %v1400 = vrot.slane %v703, %v1399
      %v1401 = vmul.bf16 %v1383, %v1400
      %v1402 = vmul.bf16 %v1384, %v1400
      %v1403 = vmul.bf16 %v1385, %v1400
      %v1404 = vmul.bf16 %v1386, %v1400
      %v1405 = vmul.bf16 %v1387, %v1400
      %v1406 = vmul.bf16 %v1388, %v1400
      %v1407 = vmul.bf16 %v1389, %v1400
      %v1408 = vmul.bf16 %v1390, %v1400
      %v1409 = vadd.bf16 %v1401, 0
      %v1410 = vadd.bf16 %v1402, 0
      %v1411 = vadd.bf16 %v1403, 0
      %v1412 = vadd.bf16 %v1404, 0
      %v1413 = vadd.bf16 %v1405, 0
      %v1414 = vadd.bf16 %v1406, 0
      %v1415 = vadd.bf16 %v1407, 0
      %v1416 = vadd.bf16 %v1408, 0
      %v1417 = vlaneseq
      %v1418 = vshrl.u32 %v1417, 7
      %v1419 = vsub.s32 5, %v1418
      %v1420 = vrot.slane %v680, %v1419
      %v1421 = vmul.bf16 %v1384, %v1420
      %v1422 = vmul.bf16 %v1385, %v1420
      %v1423 = vmul.bf16 %v1386, %v1420
      %v1424 = vmul.bf16 %v1387, %v1420
      %v1425 = vmul.bf16 %v1388, %v1420
      %v1426 = vmul.bf16 %v1389, %v1420
      %v1427 = vmul.bf16 %v1390, %v1420
      %v1428 = vmul.bf16 %v1391, %v1420
      %v1429 = vadd.bf16 %v1409, %v1421
      %v1430 = vadd.bf16 %v1410, %v1422
      %v1431 = vadd.bf16 %v1411, %v1423
      %v1432 = vadd.bf16 %v1412, %v1424
      %v1433 = vadd.bf16 %v1413, %v1425
      %v1434 = vadd.bf16 %v1414, %v1426
      %v1435 = vadd.bf16 %v1415, %v1427
      %v1436 = vadd.bf16 %v1416, %v1428
      %v1437 = vlaneseq
      %v1438 = vshrl.u32 %v1437, 7
      %v1439 = vsub.s32 0, %v1438
      %v1440 = vrot.slane %v747, %v1439
      %v1441 = vmul.bf16 %v1385, %v1440
      %v1442 = vmul.bf16 %v1386, %v1440
      %v1443 = vmul.bf16 %v1387, %v1440
      %v1444 = vmul.bf16 %v1388, %v1440
      %v1445 = vmul.bf16 %v1389, %v1440
      %v1446 = vmul.bf16 %v1390, %v1440
      %v1447 = vmul.bf16 %v1391, %v1440
      %v1448 = vmul.bf16 %v1392, %v1440
      %v1449 = vadd.bf16 %v1429, %v1441
      %v1450 = vadd.bf16 %v1430, %v1442
      %v1451 = vadd.bf16 %v1431, %v1443
      %v1452 = vadd.bf16 %v1432, %v1444
      %v1453 = vadd.bf16 %v1433, %v1445
      %v1454 = vadd.bf16 %v1434, %v1446
      %v1455 = vadd.bf16 %v1435, %v1447
      %v1456 = vadd.bf16 %v1436, %v1448
      %v1457 = vlaneseq
      %v1458 = vshrl.u32 %v1457, 7
      %v1459 = vsub.s32 4, %v1458
      %v1460 = vrot.slane %v769, %v1459
      %v1461 = vmul.bf16 %v1386, %v1460
      %v1462 = vmul.bf16 %v1387, %v1460
      %v1463 = vmul.bf16 %v1388, %v1460
      %v1464 = vmul.bf16 %v1389, %v1460
      %v1465 = vmul.bf16 %v1390, %v1460
      %v1466 = vmul.bf16 %v1391, %v1460
      %v1467 = vmul.bf16 %v1392, %v1460
      %v1468 = vmul.bf16 %v1393, %v1460
      %v1469 = vadd.bf16 %v1449, %v1461
      %v1470 = vadd.bf16 %v1450, %v1462
      %v1471 = vadd.bf16 %v1451, %v1463
      %v1472 = vadd.bf16 %v1452, %v1464
      %v1473 = vadd.bf16 %v1453, %v1465
      %v1474 = vadd.bf16 %v1454, %v1466
      %v1475 = vadd.bf16 %v1455, %v1467
      %v1476 = vadd.bf16 %v1456, %v1468
      %v1477 = vlaneseq
      %v1478 = vshrl.u32 %v1477, 7
      %v1479 = vsub.s32 7, %v1478
      %v1480 = vrot.slane %v747, %v1479
      %v1481 = vmul.bf16 %v1387, %v1480
      %v1482 = vmul.bf16 %v1388, %v1480
      %v1483 = vmul.bf16 %v1389, %v1480
      %v1484 = vmul.bf16 %v1390, %v1480
      %v1485 = vmul.bf16 %v1391, %v1480
      %v1486 = vmul.bf16 %v1392, %v1480
      %v1487 = vmul.bf16 %v1393, %v1480
      %v1488 = vmul.bf16 %v1394, %v1480
      %v1489 = vadd.bf16 %v1469, %v1481
      %v1490 = vadd.bf16 %v1470, %v1482
      %v1491 = vadd.bf16 %v1471, %v1483
      %v1492 = vadd.bf16 %v1472, %v1484
      %v1493 = vadd.bf16 %v1473, %v1485
      %v1494 = vadd.bf16 %v1474, %v1486
      %v1495 = vadd.bf16 %v1475, %v1487
      %v1496 = vadd.bf16 %v1476, %v1488
      %v1497 = vlaneseq
      %v1498 = vshrl.u32 %v1497, 7
      %v1499 = vsub.s32 3, %v1498
      %v1500 = vrot.slane %v815, %v1499
      %v1501 = vmul.bf16 %v1388, %v1500
      %v1502 = vmul.bf16 %v1389, %v1500
      %v1503 = vmul.bf16 %v1390, %v1500
      %v1504 = vmul.bf16 %v1391, %v1500
      %v1505 = vmul.bf16 %v1392, %v1500
      %v1506 = vmul.bf16 %v1393, %v1500
      %v1507 = vmul.bf16 %v1394, %v1500
      %v1508 = vmul.bf16 %v1395, %v1500
      %v1509 = vadd.bf16 %v1489, %v1501
      %v1510 = vadd.bf16 %v1490, %v1502
      %v1511 = vadd.bf16 %v1491, %v1503
      %v1512 = vadd.bf16 %v1492, %v1504
      %v1513 = vadd.bf16 %v1493, %v1505
      %v1514 = vadd.bf16 %v1494, %v1506
      %v1515 = vadd.bf16 %v1495, %v1507
      %v1516 = vadd.bf16 %v1496, %v1508
      %v1517 = vlaneseq
      %v1518 = vshrl.u32 %v1517, 7
      %v1519 = vsub.s32 6, %v1518
      %v1520 = vrot.slane %v793, %v1519
      %v1521 = vmul.bf16 %v1389, %v1520
      %v1522 = vmul.bf16 %v1390, %v1520
      %v1523 = vmul.bf16 %v1391, %v1520
      %v1524 = vmul.bf16 %v1392, %v1520
      %v1525 = vmul.bf16 %v1393, %v1520
      %v1526 = vmul.bf16 %v1394, %v1520
      %v1527 = vmul.bf16 %v1395, %v1520
      %v1528 = vmul.bf16 %v1396, %v1520
      %v1529 = vadd.bf16 %v1509, %v1521
      %v1530 = vadd.bf16 %v1510, %v1522
      %v1531 = vadd.bf16 %v1511, %v1523
      %v1532 = vadd.bf16 %v1512, %v1524
      %v1533 = vadd.bf16 %v1513, %v1525
      %v1534 = vadd.bf16 %v1514, %v1526
      %v1535 = vadd.bf16 %v1515, %v1527
      %v1536 = vadd.bf16 %v1516, %v1528
      %v1537 = vunpack.c.l.bf16 %v1529
      %v1538 = vunpack.c.h.bf16 %v1529
      %v1539 = vunpack.c.l.bf16 %v1530
      %v1540 = vunpack.c.h.bf16 %v1530
      %v1541 = vunpack.c.l.bf16 %v1531
      %v1542 = vunpack.c.h.bf16 %v1531
      %v1543 = vunpack.c.l.bf16 %v1532
      %v1544 = vunpack.c.h.bf16 %v1532
      %v1545 = vunpack.c.l.bf16 %v1533
      %v1546 = vunpack.c.h.bf16 %v1533
      %v1547 = vunpack.c.l.bf16 %v1534
      %v1548 = vunpack.c.h.bf16 %v1534
      %v1549 = vunpack.c.l.bf16 %v1535
      %v1550 = vunpack.c.h.bf16 %v1535
      %v1551 = vunpack.c.l.bf16 %v1536
      %v1552 = vunpack.c.h.bf16 %v1536
      %v1553 = vadd.f32 %v1367, %v1537
      %v1554 = vadd.f32 %v1368, %v1538
      %v1555 = vadd.f32 %v1369, %v1539
      %v1556 = vadd.f32 %v1370, %v1540
      %v1557 = vadd.f32 %v1371, %v1541
      %v1558 = vadd.f32 %v1372, %v1542
      %v1559 = vadd.f32 %v1373, %v1543
      %v1560 = vadd.f32 %v1374, %v1544
      %v1561 = vadd.f32 %v1375, %v1545
      %v1562 = vadd.f32 %v1376, %v1546
      %v1563 = vadd.f32 %v1377, %v1547
      %v1564 = vadd.f32 %v1378, %v1548
      %v1565 = vadd.f32 %v1379, %v1549
      %v1566 = vadd.f32 %v1380, %v1550
      %v1567 = vadd.f32 %v1381, %v1551
      %v1568 = vadd.f32 %v1382, %v1552
      %v1569 = vrot.slane %v539, 1
      %v1570 = vrot.slane %v542, 1
      %v1571 = vrot.slane %v545, 1
      %v1572 = vrot.slane %v548, 1
      %v1573 = vrot.slane %v551, 1
      %v1574 = vrot.slane %v554, 1
      %v1575 = vrot.slane %v557, 1
      %v1576 = vrot.slane %v560, 1
      %v1577 = vrot.slane %v563, 1
      %v1578 = vrot.slane %v566, 1
      %v1579 = vrot.slane %v569, 1
      %v1580 = vrot.slane %v572, 1
      %v1581 = vrot.slane %v575, 1
      %v1582 = vrot.slane %v578, 1
      %v1583 = vrot.slane %v540, 1
      %v1584 = vrot.slane %v543, 1
      %v1585 = vrot.slane %v546, 1
      %v1586 = vrot.slane %v549, 1
      %v1587 = vrot.slane %v552, 1
      %v1588 = vrot.slane %v555, 1
      %v1589 = vrot.slane %v558, 1
      %v1590 = vrot.slane %v561, 1
      %v1591 = vrot.slane %v564, 1
      %v1592 = vrot.slane %v567, 1
      %v1593 = vrot.slane %v570, 1
      %v1594 = vrot.slane %v573, 1
      %v1595 = vrot.slane %v576, 1
      %v1596 = vrot.slane %v579, 1
      %v1597 = vrot.slane %v541, 1
      %v1598 = vrot.slane %v544, 1
      %v1599 = vrot.slane %v547, 1
      %v1600 = vrot.slane %v550, 1
      %v1601 = vrot.slane %v553, 1
      %v1602 = vrot.slane %v556, 1
      %v1603 = vrot.slane %v559, 1
      %v1604 = vrot.slane %v562, 1
      %v1605 = vrot.slane %v565, 1
      %v1606 = vrot.slane %v568, 1
      %v1607 = vrot.slane %v571, 1
      %v1608 = vrot.slane %v574, 1
      %v1609 = vrot.slane %v577, 1
      %v1610 = vrot.slane %v580, 1
      %vm1611 = vcmp.lt.s32.totalorder %v635, 7
      %v1612 = vsel %vm1611, %v1583, %v1597
      %v1613 = vsel %vm1611, %v1584, %v1598
      %v1614 = vsel %vm1611, %v1585, %v1599
      %v1615 = vsel %vm1611, %v1586, %v1600
      %v1616 = vsel %vm1611, %v1587, %v1601
      %v1617 = vsel %vm1611, %v1588, %v1602
      %v1618 = vsel %vm1611, %v1589, %v1603
      %v1619 = vsel %vm1611, %v1590, %v1604
      %v1620 = vsel %vm1611, %v1591, %v1605
      %v1621 = vsel %vm1611, %v1592, %v1606
      %v1622 = vsel %vm1611, %v1593, %v1607
      %v1623 = vsel %vm1611, %v1594, %v1608
      %v1624 = vsel %vm1611, %v1595, %v1609
      %v1625 = vsel %vm1611, %v1596, %v1610
      %v1626 = vsel %vm1611, %v1569, %v1583
      %v1627 = vsel %vm1611, %v1570, %v1584
      %v1628 = vsel %vm1611, %v1571, %v1585
      %v1629 = vsel %vm1611, %v1572, %v1586
      %v1630 = vsel %vm1611, %v1573, %v1587
      %v1631 = vsel %vm1611, %v1574, %v1588
      %v1632 = vsel %vm1611, %v1575, %v1589
      %v1633 = vsel %vm1611, %v1576, %v1590
      %v1634 = vsel %vm1611, %v1577, %v1591
      %v1635 = vsel %vm1611, %v1578, %v1592
      %v1636 = vsel %vm1611, %v1579, %v1593
      %v1637 = vsel %vm1611, %v1580, %v1594
      %v1638 = vsel %vm1611, %v1581, %v1595
      %v1639 = vsel %vm1611, %v1582, %v1596
      %v1640 = vpack.c.bf16 %v1612, %v1626
      %v1641 = vpack.c.bf16 %v1613, %v1627
      %v1642 = vpack.c.bf16 %v1614, %v1628
      %v1643 = vpack.c.bf16 %v1615, %v1629
      %v1644 = vpack.c.bf16 %v1616, %v1630
      %v1645 = vpack.c.bf16 %v1617, %v1631
      %v1646 = vpack.c.bf16 %v1618, %v1632
      %v1647 = vpack.c.bf16 %v1619, %v1633
      %v1648 = vpack.c.bf16 %v1620, %v1634
      %v1649 = vpack.c.bf16 %v1621, %v1635
      %v1650 = vpack.c.bf16 %v1622, %v1636
      %v1651 = vpack.c.bf16 %v1623, %v1637
      %v1652 = vpack.c.bf16 %v1624, %v1638
      %v1653 = vpack.c.bf16 %v1625, %v1639
      %v1654 = vlaneseq
      %v1655 = vshrl.u32 %v1654, 7
      %v1656 = vsub.s32 2, %v1655
      %v1657 = vrot.slane %v680, %v1656
      %v1658 = vmul.bf16 %v1640, %v1657
      %v1659 = vmul.bf16 %v1641, %v1657
      %v1660 = vmul.bf16 %v1642, %v1657
      %v1661 = vmul.bf16 %v1643, %v1657
      %v1662 = vmul.bf16 %v1644, %v1657
      %v1663 = vmul.bf16 %v1645, %v1657
      %v1664 = vmul.bf16 %v1646, %v1657
      %v1665 = vmul.bf16 %v1647, %v1657
      %v1666 = vadd.bf16 %v1658, 0
      %v1667 = vadd.bf16 %v1659, 0
      %v1668 = vadd.bf16 %v1660, 0
      %v1669 = vadd.bf16 %v1661, 0
      %v1670 = vadd.bf16 %v1662, 0
      %v1671 = vadd.bf16 %v1663, 0
      %v1672 = vadd.bf16 %v1664, 0
      %v1673 = vadd.bf16 %v1665, 0
      %v1674 = vlaneseq
      %v1675 = vshrl.u32 %v1674, 7
      %v1676 = vsub.s32 5, %v1675
      %v1677 = vrot.slane %v703, %v1676
      %v1678 = vmul.bf16 %v1641, %v1677
      %v1679 = vmul.bf16 %v1642, %v1677
      %v1680 = vmul.bf16 %v1643, %v1677
      %v1681 = vmul.bf16 %v1644, %v1677
      %v1682 = vmul.bf16 %v1645, %v1677
      %v1683 = vmul.bf16 %v1646, %v1677
      %v1684 = vmul.bf16 %v1647, %v1677
      %v1685 = vmul.bf16 %v1648, %v1677
      %v1686 = vadd.bf16 %v1666, %v1678
      %v1687 = vadd.bf16 %v1667, %v1679
      %v1688 = vadd.bf16 %v1668, %v1680
      %v1689 = vadd.bf16 %v1669, %v1681
      %v1690 = vadd.bf16 %v1670, %v1682
      %v1691 = vadd.bf16 %v1671, %v1683
      %v1692 = vadd.bf16 %v1672, %v1684
      %v1693 = vadd.bf16 %v1673, %v1685
      %v1694 = vlaneseq
      %v1695 = vshrl.u32 %v1694, 7
      %v1696 = vsub.s32 1, %v1695
      %v1697 = vrot.slane %v769, %v1696
      %v1698 = vmul.bf16 %v1642, %v1697
      %v1699 = vmul.bf16 %v1643, %v1697
      %v1700 = vmul.bf16 %v1644, %v1697
      %v1701 = vmul.bf16 %v1645, %v1697
      %v1702 = vmul.bf16 %v1646, %v1697
      %v1703 = vmul.bf16 %v1647, %v1697
      %v1704 = vmul.bf16 %v1648, %v1697
      %v1705 = vmul.bf16 %v1649, %v1697
      %v1706 = vadd.bf16 %v1686, %v1698
      %v1707 = vadd.bf16 %v1687, %v1699
      %v1708 = vadd.bf16 %v1688, %v1700
      %v1709 = vadd.bf16 %v1689, %v1701
      %v1710 = vadd.bf16 %v1690, %v1702
      %v1711 = vadd.bf16 %v1691, %v1703
      %v1712 = vadd.bf16 %v1692, %v1704
      %v1713 = vadd.bf16 %v1693, %v1705
      %v1714 = vlaneseq
      %v1715 = vshrl.u32 %v1714, 7
      %v1716 = vsub.s32 4, %v1715
      %v1717 = vrot.slane %v747, %v1716
      %v1718 = vmul.bf16 %v1643, %v1717
      %v1719 = vmul.bf16 %v1644, %v1717
      %v1720 = vmul.bf16 %v1645, %v1717
      %v1721 = vmul.bf16 %v1646, %v1717
      %v1722 = vmul.bf16 %v1647, %v1717
      %v1723 = vmul.bf16 %v1648, %v1717
      %v1724 = vmul.bf16 %v1649, %v1717
      %v1725 = vmul.bf16 %v1650, %v1717
      %v1726 = vadd.bf16 %v1706, %v1718
      %v1727 = vadd.bf16 %v1707, %v1719
      %v1728 = vadd.bf16 %v1708, %v1720
      %v1729 = vadd.bf16 %v1709, %v1721
      %v1730 = vadd.bf16 %v1710, %v1722
      %v1731 = vadd.bf16 %v1711, %v1723
      %v1732 = vadd.bf16 %v1712, %v1724
      %v1733 = vadd.bf16 %v1713, %v1725
      %v1734 = vlaneseq
      %v1735 = vshrl.u32 %v1734, 7
      %v1736 = vsub.s32 0, %v1735
      %v1737 = vrot.slane %v815, %v1736
      %v1738 = vmul.bf16 %v1644, %v1737
      %v1739 = vmul.bf16 %v1645, %v1737
      %v1740 = vmul.bf16 %v1646, %v1737
      %v1741 = vmul.bf16 %v1647, %v1737
      %v1742 = vmul.bf16 %v1648, %v1737
      %v1743 = vmul.bf16 %v1649, %v1737
      %v1744 = vmul.bf16 %v1650, %v1737
      %v1745 = vmul.bf16 %v1651, %v1737
      %v1746 = vadd.bf16 %v1726, %v1738
      %v1747 = vadd.bf16 %v1727, %v1739
      %v1748 = vadd.bf16 %v1728, %v1740
      %v1749 = vadd.bf16 %v1729, %v1741
      %v1750 = vadd.bf16 %v1730, %v1742
      %v1751 = vadd.bf16 %v1731, %v1743
      %v1752 = vadd.bf16 %v1732, %v1744
      %v1753 = vadd.bf16 %v1733, %v1745
      %v1754 = vlaneseq
      %v1755 = vshrl.u32 %v1754, 7
      %v1756 = vsub.s32 3, %v1755
      %v1757 = vrot.slane %v793, %v1756
      %v1758 = vmul.bf16 %v1645, %v1757
      %v1759 = vmul.bf16 %v1646, %v1757
      %v1760 = vmul.bf16 %v1647, %v1757
      %v1761 = vmul.bf16 %v1648, %v1757
      %v1762 = vmul.bf16 %v1649, %v1757
      %v1763 = vmul.bf16 %v1650, %v1757
      %v1764 = vmul.bf16 %v1651, %v1757
      %v1765 = vmul.bf16 %v1652, %v1757
      %v1766 = vadd.bf16 %v1746, %v1758
      %v1767 = vadd.bf16 %v1747, %v1759
      %v1768 = vadd.bf16 %v1748, %v1760
      %v1769 = vadd.bf16 %v1749, %v1761
      %v1770 = vadd.bf16 %v1750, %v1762
      %v1771 = vadd.bf16 %v1751, %v1763
      %v1772 = vadd.bf16 %v1752, %v1764
      %v1773 = vadd.bf16 %v1753, %v1765
      %v1774 = vlaneseq
      %v1775 = vshrl.u32 %v1774, 7
      %v1776 = vsub.s32 7, %v1775
      %v1777 = vrot.slane %v815, %v1776
      %v1778 = vmul.bf16 %v1646, %v1777
      %v1779 = vmul.bf16 %v1647, %v1777
      %v1780 = vmul.bf16 %v1648, %v1777
      %v1781 = vmul.bf16 %v1649, %v1777
      %v1782 = vmul.bf16 %v1650, %v1777
      %v1783 = vmul.bf16 %v1651, %v1777
      %v1784 = vmul.bf16 %v1652, %v1777
      %v1785 = vmul.bf16 %v1653, %v1777
      %v1786 = vadd.bf16 %v1766, %v1778
      %v1787 = vadd.bf16 %v1767, %v1779
      %v1788 = vadd.bf16 %v1768, %v1780
      %v1789 = vadd.bf16 %v1769, %v1781
      %v1790 = vadd.bf16 %v1770, %v1782
      %v1791 = vadd.bf16 %v1771, %v1783
      %v1792 = vadd.bf16 %v1772, %v1784
      %v1793 = vadd.bf16 %v1773, %v1785
      %v1794 = vunpack.c.l.bf16 %v1786
      %v1795 = vunpack.c.h.bf16 %v1786
      %v1796 = vunpack.c.l.bf16 %v1787
      %v1797 = vunpack.c.h.bf16 %v1787
      %v1798 = vunpack.c.l.bf16 %v1788
      %v1799 = vunpack.c.h.bf16 %v1788
      %v1800 = vunpack.c.l.bf16 %v1789
      %v1801 = vunpack.c.h.bf16 %v1789
      %v1802 = vunpack.c.l.bf16 %v1790
      %v1803 = vunpack.c.h.bf16 %v1790
      %v1804 = vunpack.c.l.bf16 %v1791
      %v1805 = vunpack.c.h.bf16 %v1791
      %v1806 = vunpack.c.l.bf16 %v1792
      %v1807 = vunpack.c.h.bf16 %v1792
      %v1808 = vunpack.c.l.bf16 %v1793
      %v1809 = vunpack.c.h.bf16 %v1793
      %v1810 = vadd.f32 %v1553, %v1794
      %v1811 = vadd.f32 %v1554, %v1795
      %v1812 = vadd.f32 %v1555, %v1796
      %v1813 = vadd.f32 %v1556, %v1797
      %v1814 = vadd.f32 %v1557, %v1798
      %v1815 = vadd.f32 %v1558, %v1799
      %v1816 = vadd.f32 %v1559, %v1800
      %v1817 = vadd.f32 %v1560, %v1801
      %v1818 = vadd.f32 %v1561, %v1802
      %v1819 = vadd.f32 %v1562, %v1803
      %v1820 = vadd.f32 %v1563, %v1804
      %v1821 = vadd.f32 %v1564, %v1805
      %v1822 = vadd.f32 %v1565, %v1806
      %v1823 = vadd.f32 %v1566, %v1807
      %v1824 = vadd.f32 %v1567, %v1808
      %v1825 = vadd.f32 %v1568, %v1809
      %v1826 = vrot.slane %v539, 2
      %v1827 = vrot.slane %v542, 2
      %v1828 = vrot.slane %v545, 2
      %v1829 = vrot.slane %v548, 2
      %v1830 = vrot.slane %v551, 2
      %v1831 = vrot.slane %v554, 2
      %v1832 = vrot.slane %v557, 2
      %v1833 = vrot.slane %v560, 2
      %v1834 = vrot.slane %v563, 2
      %v1835 = vrot.slane %v566, 2
      %v1836 = vrot.slane %v569, 2
      %v1837 = vrot.slane %v572, 2
      %v1838 = vrot.slane %v575, 2
      %v1839 = vrot.slane %v578, 2
      %v1840 = vrot.slane %v540, 2
      %v1841 = vrot.slane %v543, 2
      %v1842 = vrot.slane %v546, 2
      %v1843 = vrot.slane %v549, 2
      %v1844 = vrot.slane %v552, 2
      %v1845 = vrot.slane %v555, 2
      %v1846 = vrot.slane %v558, 2
      %v1847 = vrot.slane %v561, 2
      %v1848 = vrot.slane %v564, 2
      %v1849 = vrot.slane %v567, 2
      %v1850 = vrot.slane %v570, 2
      %v1851 = vrot.slane %v573, 2
      %v1852 = vrot.slane %v576, 2
      %v1853 = vrot.slane %v579, 2
      %v1854 = vrot.slane %v541, 2
      %v1855 = vrot.slane %v544, 2
      %v1856 = vrot.slane %v547, 2
      %v1857 = vrot.slane %v550, 2
      %v1858 = vrot.slane %v553, 2
      %v1859 = vrot.slane %v556, 2
      %v1860 = vrot.slane %v559, 2
      %v1861 = vrot.slane %v562, 2
      %v1862 = vrot.slane %v565, 2
      %v1863 = vrot.slane %v568, 2
      %v1864 = vrot.slane %v571, 2
      %v1865 = vrot.slane %v574, 2
      %v1866 = vrot.slane %v577, 2
      %v1867 = vrot.slane %v580, 2
      %vm1868 = vcmp.lt.s32.totalorder %v635, 6
      %v1869 = vsel %vm1868, %v1840, %v1854
      %v1870 = vsel %vm1868, %v1841, %v1855
      %v1871 = vsel %vm1868, %v1842, %v1856
      %v1872 = vsel %vm1868, %v1843, %v1857
      %v1873 = vsel %vm1868, %v1844, %v1858
      %v1874 = vsel %vm1868, %v1845, %v1859
      %v1875 = vsel %vm1868, %v1846, %v1860
      %v1876 = vsel %vm1868, %v1847, %v1861
      %v1877 = vsel %vm1868, %v1848, %v1862
      %v1878 = vsel %vm1868, %v1849, %v1863
      %v1879 = vsel %vm1868, %v1850, %v1864
      %v1880 = vsel %vm1868, %v1851, %v1865
      %v1881 = vsel %vm1868, %v1852, %v1866
      %v1882 = vsel %vm1868, %v1853, %v1867
      %v1883 = vsel %vm1868, %v1826, %v1840
      %v1884 = vsel %vm1868, %v1827, %v1841
      %v1885 = vsel %vm1868, %v1828, %v1842
      %v1886 = vsel %vm1868, %v1829, %v1843
      %v1887 = vsel %vm1868, %v1830, %v1844
      %v1888 = vsel %vm1868, %v1831, %v1845
      %v1889 = vsel %vm1868, %v1832, %v1846
      %v1890 = vsel %vm1868, %v1833, %v1847
      %v1891 = vsel %vm1868, %v1834, %v1848
      %v1892 = vsel %vm1868, %v1835, %v1849
      %v1893 = vsel %vm1868, %v1836, %v1850
      %v1894 = vsel %vm1868, %v1837, %v1851
      %v1895 = vsel %vm1868, %v1838, %v1852
      %v1896 = vsel %vm1868, %v1839, %v1853
      %v1897 = vpack.c.bf16 %v1869, %v1883
      %v1898 = vpack.c.bf16 %v1870, %v1884
      %v1899 = vpack.c.bf16 %v1871, %v1885
      %v1900 = vpack.c.bf16 %v1872, %v1886
      %v1901 = vpack.c.bf16 %v1873, %v1887
      %v1902 = vpack.c.bf16 %v1874, %v1888
      %v1903 = vpack.c.bf16 %v1875, %v1889
      %v1904 = vpack.c.bf16 %v1876, %v1890
      %v1905 = vpack.c.bf16 %v1877, %v1891
      %v1906 = vpack.c.bf16 %v1878, %v1892
      %v1907 = vpack.c.bf16 %v1879, %v1893
      %v1908 = vpack.c.bf16 %v1880, %v1894
      %v1909 = vpack.c.bf16 %v1881, %v1895
      %v1910 = vpack.c.bf16 %v1882, %v1896
      %v1911 = vlaneseq
      %v1912 = vshrl.u32 %v1911, 7
      %v1913 = vsub.s32 2, %v1912
      %v1914 = vrot.slane %v703, %v1913
      %v1915 = vmul.bf16 %v1897, %v1914
      %v1916 = vmul.bf16 %v1898, %v1914
      %v1917 = vmul.bf16 %v1899, %v1914
      %v1918 = vmul.bf16 %v1900, %v1914
      %v1919 = vmul.bf16 %v1901, %v1914
      %v1920 = vmul.bf16 %v1902, %v1914
      %v1921 = vmul.bf16 %v1903, %v1914
      %v1922 = vmul.bf16 %v1904, %v1914
      %v1923 = vadd.bf16 %v1915, 0
      %v1924 = vadd.bf16 %v1916, 0
      %v1925 = vadd.bf16 %v1917, 0
      %v1926 = vadd.bf16 %v1918, 0
      %v1927 = vadd.bf16 %v1919, 0
      %v1928 = vadd.bf16 %v1920, 0
      %v1929 = vadd.bf16 %v1921, 0
      %v1930 = vadd.bf16 %v1922, 0
      %v1931 = vlaneseq
      %v1932 = vshrl.u32 %v1931, 7
      %v1933 = vsub.s32 6, %v1932
      %v1934 = vrot.slane %v680, %v1933
      %v1935 = vmul.bf16 %v1898, %v1934
      %v1936 = vmul.bf16 %v1899, %v1934
      %v1937 = vmul.bf16 %v1900, %v1934
      %v1938 = vmul.bf16 %v1901, %v1934
      %v1939 = vmul.bf16 %v1902, %v1934
      %v1940 = vmul.bf16 %v1903, %v1934
      %v1941 = vmul.bf16 %v1904, %v1934
      %v1942 = vmul.bf16 %v1905, %v1934
      %v1943 = vadd.bf16 %v1923, %v1935
      %v1944 = vadd.bf16 %v1924, %v1936
      %v1945 = vadd.bf16 %v1925, %v1937
      %v1946 = vadd.bf16 %v1926, %v1938
      %v1947 = vadd.bf16 %v1927, %v1939
      %v1948 = vadd.bf16 %v1928, %v1940
      %v1949 = vadd.bf16 %v1929, %v1941
      %v1950 = vadd.bf16 %v1930, %v1942
      %v1951 = vlaneseq
      %v1952 = vshrl.u32 %v1951, 7
      %v1953 = vsub.s32 1, %v1952
      %v1954 = vrot.slane %v747, %v1953
      %v1955 = vmul.bf16 %v1899, %v1954
      %v1956 = vmul.bf16 %v1900, %v1954
      %v1957 = vmul.bf16 %v1901, %v1954
      %v1958 = vmul.bf16 %v1902, %v1954
      %v1959 = vmul.bf16 %v1903, %v1954
      %v1960 = vmul.bf16 %v1904, %v1954
      %v1961 = vmul.bf16 %v1905, %v1954
      %v1962 = vmul.bf16 %v1906, %v1954
      %v1963 = vadd.bf16 %v1943, %v1955
      %v1964 = vadd.bf16 %v1944, %v1956
      %v1965 = vadd.bf16 %v1945, %v1957
      %v1966 = vadd.bf16 %v1946, %v1958
      %v1967 = vadd.bf16 %v1947, %v1959
      %v1968 = vadd.bf16 %v1948, %v1960
      %v1969 = vadd.bf16 %v1949, %v1961
      %v1970 = vadd.bf16 %v1950, %v1962
      %v1971 = vlaneseq
      %v1972 = vshrl.u32 %v1971, 7
      %v1973 = vsub.s32 5, %v1972
      %v1974 = vrot.slane %v769, %v1973
      %v1975 = vmul.bf16 %v1900, %v1974
      %v1976 = vmul.bf16 %v1901, %v1974
      %v1977 = vmul.bf16 %v1902, %v1974
      %v1978 = vmul.bf16 %v1903, %v1974
      %v1979 = vmul.bf16 %v1904, %v1974
      %v1980 = vmul.bf16 %v1905, %v1974
      %v1981 = vmul.bf16 %v1906, %v1974
      %v1982 = vmul.bf16 %v1907, %v1974
      %v1983 = vadd.bf16 %v1963, %v1975
      %v1984 = vadd.bf16 %v1964, %v1976
      %v1985 = vadd.bf16 %v1965, %v1977
      %v1986 = vadd.bf16 %v1966, %v1978
      %v1987 = vadd.bf16 %v1967, %v1979
      %v1988 = vadd.bf16 %v1968, %v1980
      %v1989 = vadd.bf16 %v1969, %v1981
      %v1990 = vadd.bf16 %v1970, %v1982
      %v1991 = vlaneseq
      %v1992 = vshrl.u32 %v1991, 7
      %v1993 = vsub.s32 0, %v1992
      %v1994 = vrot.slane %v793, %v1993
      %v1995 = vmul.bf16 %v1901, %v1994
      %v1996 = vmul.bf16 %v1902, %v1994
      %v1997 = vmul.bf16 %v1903, %v1994
      %v1998 = vmul.bf16 %v1904, %v1994
      %v1999 = vmul.bf16 %v1905, %v1994
      %v2000 = vmul.bf16 %v1906, %v1994
      %v2001 = vmul.bf16 %v1907, %v1994
      %v2002 = vmul.bf16 %v1908, %v1994
      %v2003 = vadd.bf16 %v1983, %v1995
      %v2004 = vadd.bf16 %v1984, %v1996
      %v2005 = vadd.bf16 %v1985, %v1997
      %v2006 = vadd.bf16 %v1986, %v1998
      %v2007 = vadd.bf16 %v1987, %v1999
      %v2008 = vadd.bf16 %v1988, %v2000
      %v2009 = vadd.bf16 %v1989, %v2001
      %v2010 = vadd.bf16 %v1990, %v2002
      %v2011 = vlaneseq
      %v2012 = vshrl.u32 %v2011, 7
      %v2013 = vsub.s32 4, %v2012
      %v2014 = vrot.slane %v815, %v2013
      %v2015 = vmul.bf16 %v1902, %v2014
      %v2016 = vmul.bf16 %v1903, %v2014
      %v2017 = vmul.bf16 %v1904, %v2014
      %v2018 = vmul.bf16 %v1905, %v2014
      %v2019 = vmul.bf16 %v1906, %v2014
      %v2020 = vmul.bf16 %v1907, %v2014
      %v2021 = vmul.bf16 %v1908, %v2014
      %v2022 = vmul.bf16 %v1909, %v2014
      %v2023 = vadd.bf16 %v2003, %v2015
      %v2024 = vadd.bf16 %v2004, %v2016
      %v2025 = vadd.bf16 %v2005, %v2017
      %v2026 = vadd.bf16 %v2006, %v2018
      %v2027 = vadd.bf16 %v2007, %v2019
      %v2028 = vadd.bf16 %v2008, %v2020
      %v2029 = vadd.bf16 %v2009, %v2021
      %v2030 = vadd.bf16 %v2010, %v2022
      %v2031 = vlaneseq
      %v2032 = vshrl.u32 %v2031, 7
      %v2033 = vsub.s32 7, %v2032
      %v2034 = vrot.slane %v793, %v2033
      %v2035 = vmul.bf16 %v1903, %v2034
      %v2036 = vmul.bf16 %v1904, %v2034
      %v2037 = vmul.bf16 %v1905, %v2034
      %v2038 = vmul.bf16 %v1906, %v2034
      %v2039 = vmul.bf16 %v1907, %v2034
      %v2040 = vmul.bf16 %v1908, %v2034
      %v2041 = vmul.bf16 %v1909, %v2034
      %v2042 = vmul.bf16 %v1910, %v2034
      %v2043 = vadd.bf16 %v2023, %v2035
      %v2044 = vadd.bf16 %v2024, %v2036
      %v2045 = vadd.bf16 %v2025, %v2037
      %v2046 = vadd.bf16 %v2026, %v2038
      %v2047 = vadd.bf16 %v2027, %v2039
      %v2048 = vadd.bf16 %v2028, %v2040
      %v2049 = vadd.bf16 %v2029, %v2041
      %v2050 = vadd.bf16 %v2030, %v2042
      %v2051 = vunpack.c.l.bf16 %v2043
      %v2052 = vunpack.c.h.bf16 %v2043
      %v2053 = vunpack.c.l.bf16 %v2044
      %v2054 = vunpack.c.h.bf16 %v2044
      %v2055 = vunpack.c.l.bf16 %v2045
      %v2056 = vunpack.c.h.bf16 %v2045
      %v2057 = vunpack.c.l.bf16 %v2046
      %v2058 = vunpack.c.h.bf16 %v2046
      %v2059 = vunpack.c.l.bf16 %v2047
      %v2060 = vunpack.c.h.bf16 %v2047
      %v2061 = vunpack.c.l.bf16 %v2048
      %v2062 = vunpack.c.h.bf16 %v2048
      %v2063 = vunpack.c.l.bf16 %v2049
      %v2064 = vunpack.c.h.bf16 %v2049
      %v2065 = vunpack.c.l.bf16 %v2050
      %v2066 = vunpack.c.h.bf16 %v2050
      %v2067 = vadd.f32 %v1810, %v2051
      %v2068 = vadd.f32 %v1811, %v2052
      %v2069 = vadd.f32 %v1812, %v2053
      %v2070 = vadd.f32 %v1813, %v2054
      %v2071 = vadd.f32 %v1814, %v2055
      %v2072 = vadd.f32 %v1815, %v2056
      %v2073 = vadd.f32 %v1816, %v2057
      %v2074 = vadd.f32 %v1817, %v2058
      %v2075 = vadd.f32 %v1818, %v2059
      %v2076 = vadd.f32 %v1819, %v2060
      %v2077 = vadd.f32 %v1820, %v2061
      %v2078 = vadd.f32 %v1821, %v2062
      %v2079 = vadd.f32 %v1822, %v2063
      %v2080 = vadd.f32 %v1823, %v2064
      %v2081 = vadd.f32 %v1824, %v2065
      %v2082 = vadd.f32 %v1825, %v2066
      %v2083 = vrot.slane %v539, 3
      %v2084 = vrot.slane %v542, 3
      %v2085 = vrot.slane %v545, 3
      %v2086 = vrot.slane %v548, 3
      %v2087 = vrot.slane %v551, 3
      %v2088 = vrot.slane %v554, 3
      %v2089 = vrot.slane %v557, 3
      %v2090 = vrot.slane %v560, 3
      %v2091 = vrot.slane %v563, 3
      %v2092 = vrot.slane %v566, 3
      %v2093 = vrot.slane %v569, 3
      %v2094 = vrot.slane %v572, 3
      %v2095 = vrot.slane %v575, 3
      %v2096 = vrot.slane %v578, 3
      %v2097 = vrot.slane %v540, 3
      %v2098 = vrot.slane %v543, 3
      %v2099 = vrot.slane %v546, 3
      %v2100 = vrot.slane %v549, 3
      %v2101 = vrot.slane %v552, 3
      %v2102 = vrot.slane %v555, 3
      %v2103 = vrot.slane %v558, 3
      %v2104 = vrot.slane %v561, 3
      %v2105 = vrot.slane %v564, 3
      %v2106 = vrot.slane %v567, 3
      %v2107 = vrot.slane %v570, 3
      %v2108 = vrot.slane %v573, 3
      %v2109 = vrot.slane %v576, 3
      %v2110 = vrot.slane %v579, 3
      %v2111 = vrot.slane %v541, 3
      %v2112 = vrot.slane %v544, 3
      %v2113 = vrot.slane %v547, 3
      %v2114 = vrot.slane %v550, 3
      %v2115 = vrot.slane %v553, 3
      %v2116 = vrot.slane %v556, 3
      %v2117 = vrot.slane %v559, 3
      %v2118 = vrot.slane %v562, 3
      %v2119 = vrot.slane %v565, 3
      %v2120 = vrot.slane %v568, 3
      %v2121 = vrot.slane %v571, 3
      %v2122 = vrot.slane %v574, 3
      %v2123 = vrot.slane %v577, 3
      %v2124 = vrot.slane %v580, 3
      %vm2125 = vcmp.lt.s32.totalorder %v635, 5
      %v2126 = vsel %vm2125, %v2097, %v2111
      %v2127 = vsel %vm2125, %v2098, %v2112
      %v2128 = vsel %vm2125, %v2099, %v2113
      %v2129 = vsel %vm2125, %v2100, %v2114
      %v2130 = vsel %vm2125, %v2101, %v2115
      %v2131 = vsel %vm2125, %v2102, %v2116
      %v2132 = vsel %vm2125, %v2103, %v2117
      %v2133 = vsel %vm2125, %v2104, %v2118
      %v2134 = vsel %vm2125, %v2105, %v2119
      %v2135 = vsel %vm2125, %v2106, %v2120
      %v2136 = vsel %vm2125, %v2107, %v2121
      %v2137 = vsel %vm2125, %v2108, %v2122
      %v2138 = vsel %vm2125, %v2109, %v2123
      %v2139 = vsel %vm2125, %v2110, %v2124
      %v2140 = vsel %vm2125, %v2083, %v2097
      %v2141 = vsel %vm2125, %v2084, %v2098
      %v2142 = vsel %vm2125, %v2085, %v2099
      %v2143 = vsel %vm2125, %v2086, %v2100
      %v2144 = vsel %vm2125, %v2087, %v2101
      %v2145 = vsel %vm2125, %v2088, %v2102
      %v2146 = vsel %vm2125, %v2089, %v2103
      %v2147 = vsel %vm2125, %v2090, %v2104
      %v2148 = vsel %vm2125, %v2091, %v2105
      %v2149 = vsel %vm2125, %v2092, %v2106
      %v2150 = vsel %vm2125, %v2093, %v2107
      %v2151 = vsel %vm2125, %v2094, %v2108
      %v2152 = vsel %vm2125, %v2095, %v2109
      %v2153 = vsel %vm2125, %v2096, %v2110
      %v2154 = vpack.c.bf16 %v2126, %v2140
      %v2155 = vpack.c.bf16 %v2127, %v2141
      %v2156 = vpack.c.bf16 %v2128, %v2142
      %v2157 = vpack.c.bf16 %v2129, %v2143
      %v2158 = vpack.c.bf16 %v2130, %v2144
      %v2159 = vpack.c.bf16 %v2131, %v2145
      %v2160 = vpack.c.bf16 %v2132, %v2146
      %v2161 = vpack.c.bf16 %v2133, %v2147
      %v2162 = vpack.c.bf16 %v2134, %v2148
      %v2163 = vpack.c.bf16 %v2135, %v2149
      %v2164 = vpack.c.bf16 %v2136, %v2150
      %v2165 = vpack.c.bf16 %v2137, %v2151
      %v2166 = vpack.c.bf16 %v2138, %v2152
      %v2167 = vpack.c.bf16 %v2139, %v2153
      %v2168 = vlaneseq
      %v2169 = vshrl.u32 %v2168, 7
      %v2170 = vsub.s32 3, %v2169
      %v2171 = vrot.slane %v680, %v2170
      %v2172 = vmul.bf16 %v2154, %v2171
      %v2173 = vmul.bf16 %v2155, %v2171
      %v2174 = vmul.bf16 %v2156, %v2171
      %v2175 = vmul.bf16 %v2157, %v2171
      %v2176 = vmul.bf16 %v2158, %v2171
      %v2177 = vmul.bf16 %v2159, %v2171
      %v2178 = vmul.bf16 %v2160, %v2171
      %v2179 = vmul.bf16 %v2161, %v2171
      %v2180 = vadd.bf16 %v2172, 0
      %v2181 = vadd.bf16 %v2173, 0
      %v2182 = vadd.bf16 %v2174, 0
      %v2183 = vadd.bf16 %v2175, 0
      %v2184 = vadd.bf16 %v2176, 0
      %v2185 = vadd.bf16 %v2177, 0
      %v2186 = vadd.bf16 %v2178, 0
      %v2187 = vadd.bf16 %v2179, 0
      %v2188 = vlaneseq
      %v2189 = vshrl.u32 %v2188, 7
      %v2190 = vsub.s32 6, %v2189
      %v2191 = vrot.slane %v703, %v2190
      %v2192 = vmul.bf16 %v2155, %v2191
      %v2193 = vmul.bf16 %v2156, %v2191
      %v2194 = vmul.bf16 %v2157, %v2191
      %v2195 = vmul.bf16 %v2158, %v2191
      %v2196 = vmul.bf16 %v2159, %v2191
      %v2197 = vmul.bf16 %v2160, %v2191
      %v2198 = vmul.bf16 %v2161, %v2191
      %v2199 = vmul.bf16 %v2162, %v2191
      %v2200 = vadd.bf16 %v2180, %v2192
      %v2201 = vadd.bf16 %v2181, %v2193
      %v2202 = vadd.bf16 %v2182, %v2194
      %v2203 = vadd.bf16 %v2183, %v2195
      %v2204 = vadd.bf16 %v2184, %v2196
      %v2205 = vadd.bf16 %v2185, %v2197
      %v2206 = vadd.bf16 %v2186, %v2198
      %v2207 = vadd.bf16 %v2187, %v2199
      %v2208 = vlaneseq
      %v2209 = vshrl.u32 %v2208, 7
      %v2210 = vsub.s32 2, %v2209
      %v2211 = vrot.slane %v769, %v2210
      %v2212 = vmul.bf16 %v2156, %v2211
      %v2213 = vmul.bf16 %v2157, %v2211
      %v2214 = vmul.bf16 %v2158, %v2211
      %v2215 = vmul.bf16 %v2159, %v2211
      %v2216 = vmul.bf16 %v2160, %v2211
      %v2217 = vmul.bf16 %v2161, %v2211
      %v2218 = vmul.bf16 %v2162, %v2211
      %v2219 = vmul.bf16 %v2163, %v2211
      %v2220 = vadd.bf16 %v2200, %v2212
      %v2221 = vadd.bf16 %v2201, %v2213
      %v2222 = vadd.bf16 %v2202, %v2214
      %v2223 = vadd.bf16 %v2203, %v2215
      %v2224 = vadd.bf16 %v2204, %v2216
      %v2225 = vadd.bf16 %v2205, %v2217
      %v2226 = vadd.bf16 %v2206, %v2218
      %v2227 = vadd.bf16 %v2207, %v2219
      %v2228 = vlaneseq
      %v2229 = vshrl.u32 %v2228, 7
      %v2230 = vsub.s32 5, %v2229
      %v2231 = vrot.slane %v747, %v2230
      %v2232 = vmul.bf16 %v2157, %v2231
      %v2233 = vmul.bf16 %v2158, %v2231
      %v2234 = vmul.bf16 %v2159, %v2231
      %v2235 = vmul.bf16 %v2160, %v2231
      %v2236 = vmul.bf16 %v2161, %v2231
      %v2237 = vmul.bf16 %v2162, %v2231
      %v2238 = vmul.bf16 %v2163, %v2231
      %v2239 = vmul.bf16 %v2164, %v2231
      %v2240 = vadd.bf16 %v2220, %v2232
      %v2241 = vadd.bf16 %v2221, %v2233
      %v2242 = vadd.bf16 %v2222, %v2234
      %v2243 = vadd.bf16 %v2223, %v2235
      %v2244 = vadd.bf16 %v2224, %v2236
      %v2245 = vadd.bf16 %v2225, %v2237
      %v2246 = vadd.bf16 %v2226, %v2238
      %v2247 = vadd.bf16 %v2227, %v2239
      %v2248 = vlaneseq
      %v2249 = vshrl.u32 %v2248, 7
      %v2250 = vsub.s32 1, %v2249
      %v2251 = vrot.slane %v815, %v2250
      %v2252 = vmul.bf16 %v2158, %v2251
      %v2253 = vmul.bf16 %v2159, %v2251
      %v2254 = vmul.bf16 %v2160, %v2251
      %v2255 = vmul.bf16 %v2161, %v2251
      %v2256 = vmul.bf16 %v2162, %v2251
      %v2257 = vmul.bf16 %v2163, %v2251
      %v2258 = vmul.bf16 %v2164, %v2251
      %v2259 = vmul.bf16 %v2165, %v2251
      %v2260 = vadd.bf16 %v2240, %v2252
      %v2261 = vadd.bf16 %v2241, %v2253
      %v2262 = vadd.bf16 %v2242, %v2254
      %v2263 = vadd.bf16 %v2243, %v2255
      %v2264 = vadd.bf16 %v2244, %v2256
      %v2265 = vadd.bf16 %v2245, %v2257
      %v2266 = vadd.bf16 %v2246, %v2258
      %v2267 = vadd.bf16 %v2247, %v2259
      %v2268 = vlaneseq
      %v2269 = vshrl.u32 %v2268, 7
      %v2270 = vsub.s32 4, %v2269
      %v2271 = vrot.slane %v793, %v2270
      %v2272 = vmul.bf16 %v2159, %v2271
      %v2273 = vmul.bf16 %v2160, %v2271
      %v2274 = vmul.bf16 %v2161, %v2271
      %v2275 = vmul.bf16 %v2162, %v2271
      %v2276 = vmul.bf16 %v2163, %v2271
      %v2277 = vmul.bf16 %v2164, %v2271
      %v2278 = vmul.bf16 %v2165, %v2271
      %v2279 = vmul.bf16 %v2166, %v2271
      %v2280 = vadd.bf16 %v2260, %v2272
      %v2281 = vadd.bf16 %v2261, %v2273
      %v2282 = vadd.bf16 %v2262, %v2274
      %v2283 = vadd.bf16 %v2263, %v2275
      %v2284 = vadd.bf16 %v2264, %v2276
      %v2285 = vadd.bf16 %v2265, %v2277
      %v2286 = vadd.bf16 %v2266, %v2278
      %v2287 = vadd.bf16 %v2267, %v2279
      %v2289 = vpack.i.b16 %v591, %v591
      %v2291 = vlaneseq
      %v2292 = vshrl.u32 %v2291, 7
      %v2293 = vsub.s32 0, %v2292
      %v2294 = vrot.slane %v2289, %v2293
      %v2295 = vmul.bf16 %v2160, %v2294
      %v2296 = vmul.bf16 %v2161, %v2294
      %v2297 = vmul.bf16 %v2162, %v2294
      %v2298 = vmul.bf16 %v2163, %v2294
      %v2299 = vmul.bf16 %v2164, %v2294
      %v2300 = vmul.bf16 %v2165, %v2294
      %v2301 = vmul.bf16 %v2166, %v2294
      %v2302 = vmul.bf16 %v2167, %v2294
      %v2303 = vadd.bf16 %v2280, %v2295
      %v2304 = vadd.bf16 %v2281, %v2296
      %v2305 = vadd.bf16 %v2282, %v2297
      %v2306 = vadd.bf16 %v2283, %v2298
      %v2307 = vadd.bf16 %v2284, %v2299
      %v2308 = vadd.bf16 %v2285, %v2300
      %v2309 = vadd.bf16 %v2286, %v2301
      %v2310 = vadd.bf16 %v2287, %v2302
      %v2311 = vunpack.c.l.bf16 %v2303
      %v2312 = vunpack.c.h.bf16 %v2303
      %v2313 = vunpack.c.l.bf16 %v2304
      %v2314 = vunpack.c.h.bf16 %v2304
      %v2315 = vunpack.c.l.bf16 %v2305
      %v2316 = vunpack.c.h.bf16 %v2305
      %v2317 = vunpack.c.l.bf16 %v2306
      %v2318 = vunpack.c.h.bf16 %v2306
      %v2319 = vunpack.c.l.bf16 %v2307
      %v2320 = vunpack.c.h.bf16 %v2307
      %v2321 = vunpack.c.l.bf16 %v2308
      %v2322 = vunpack.c.h.bf16 %v2308
      %v2323 = vunpack.c.l.bf16 %v2309
      %v2324 = vunpack.c.h.bf16 %v2309
      %v2325 = vunpack.c.l.bf16 %v2310
      %v2326 = vunpack.c.h.bf16 %v2310
      %v2327 = vadd.f32 %v2067, %v2311
      %v2328 = vadd.f32 %v2068, %v2312
      %v2329 = vadd.f32 %v2069, %v2313
      %v2330 = vadd.f32 %v2070, %v2314
      %v2331 = vadd.f32 %v2071, %v2315
      %v2332 = vadd.f32 %v2072, %v2316
      %v2333 = vadd.f32 %v2073, %v2317
      %v2334 = vadd.f32 %v2074, %v2318
      %v2335 = vadd.f32 %v2075, %v2319
      %v2336 = vadd.f32 %v2076, %v2320
      %v2337 = vadd.f32 %v2077, %v2321
      %v2338 = vadd.f32 %v2078, %v2322
      %v2339 = vadd.f32 %v2079, %v2323
      %v2340 = vadd.f32 %v2080, %v2324
      %v2341 = vadd.f32 %v2081, %v2325
      %v2342 = vadd.f32 %v2082, %v2326
      %v2343 = vld [vmem:[%s3] sm:$0x1]
      %v2345 = vlaneseq
      %v2346 = vshrl.u32 %v2345, 7
      %v2347 = vsub.s32 0, %v2346
      %v2348 = vrot.slane %v2343, %v2347
      %v2350 = vadd.f32 %v2327, %v2348
      %v2351 = vadd.f32 %v2328, %v2348
      %v2352 = vadd.f32 %v2329, %v2348
      %v2353 = vadd.f32 %v2330, %v2348
      %v2354 = vadd.f32 %v2331, %v2348
      %v2355 = vadd.f32 %v2332, %v2348
      %v2356 = vadd.f32 %v2333, %v2348
      %v2357 = vadd.f32 %v2334, %v2348
      %v2358 = vadd.f32 %v2335, %v2348
      %v2359 = vadd.f32 %v2336, %v2348
      %v2360 = vadd.f32 %v2337, %v2348
      %v2361 = vadd.f32 %v2338, %v2348
      %v2362 = vadd.f32 %v2339, %v2348
      %v2363 = vadd.f32 %v2340, %v2348
      %v2364 = vadd.f32 %v2341, %v2348
      %v2365 = vadd.f32 %v2342, %v2348
      %v2366 = vsel %vm494, %v2350, 0.0
      %2367 = vadd.xlane.f32.xlu0 %v2366
      %v2368 = vpop.xlane.xlu0 %2367
      %v2369 = vsel %vm494, %v2351, 0.0
      %2370 = vadd.xlane.f32.xlu0 %v2369
      %v2371 = vpop.xlane.xlu0 %2370
      %v2372 = vsel %vm494, %v2352, 0.0
      %2373 = vadd.xlane.f32.xlu0 %v2372
      %v2374 = vpop.xlane.xlu0 %2373
      %v2375 = vsel %vm494, %v2353, 0.0
      %2376 = vadd.xlane.f32.xlu0 %v2375
      %v2377 = vpop.xlane.xlu0 %2376
      %v2378 = vsel %vm494, %v2354, 0.0
      %2379 = vadd.xlane.f32.xlu0 %v2378
      %v2380 = vpop.xlane.xlu0 %2379
      %v2381 = vsel %vm494, %v2355, 0.0
      %2382 = vadd.xlane.f32.xlu0 %v2381
      %v2383 = vpop.xlane.xlu0 %2382
      %v2384 = vsel %vm494, %v2356, 0.0
      %2385 = vadd.xlane.f32.xlu0 %v2384
      %v2386 = vpop.xlane.xlu0 %2385
      %v2387 = vsel %vm494, %v2357, 0.0
      %2388 = vadd.xlane.f32.xlu0 %v2387
      %v2389 = vpop.xlane.xlu0 %2388
      %v2390 = vsel %vm494, %v2358, 0.0
      %2391 = vadd.xlane.f32.xlu0 %v2390
      %v2392 = vpop.xlane.xlu0 %2391
      %v2393 = vsel %vm494, %v2359, 0.0
      %2394 = vadd.xlane.f32.xlu0 %v2393
      %v2395 = vpop.xlane.xlu0 %2394
      %v2396 = vsel %vm494, %v2360, 0.0
      %2397 = vadd.xlane.f32.xlu0 %v2396
      %v2398 = vpop.xlane.xlu0 %2397
      %v2399 = vsel %vm494, %v2361, 0.0
      %2400 = vadd.xlane.f32.xlu0 %v2399
      %v2401 = vpop.xlane.xlu0 %2400
      %v2402 = vsel %vm494, %v2362, 0.0
      %2403 = vadd.xlane.f32.xlu0 %v2402
      %v2404 = vpop.xlane.xlu0 %2403
      %v2405 = vsel %vm494, %v2363, 0.0
      %2406 = vadd.xlane.f32.xlu0 %v2405
      %v2407 = vpop.xlane.xlu0 %2406
      %v2408 = vsel %vm494, %v2364, 0.0
      %2409 = vadd.xlane.f32.xlu0 %v2408
      %v2410 = vpop.xlane.xlu0 %2409
      %v2411 = vsel %vm494, %v2365, 0.0
      %2412 = vadd.xlane.f32.xlu0 %v2411
      %v2413 = vpop.xlane.xlu0 %2412
      %v2414 = vrcp.pop 4.0
      %v2415 = vmul.f32 %v2368, %v2414
      %v2416 = vmul.f32 %v2371, %v2414
      %v2417 = vmul.f32 %v2374, %v2414
      %v2418 = vmul.f32 %v2377, %v2414
      %v2419 = vmul.f32 %v2380, %v2414
      %v2420 = vmul.f32 %v2383, %v2414
      %v2421 = vmul.f32 %v2386, %v2414
      %v2422 = vmul.f32 %v2389, %v2414
      %v2423 = vmul.f32 %v2392, %v2414
      %v2424 = vmul.f32 %v2395, %v2414
      %v2425 = vmul.f32 %v2398, %v2414
      %v2426 = vmul.f32 %v2401, %v2414
      %v2427 = vmul.f32 %v2404, %v2414
      %v2428 = vmul.f32 %v2407, %v2414
      %v2429 = vmul.f32 %v2410, %v2414
      %v2430 = vmul.f32 %v2413, %v2414
      %v2431 = vsub.f32 %v2350, %v2415
      %v2432 = vsub.f32 %v2351, %v2416
      %v2433 = vsub.f32 %v2352, %v2417
      %v2434 = vsub.f32 %v2353, %v2418
      %v2435 = vsub.f32 %v2354, %v2419
      %v2436 = vsub.f32 %v2355, %v2420
      %v2437 = vsub.f32 %v2356, %v2421
      %v2438 = vsub.f32 %v2357, %v2422
      %v2439 = vsub.f32 %v2358, %v2423
      %v2440 = vsub.f32 %v2359, %v2424
      %v2441 = vsub.f32 %v2360, %v2425
      %v2442 = vsub.f32 %v2361, %v2426
      %v2443 = vsub.f32 %v2362, %v2427
      %v2444 = vsub.f32 %v2363, %v2428
      %v2445 = vsub.f32 %v2364, %v2429
      %v2446 = vsub.f32 %v2365, %v2430
      %v2447 = vmul.f32 %v2431, %v2431
      %v2448 = vmul.f32 %v2432, %v2432
      %v2449 = vmul.f32 %v2433, %v2433
      %v2450 = vmul.f32 %v2434, %v2434
      %v2451 = vmul.f32 %v2435, %v2435
      %v2452 = vmul.f32 %v2436, %v2436
      %v2453 = vmul.f32 %v2437, %v2437
      %v2454 = vmul.f32 %v2438, %v2438
      %v2455 = vmul.f32 %v2439, %v2439
      %v2456 = vmul.f32 %v2440, %v2440
      %v2457 = vmul.f32 %v2441, %v2441
      %v2458 = vmul.f32 %v2442, %v2442
      %v2459 = vmul.f32 %v2443, %v2443
      %v2460 = vmul.f32 %v2444, %v2444
      %v2461 = vmul.f32 %v2445, %v2445
      %v2462 = vmul.f32 %v2446, %v2446
      %v2463 = vsel %vm494, %v2447, 0.0
      %2464 = vadd.xlane.f32.xlu0 %v2463
      %v2465 = vpop.xlane.xlu0 %2464
      %v2466 = vsel %vm494, %v2448, 0.0
      %2467 = vadd.xlane.f32.xlu0 %v2466
      %v2468 = vpop.xlane.xlu0 %2467
      %v2469 = vsel %vm494, %v2449, 0.0
      %2470 = vadd.xlane.f32.xlu0 %v2469
      %v2471 = vpop.xlane.xlu0 %2470
      %v2472 = vsel %vm494, %v2450, 0.0
      %2473 = vadd.xlane.f32.xlu0 %v2472
      %v2474 = vpop.xlane.xlu0 %2473
      %v2475 = vsel %vm494, %v2451, 0.0
      %2476 = vadd.xlane.f32.xlu0 %v2475
      %v2477 = vpop.xlane.xlu0 %2476
      %v2478 = vsel %vm494, %v2452, 0.0
      %2479 = vadd.xlane.f32.xlu0 %v2478
      %v2480 = vpop.xlane.xlu0 %2479
      %v2481 = vsel %vm494, %v2453, 0.0
      %2482 = vadd.xlane.f32.xlu0 %v2481
      %v2483 = vpop.xlane.xlu0 %2482
      %v2484 = vsel %vm494, %v2454, 0.0
      %2485 = vadd.xlane.f32.xlu0 %v2484
      %v2486 = vpop.xlane.xlu0 %2485
      %v2487 = vsel %vm494, %v2455, 0.0
      %2488 = vadd.xlane.f32.xlu0 %v2487
      %v2489 = vpop.xlane.xlu0 %2488
      %v2490 = vsel %vm494, %v2456, 0.0
      %2491 = vadd.xlane.f32.xlu0 %v2490
      %v2492 = vpop.xlane.xlu0 %2491
      %v2493 = vsel %vm494, %v2457, 0.0
      %2494 = vadd.xlane.f32.xlu0 %v2493
      %v2495 = vpop.xlane.xlu0 %2494
      %v2496 = vsel %vm494, %v2458, 0.0
      %2497 = vadd.xlane.f32.xlu0 %v2496
      %v2498 = vpop.xlane.xlu0 %2497
      %v2499 = vsel %vm494, %v2459, 0.0
      %2500 = vadd.xlane.f32.xlu0 %v2499
      %v2501 = vpop.xlane.xlu0 %2500
      %v2502 = vsel %vm494, %v2460, 0.0
      %2503 = vadd.xlane.f32.xlu0 %v2502
      %v2504 = vpop.xlane.xlu0 %2503
      %v2505 = vsel %vm494, %v2461, 0.0
      %2506 = vadd.xlane.f32.xlu0 %v2505
      %v2507 = vpop.xlane.xlu0 %2506
      %v2508 = vsel %vm494, %v2462, 0.0
      %2509 = vadd.xlane.f32.xlu0 %v2508
      %v2510 = vpop.xlane.xlu0 %2509
      %v2511 = vmul.f32 %v2465, %v2414
      %v2512 = vmul.f32 %v2468, %v2414
      %v2513 = vmul.f32 %v2471, %v2414
      %v2514 = vmul.f32 %v2474, %v2414
      %v2515 = vmul.f32 %v2477, %v2414
      %v2516 = vmul.f32 %v2480, %v2414
      %v2517 = vmul.f32 %v2483, %v2414
      %v2518 = vmul.f32 %v2486, %v2414
      %v2519 = vmul.f32 %v2489, %v2414
      %v2520 = vmul.f32 %v2492, %v2414
      %v2521 = vmul.f32 %v2495, %v2414
      %v2522 = vmul.f32 %v2498, %v2414
      %v2523 = vmul.f32 %v2501, %v2414
      %v2524 = vmul.f32 %v2504, %v2414
      %v2525 = vmul.f32 %v2507, %v2414
      %v2526 = vmul.f32 %v2510, %v2414
      %v2527 = vadd.f32 %v2511, 1e-06
      %v2528 = vadd.f32 %v2512, 1e-06
      %v2529 = vadd.f32 %v2513, 1e-06
      %v2530 = vadd.f32 %v2514, 1e-06
      %v2531 = vadd.f32 %v2515, 1e-06
      %v2532 = vadd.f32 %v2516, 1e-06
      %v2533 = vadd.f32 %v2517, 1e-06
      %v2534 = vadd.f32 %v2518, 1e-06
      %v2535 = vadd.f32 %v2519, 1e-06
      %v2536 = vadd.f32 %v2520, 1e-06
      %v2537 = vadd.f32 %v2521, 1e-06
      %v2538 = vadd.f32 %v2522, 1e-06
      %v2539 = vadd.f32 %v2523, 1e-06
      %v2540 = vadd.f32 %v2524, 1e-06
      %v2541 = vadd.f32 %v2525, 1e-06
      %v2542 = vadd.f32 %v2526, 1e-06
      %v2543 = vrsqrt.pop %v2527
      %v2544 = vrsqrt.pop %v2528
      %v2545 = vrsqrt.pop %v2529
      %v2546 = vrsqrt.pop %v2530
      %v2547 = vrsqrt.pop %v2531
      %v2548 = vrsqrt.pop %v2532
      %v2549 = vrsqrt.pop %v2533
      %v2550 = vrsqrt.pop %v2534
      %v2551 = vrsqrt.pop %v2535
      %v2552 = vrsqrt.pop %v2536
      %v2553 = vrsqrt.pop %v2537
      %v2554 = vrsqrt.pop %v2538
      %v2555 = vrsqrt.pop %v2539
      %v2556 = vrsqrt.pop %v2540
      %v2557 = vrsqrt.pop %v2541
      %v2558 = vrsqrt.pop %v2542
      %v2559 = vmul.f32 %v2431, %v2543
      %v2560 = vmul.f32 %v2432, %v2544
      %v2561 = vmul.f32 %v2433, %v2545
      %v2562 = vmul.f32 %v2434, %v2546
      %v2563 = vmul.f32 %v2435, %v2547
      %v2564 = vmul.f32 %v2436, %v2548
      %v2565 = vmul.f32 %v2437, %v2549
      %v2566 = vmul.f32 %v2438, %v2550
      %v2567 = vmul.f32 %v2439, %v2551
      %v2568 = vmul.f32 %v2440, %v2552
      %v2569 = vmul.f32 %v2441, %v2553
      %v2570 = vmul.f32 %v2442, %v2554
      %v2571 = vmul.f32 %v2443, %v2555
      %v2572 = vmul.f32 %v2444, %v2556
      %v2573 = vmul.f32 %v2445, %v2557
      %v2574 = vmul.f32 %v2446, %v2558
      %v2575 = vld [vmem:[%s4] sm:$0x1]
      %v2577 = vlaneseq
      %v2578 = vshrl.u32 %v2577, 7
      %v2579 = vsub.s32 0, %v2578
      %v2580 = vrot.slane %v2575, %v2579
      %v2582 = vmul.f32 %v2559, %v2580
      %v2583 = vmul.f32 %v2560, %v2580
      %v2584 = vmul.f32 %v2561, %v2580
      %v2585 = vmul.f32 %v2562, %v2580
      %v2586 = vmul.f32 %v2563, %v2580
      %v2587 = vmul.f32 %v2564, %v2580
      %v2588 = vmul.f32 %v2565, %v2580
      %v2589 = vmul.f32 %v2566, %v2580
      %v2590 = vmul.f32 %v2567, %v2580
      %v2591 = vmul.f32 %v2568, %v2580
      %v2592 = vmul.f32 %v2569, %v2580
      %v2593 = vmul.f32 %v2570, %v2580
      %v2594 = vmul.f32 %v2571, %v2580
      %v2595 = vmul.f32 %v2572, %v2580
      %v2596 = vmul.f32 %v2573, %v2580
      %v2597 = vmul.f32 %v2574, %v2580
      %v2598 = vld [vmem:[%s5] sm:$0x1]
      %v2600 = vlaneseq
      %v2601 = vshrl.u32 %v2600, 7
      %v2602 = vsub.s32 0, %v2601
      %v2603 = vrot.slane %v2598, %v2602
      %v2605 = vadd.f32 %v2582, %v2603
      %v2606 = vadd.f32 %v2583, %v2603
      %v2607 = vadd.f32 %v2584, %v2603
      %v2608 = vadd.f32 %v2585, %v2603
      %v2609 = vadd.f32 %v2586, %v2603
      %v2610 = vadd.f32 %v2587, %v2603
      %v2611 = vadd.f32 %v2588, %v2603
      %v2612 = vadd.f32 %v2589, %v2603
      %v2613 = vadd.f32 %v2590, %v2603
      %v2614 = vadd.f32 %v2591, %v2603
      %v2615 = vadd.f32 %v2592, %v2603
      %v2616 = vadd.f32 %v2593, %v2603
      %v2617 = vadd.f32 %v2594, %v2603
      %v2618 = vadd.f32 %v2595, %v2603
      %v2619 = vadd.f32 %v2596, %v2603
      %v2620 = vadd.f32 %v2597, %v2603
      %v2621 = vpack.c.bf16 %v2606, %v2605
      %v2622 = vpack.c.bf16 %v2608, %v2607
      %v2623 = vpack.c.bf16 %v2610, %v2609
      %v2624 = vpack.c.bf16 %v2612, %v2611
      %v2625 = vpack.c.bf16 %v2614, %v2613
      %v2626 = vpack.c.bf16 %v2616, %v2615
      %v2627 = vpack.c.bf16 %v2618, %v2617
      %v2628 = vpack.c.bf16 %v2620, %v2619
      %v2629 = vld [vmem:[%s6] sm:$0x3]
      %v2630 = vld [vmem:[%s7] sm:$0x1]
      %v2632 = vlaneseq
      %v2633 = vshrl.u32 %v2632, 7
      %v2634 = vsub.s32 0, %v2633
      %v2635 = vrot.slane %v2630, %v2634
      %v2638 = vsel %vm494, %v2621, 0
      %v2641 = vsel %vm494, %v2622, 0
      %v2644 = vsel %vm494, %v2623, 0
      %v2647 = vsel %vm494, %v2624, 0
      %v2650 = vsel %vm494, %v2625, 0
      %v2653 = vsel %vm494, %v2626, 0
      %v2656 = vsel %vm494, %v2627, 0
      %v2659 = vsel %vm494, %v2628, 0
      %vm2661 = vcmask 1041408
      %v2663 = vsel %vm2661, %v2629, 0
      %2665 = vmatprep.subr.bf16.mxu0 0
      %2666 = vmatpush1.bf16.msra.mxu0 %v2663
      %2667 = vmatprep.subr.bf16.mxu0 0
      %2668 = vmatpush1.bf16.msra.mxu0 0
      %2669 = vmatprep.subr.bf16.mxu0 0
      %2670 = vmatpush1.bf16.msra.mxu0 0
      %2671 = vmatprep.subr.bf16.mxu0 0
      %2672 = vmatpush1.bf16.msra.mxu0 0
      %2673 = vmatprep.subr.bf16.mxu0 0
      %2674 = vmatpush1.bf16.msra.mxu0 0
      %2675 = vmatprep.subr.bf16.mxu0 0
      %2676 = vmatpush1.bf16.msra.mxu0 0
      %2677 = vmatprep.subr.bf16.mxu0 0
      %2678 = vmatpush1.bf16.msra.mxu0 0
      %2679 = vmatprep.subr.bf16.mxu0 0
      %2680 = vmatpush1.bf16.msra.mxu0 0
      %2681 = vmatprep.subr.bf16.mxu0 0
      %2682 = vmatpush1.bf16.msra.mxu0 0
      %2683 = vmatprep.subr.bf16.mxu0 0
      %2684 = vmatpush1.bf16.msra.mxu0 0
      %2685 = vmatprep.subr.bf16.mxu0 0
      %2686 = vmatpush1.bf16.msra.mxu0 0
      %2687 = vmatprep.subr.bf16.mxu0 0
      %2688 = vmatpush1.bf16.msra.mxu0 0
      %2689 = vmatprep.subr.bf16.mxu0 0
      %2690 = vmatpush1.bf16.msra.mxu0 0
      %2691 = vmatprep.subr.bf16.mxu0 0
      %2692 = vmatpush1.bf16.msra.mxu0 0
      %2693 = vmatprep.subr.bf16.mxu0 0
      %2694 = vmatpush1.bf16.msra.mxu0 0
      %2695 = vmatprep.subr.bf16.mxu0 0
      %2696 = vmatpush1.bf16.msra.mxu0 0
      %2697 = vmatprep.mubr.bf16.mxu0 0
      %2698 = vmatmul.mubr.bf16.gmra.mrb[0].mxu0 %v2638
      %v2699 = vpop.f32.mrb[0].mxu0
      %v2700 = vadd.f32 %v2635, %v2699
      %v2701 = vpop.f32.mrb[0].mxu0
      %v2702 = vpop.f32.mrb[0].mxu0
      %v2703 = vadd.f32 %v2635, %v2702
      %v2704 = vpop.f32.mrb[0].mxu0
      %2705 = vmatprep.mubr.bf16.mxu0 0
      %2706 = vmatmul.mubr.bf16.gmra.mrb[0].mxu0 %v2641
      %v2707 = vpop.f32.mrb[0].mxu0
      %v2708 = vadd.f32 %v2635, %v2707
      %v2709 = vpop.f32.mrb[0].mxu0
      %v2710 = vpop.f32.mrb[0].mxu0
      %v2711 = vadd.f32 %v2635, %v2710
      %v2712 = vpop.f32.mrb[0].mxu0
      %2713 = vmatprep.mubr.bf16.mxu0 0
      %2714 = vmatmul.mubr.bf16.gmra.mrb[0].mxu0 %v2644
      %v2715 = vpop.f32.mrb[0].mxu0
      %v2716 = vadd.f32 %v2635, %v2715
      %v2717 = vpop.f32.mrb[0].mxu0
      %v2718 = vpop.f32.mrb[0].mxu0
      %v2719 = vadd.f32 %v2635, %v2718
      %v2720 = vpop.f32.mrb[0].mxu0
      %2721 = vmatprep.mubr.bf16.mxu0 0
      %2722 = vmatmul.mubr.bf16.gmra.mrb[0].mxu0 %v2647
      %v2723 = vpop.f32.mrb[0].mxu0
      %v2724 = vadd.f32 %v2635, %v2723
      %v2725 = vpop.f32.mrb[0].mxu0
      %v2726 = vpop.f32.mrb[0].mxu0
      %v2727 = vadd.f32 %v2635, %v2726
      %v2728 = vpop.f32.mrb[0].mxu0
      %2729 = vmatprep.mubr.bf16.mxu0 0
      %2730 = vmatmul.mubr.bf16.gmra.mrb[0].mxu0 %v2650
      %v2731 = vpop.f32.mrb[0].mxu0
      %v2732 = vadd.f32 %v2635, %v2731
      %v2733 = vpop.f32.mrb[0].mxu0
      %v2734 = vpop.f32.mrb[0].mxu0
      %v2735 = vadd.f32 %v2635, %v2734
      %v2736 = vpop.f32.mrb[0].mxu0
      %2737 = vmatprep.mubr.bf16.mxu0 0
      %2738 = vmatmul.mubr.bf16.gmra.mrb[0].mxu0 %v2653
      %v2739 = vpop.f32.mrb[0].mxu0
      %v2740 = vadd.f32 %v2635, %v2739
      %v2741 = vpop.f32.mrb[0].mxu0
      %v2742 = vpop.f32.mrb[0].mxu0
      %v2743 = vadd.f32 %v2635, %v2742
      %v2744 = vpop.f32.mrb[0].mxu0
      %2745 = vmatprep.mubr.bf16.mxu0 0
      %2746 = vmatmul.mubr.bf16.gmra.mrb[0].mxu0 %v2656
      %v2747 = vpop.f32.mrb[0].mxu0
      %v2748 = vadd.f32 %v2635, %v2747
      %v2749 = vpop.f32.mrb[0].mxu0
      %v2750 = vpop.f32.mrb[0].mxu0
      %v2751 = vadd.f32 %v2635, %v2750
      %v2752 = vpop.f32.mrb[0].mxu0
      %2753 = vmatprep.mubr.bf16.mxu0 0
      %2754 = vmatmul.mubr.bf16.gmra.mrb[0].mxu0 %v2659
      %v2755 = vpop.f32.mrb[0].mxu0
      %v2756 = vadd.f32 %v2635, %v2755
      %v2757 = vpop.f32.mrb[0].mxu0
      %v2758 = vpop.f32.mrb[0].mxu0
      %v2759 = vadd.f32 %v2635, %v2758
      %v2760 = vpop.f32.mrb[0].mxu0
      %2761 = vdwg.mxu0
      %v2762 = vmul.f32 %v2700, %v2700
      %v2763 = vmul.f32 %v2703, %v2703
      %v2764 = vmul.f32 %v2708, %v2708
      %v2765 = vmul.f32 %v2711, %v2711
      %v2766 = vmul.f32 %v2716, %v2716
      %v2767 = vmul.f32 %v2719, %v2719
      %v2768 = vmul.f32 %v2724, %v2724
      %v2769 = vmul.f32 %v2727, %v2727
      %v2770 = vmul.f32 %v2732, %v2732
      %v2771 = vmul.f32 %v2735, %v2735
      %v2772 = vmul.f32 %v2740, %v2740
      %v2773 = vmul.f32 %v2743, %v2743
      %v2774 = vmul.f32 %v2748, %v2748
      %v2775 = vmul.f32 %v2751, %v2751
      %v2776 = vmul.f32 %v2756, %v2756
      %v2777 = vmul.f32 %v2759, %v2759
      %v2778 = vmul.f32 %v2700, %v2762
      %v2779 = vmul.f32 %v2703, %v2763
      %v2780 = vmul.f32 %v2708, %v2764
      %v2781 = vmul.f32 %v2711, %v2765
      %v2782 = vmul.f32 %v2716, %v2766
      %v2783 = vmul.f32 %v2719, %v2767
      %v2784 = vmul.f32 %v2724, %v2768
      %v2785 = vmul.f32 %v2727, %v2769
      %v2786 = vmul.f32 %v2732, %v2770
      %v2787 = vmul.f32 %v2735, %v2771
      %v2788 = vmul.f32 %v2740, %v2772
      %v2789 = vmul.f32 %v2743, %v2773
      %v2790 = vmul.f32 %v2748, %v2774
      %v2791 = vmul.f32 %v2751, %v2775
      %v2792 = vmul.f32 %v2756, %v2776
      %v2793 = vmul.f32 %v2759, %v2777
      %v2794 = vmul.f32 %v2778, 0.044715
      %v2795 = vmul.f32 %v2779, 0.044715
      %v2796 = vmul.f32 %v2780, 0.044715
      %v2797 = vmul.f32 %v2781, 0.044715
      %v2798 = vmul.f32 %v2782, 0.044715
      %v2799 = vmul.f32 %v2783, 0.044715
      %v2800 = vmul.f32 %v2784, 0.044715
      %v2801 = vmul.f32 %v2785, 0.044715
      %v2802 = vmul.f32 %v2786, 0.044715
      %v2803 = vmul.f32 %v2787, 0.044715
      %v2804 = vmul.f32 %v2788, 0.044715
      %v2805 = vmul.f32 %v2789, 0.044715
      %v2806 = vmul.f32 %v2790, 0.044715
      %v2807 = vmul.f32 %v2791, 0.044715
      %v2808 = vmul.f32 %v2792, 0.044715
      %v2809 = vmul.f32 %v2793, 0.044715
      %v2810 = vadd.f32 %v2700, %v2794
      %v2811 = vadd.f32 %v2703, %v2795
      %v2812 = vadd.f32 %v2708, %v2796
      %v2813 = vadd.f32 %v2711, %v2797
      %v2814 = vadd.f32 %v2716, %v2798
      %v2815 = vadd.f32 %v2719, %v2799
      %v2816 = vadd.f32 %v2724, %v2800
      %v2817 = vadd.f32 %v2727, %v2801
      %v2818 = vadd.f32 %v2732, %v2802
      %v2819 = vadd.f32 %v2735, %v2803
      %v2820 = vadd.f32 %v2740, %v2804
      %v2821 = vadd.f32 %v2743, %v2805
      %v2822 = vadd.f32 %v2748, %v2806
      %v2823 = vadd.f32 %v2751, %v2807
      %v2824 = vadd.f32 %v2756, %v2808
      %v2825 = vadd.f32 %v2759, %v2809
      %v2826 = vmul.f32 %v2810, 0.7978846
      %v2827 = vmul.f32 %v2811, 0.7978846
      %v2828 = vmul.f32 %v2812, 0.7978846
      %v2829 = vmul.f32 %v2813, 0.7978846
      %v2830 = vmul.f32 %v2814, 0.7978846
      %v2831 = vmul.f32 %v2815, 0.7978846
      %v2832 = vmul.f32 %v2816, 0.7978846
      %v2833 = vmul.f32 %v2817, 0.7978846
      %v2834 = vmul.f32 %v2818, 0.7978846
      %v2835 = vmul.f32 %v2819, 0.7978846
      %v2836 = vmul.f32 %v2820, 0.7978846
      %v2837 = vmul.f32 %v2821, 0.7978846
      %v2838 = vmul.f32 %v2822, 0.7978846
      %v2839 = vmul.f32 %v2823, 0.7978846
      %v2840 = vmul.f32 %v2824, 0.7978846
      %v2841 = vmul.f32 %v2825, 0.7978846
      %v2842 = vtanh.pop %v2826
      %v2843 = vtanh.pop %v2827
      %v2844 = vtanh.pop %v2828
      %v2845 = vtanh.pop %v2829
      %v2846 = vtanh.pop %v2830
      %v2847 = vtanh.pop %v2831
      %v2848 = vtanh.pop %v2832
      %v2849 = vtanh.pop %v2833
      %v2850 = vtanh.pop %v2834
      %v2851 = vtanh.pop %v2835
      %v2852 = vtanh.pop %v2836
      %v2853 = vtanh.pop %v2837
      %v2854 = vtanh.pop %v2838
      %v2855 = vtanh.pop %v2839
      %v2856 = vtanh.pop %v2840
      %v2857 = vtanh.pop %v2841
      %v2858 = vadd.f32 %v2842, 1.0
      %v2859 = vadd.f32 %v2843, 1.0
      %v2860 = vadd.f32 %v2844, 1.0
      %v2861 = vadd.f32 %v2845, 1.0
      %v2862 = vadd.f32 %v2846, 1.0
      %v2863 = vadd.f32 %v2847, 1.0
      %v2864 = vadd.f32 %v2848, 1.0
      %v2865 = vadd.f32 %v2849, 1.0
      %v2866 = vadd.f32 %v2850, 1.0
      %v2867 = vadd.f32 %v2851, 1.0
      %v2868 = vadd.f32 %v2852, 1.0
      %v2869 = vadd.f32 %v2853, 1.0
      %v2870 = vadd.f32 %v2854, 1.0
      %v2871 = vadd.f32 %v2855, 1.0
      %v2872 = vadd.f32 %v2856, 1.0
      %v2873 = vadd.f32 %v2857, 1.0
      %v2874 = vmul.f32 %v2858, 0.5
      %v2875 = vmul.f32 %v2859, 0.5
      %v2876 = vmul.f32 %v2860, 0.5
      %v2877 = vmul.f32 %v2861, 0.5
      %v2878 = vmul.f32 %v2862, 0.5
      %v2879 = vmul.f32 %v2863, 0.5
      %v2880 = vmul.f32 %v2864, 0.5
      %v2881 = vmul.f32 %v2865, 0.5
      %v2882 = vmul.f32 %v2866, 0.5
      %v2883 = vmul.f32 %v2867, 0.5
      %v2884 = vmul.f32 %v2868, 0.5
      %v2885 = vmul.f32 %v2869, 0.5
      %v2886 = vmul.f32 %v2870, 0.5
      %v2887 = vmul.f32 %v2871, 0.5
      %v2888 = vmul.f32 %v2872, 0.5
      %v2889 = vmul.f32 %v2873, 0.5
      %v2890 = vmul.f32 %v2700, %v2874
      %v2891 = vmul.f32 %v2703, %v2875
      %v2892 = vmul.f32 %v2708, %v2876
      %v2893 = vmul.f32 %v2711, %v2877
      %v2894 = vmul.f32 %v2716, %v2878
      %v2895 = vmul.f32 %v2719, %v2879
      %v2896 = vmul.f32 %v2724, %v2880
      %v2897 = vmul.f32 %v2727, %v2881
      %v2898 = vmul.f32 %v2732, %v2882
      %v2899 = vmul.f32 %v2735, %v2883
      %v2900 = vmul.f32 %v2740, %v2884
      %v2901 = vmul.f32 %v2743, %v2885
      %v2902 = vmul.f32 %v2748, %v2886
      %v2903 = vmul.f32 %v2751, %v2887
      %v2904 = vmul.f32 %v2756, %v2888
      %v2905 = vmul.f32 %v2759, %v2889
      %v2906 = vpack.c.bf16 %v2891, %v2890
      %v2907 = vpack.c.bf16 %v2893, %v2892
      %v2908 = vpack.c.bf16 %v2895, %v2894
      %v2909 = vpack.c.bf16 %v2897, %v2896
      %v2910 = vpack.c.bf16 %v2899, %v2898
      %v2911 = vpack.c.bf16 %v2901, %v2900
      %v2912 = vpack.c.bf16 %v2903, %v2902
      %v2913 = vpack.c.bf16 %v2905, %v2904
      %v2914 = vld [vmem:[%s8] sm:$0xf]
      %v2915 = vld [vmem:[%s8 + $0x4] sm:$0xf]
      %v2916 = vld [vmem:[%s9] sm:$0x1]
      %v2918 = vlaneseq
      %v2919 = vshrl.u32 %v2918, 7
      %v2920 = vsub.s32 0, %v2919
      %v2921 = vrot.slane %v2916, %v2920
      %v2925 = vunpack.c.l.b16 %v2914
      %v2926 = vunpack.c.l.b16 %v2915
      %v2927 = vpack.c.b16 %v2926, %v2925
      %vm2929 = vcmask 130048
      %v2931 = vsel %vm2929, %v2906, 0
      %v2934 = vsel %vm2929, %v2907, 0
      %v2937 = vsel %vm2929, %v2908, 0
      %v2940 = vsel %vm2929, %v2909, 0
      %v2943 = vsel %vm2929, %v2910, 0
      %v2946 = vsel %vm2929, %v2911, 0
      %v2949 = vsel %vm2929, %v2912, 0
      %v2952 = vsel %vm2929, %v2913, 0
      %2954 = vmatprep.subr.bf16.mxu0 0
      %2955 = vmatpush1.bf16.msra.mxu0 %v2927
      %2956 = vmatprep.subr.bf16.mxu0 0
      %2957 = vmatpush1.bf16.msra.mxu0 0
      %2958 = vmatprep.subr.bf16.mxu0 0
      %2959 = vmatpush1.bf16.msra.mxu0 0
      %2960 = vmatprep.subr.bf16.mxu0 0
      %2961 = vmatpush1.bf16.msra.mxu0 0
      %2962 = vmatprep.subr.bf16.mxu0 0
      %2963 = vmatpush1.bf16.msra.mxu0 0
      %2964 = vmatprep.subr.bf16.mxu0 0
      %2965 = vmatpush1.bf16.msra.mxu0 0
      %2966 = vmatprep.subr.bf16.mxu0 0
      %2967 = vmatpush1.bf16.msra.mxu0 0
      %2968 = vmatprep.subr.bf16.mxu0 0
      %2969 = vmatpush1.bf16.msra.mxu0 0
      %2970 = vmatprep.subr.bf16.mxu0 0
      %2971 = vmatpush1.bf16.msra.mxu0 0
      %2972 = vmatprep.subr.bf16.mxu0 0
      %2973 = vmatpush1.bf16.msra.mxu0 0
      %2974 = vmatprep.subr.bf16.mxu0 0
      %2975 = vmatpush1.bf16.msra.mxu0 0
      %2976 = vmatprep.subr.bf16.mxu0 0
      %2977 = vmatpush1.bf16.msra.mxu0 0
      %2978 = vmatprep.subr.bf16.mxu0 0
      %2979 = vmatpush1.bf16.msra.mxu0 0
      %2980 = vmatprep.subr.bf16.mxu0 0
      %2981 = vmatpush1.bf16.msra.mxu0 0
      %2982 = vmatprep.subr.bf16.mxu0 0
      %2983 = vmatpush1.bf16.msra.mxu0 0
      %2984 = vmatprep.subr.bf16.mxu0 0
      %2985 = vmatpush1.bf16.msra.mxu0 0
      %2986 = vmatprep.mubr.bf16.mxu0 0
      %2987 = vmatmul.mubr.bf16.gmra.mrb[0].mxu0 %v2931
      %v2988 = vpop.f32.mrb[0].mxu0
      %v2989 = vadd.f32 %v2921, %v2988
      %v2990 = vpop.f32.mrb[0].mxu0
      %v2991 = vpop.f32.mrb[0].mxu0
      %v2992 = vadd.f32 %v2921, %v2991
      %v2993 = vpop.f32.mrb[0].mxu0
      %2994 = vmatprep.mubr.bf16.mxu0 0
      %2995 = vmatmul.mubr.bf16.gmra.mrb[0].mxu0 %v2934
      %v2996 = vpop.f32.mrb[0].mxu0
      %v2997 = vadd.f32 %v2921, %v2996
      %v2998 = vpop.f32.mrb[0].mxu0
      %v2999 = vpop.f32.mrb[0].mxu0
      %v3000 = vadd.f32 %v2921, %v2999
      %v3001 = vpop.f32.mrb[0].mxu0
      %3002 = vmatprep.mubr.bf16.mxu0 0
      %3003 = vmatmul.mubr.bf16.gmra.mrb[0].mxu0 %v2937
      %v3004 = vpop.f32.mrb[0].mxu0
      %v3005 = vadd.f32 %v2921, %v3004
      %v3006 = vpop.f32.mrb[0].mxu0
      %v3007 = vpop.f32.mrb[0].mxu0
      %v3008 = vadd.f32 %v2921, %v3007
      %v3009 = vpop.f32.mrb[0].mxu0
      %3010 = vmatprep.mubr.bf16.mxu0 0
      %3011 = vmatmul.mubr.bf16.gmra.mrb[0].mxu0 %v2940
      %v3012 = vpop.f32.mrb[0].mxu0
      %v3013 = vadd.f32 %v2921, %v3012
      %v3014 = vpop.f32.mrb[0].mxu0
      %v3015 = vpop.f32.mrb[0].mxu0
      %v3016 = vadd.f32 %v2921, %v3015
      %v3017 = vpop.f32.mrb[0].mxu0
      %3018 = vmatprep.mubr.bf16.mxu0 0
      %3019 = vmatmul.mubr.bf16.gmra.mrb[0].mxu0 %v2943
      %v3020 = vpop.f32.mrb[0].mxu0
      %v3021 = vadd.f32 %v2921, %v3020
      %v3022 = vpop.f32.mrb[0].mxu0
      %v3023 = vpop.f32.mrb[0].mxu0
      %v3024 = vadd.f32 %v2921, %v3023
      %v3025 = vpop.f32.mrb[0].mxu0
      %3026 = vmatprep.mubr.bf16.mxu0 0
      %3027 = vmatmul.mubr.bf16.gmra.mrb[0].mxu0 %v2946
      %v3028 = vpop.f32.mrb[0].mxu0
      %v3029 = vadd.f32 %v2921, %v3028
      %v3030 = vpop.f32.mrb[0].mxu0
      %v3031 = vpop.f32.mrb[0].mxu0
      %v3032 = vadd.f32 %v2921, %v3031
      %v3033 = vpop.f32.mrb[0].mxu0
      %3034 = vmatprep.mubr.bf16.mxu0 0
      %3035 = vmatmul.mubr.bf16.gmra.mrb[0].mxu0 %v2949
      %v3036 = vpop.f32.mrb[0].mxu0
      %v3037 = vadd.f32 %v2921, %v3036
      %v3038 = vpop.f32.mrb[0].mxu0
      %v3039 = vpop.f32.mrb[0].mxu0
      %v3040 = vadd.f32 %v2921, %v3039
      %v3041 = vpop.f32.mrb[0].mxu0
      %3042 = vmatprep.mubr.bf16.mxu0 0
      %3043 = vmatmul.mubr.bf16.gmra.mrb[0].mxu0 %v2952
      %v3044 = vpop.f32.mrb[0].mxu0
      %v3045 = vadd.f32 %v2921, %v3044
      %v3046 = vpop.f32.mrb[0].mxu0
      %v3047 = vpop.f32.mrb[0].mxu0
      %v3048 = vadd.f32 %v2921, %v3047
      %v3049 = vpop.f32.mrb[0].mxu0
      %3050 = vdwg.mxu0
      %v3051 = vld [vmem:[%s10] sm:$0x1]
      %v3053 = vlaneseq
      %v3054 = vshrl.u32 %v3053, 7
      %v3055 = vsub.s32 0, %v3054
      %v3056 = vrot.slane %v3051, %v3055
      %v3058 = vmul.f32 %v2989, %v3056
      %v3059 = vmul.f32 %v2992, %v3056
      %v3060 = vmul.f32 %v2997, %v3056
      %v3061 = vmul.f32 %v3000, %v3056
      %v3062 = vmul.f32 %v3005, %v3056
      %v3063 = vmul.f32 %v3008, %v3056
      %v3064 = vmul.f32 %v3013, %v3056
      %v3065 = vmul.f32 %v3016, %v3056
      %v3066 = vmul.f32 %v3021, %v3056
      %v3067 = vmul.f32 %v3024, %v3056
      %v3068 = vmul.f32 %v3029, %v3056
      %v3069 = vmul.f32 %v3032, %v3056
      %v3070 = vmul.f32 %v3037, %v3056
      %v3071 = vmul.f32 %v3040, %v3056
      %v3072 = vmul.f32 %v3045, %v3056
      %v3073 = vmul.f32 %v3048, %v3056
      %v3074 = vadd.f32 %v466, %v3058
      %v3075 = vadd.f32 %v467, %v3059
      %v3076 = vadd.f32 %v468, %v3060
      %v3077 = vadd.f32 %v469, %v3061
      %v3078 = vadd.f32 %v470, %v3062
      %v3079 = vadd.f32 %v471, %v3063
      %v3080 = vadd.f32 %v472, %v3064
      %v3081 = vadd.f32 %v473, %v3065
      %v3082 = vadd.f32 %v474, %v3066
      %v3083 = vadd.f32 %v475, %v3067
      %v3084 = vadd.f32 %v476, %v3068
      %v3085 = vadd.f32 %v477, %v3069
      %v3086 = vadd.f32 %v478, %v3070
      %v3087 = vadd.f32 %v479, %v3071
      %v3088 = vadd.f32 %v480, %v3072
      %v3089 = vadd.f32 %v481, %v3073
      %3090 = vst.msk [vmem:[%s463] sm:$0xff] %vm494, %v3074
      %3091 = vst.msk [vmem:[%s463 + $0x8] sm:$0xff] %vm494, %v3075
      %3092 = vst.msk [vmem:[%s463 + $0x10] sm:$0xff] %vm494, %v3076
      %3093 = vst.msk [vmem:[%s463 + $0x18] sm:$0xff] %vm494, %v3077
      %3094 = vst.msk [vmem:[%s463 + $0x20] sm:$0xff] %vm494, %v3078
      %3095 = vst.msk [vmem:[%s463 + $0x28] sm:$0xff] %vm494, %v3079
      %3096 = vst.msk [vmem:[%s463 + $0x30] sm:$0xff] %vm494, %v3080
      %3097 = vst.msk [vmem:[%s463 + $0x38] sm:$0xff] %vm494, %v3081
      %3098 = vst.msk [vmem:[%s463 + $0x40] sm:$0xff] %vm494, %v3082
      %3099 = vst.msk [vmem:[%s463 + $0x48] sm:$0xff] %vm494, %v3083
      %3100 = vst.msk [vmem:[%s463 + $0x50] sm:$0xff] %vm494, %v3084
      %3101 = vst.msk [vmem:[%s463 + $0x58] sm:$0xff] %vm494, %v3085
      %3102 = vst.msk [vmem:[%s463 + $0x60] sm:$0xff] %vm494, %v3086
      %3103 = vst.msk [vmem:[%s463 + $0x68] sm:$0xff] %vm494, %v3087
      %3104 = vst.msk [vmem:[%s463 + $0x70] sm:$0xff] %vm494, %v3088
      %3105 = vst.msk [vmem:[%s463 + $0x78] sm:$0xff] %vm494, %v3089
      %s3106 = smul.u32 8, %s27
      %p3107 = scmp.lt.s32.totalorder %s26, 1
      %s3108 = scalar_select %p3107, %s26, 1
      %p3109 = scmp.lt.s32.totalorder %s3106, 15
      %s3110 = scalar_select %p3109, %s3106, 15
      %s3111 = smul.addr %s3110, 2
      %s3112 = smul.addr %s3108, 32
      %s3113 = sadd.s32 %s3111, %s3112
      %s3114 = smul.addr %s3113, 8
      %s3115 = scalar_lea.vmem %s11, %s3114
      // Predicated region
      $region65: #{tpu_custom_call.1} parent=63 // pred_check
        %p3116 = pneg %p301
      $region66: #{tpu_custom_call.1} parent=63 // pred_check_branch
        %3118 = sbr.rel (%p3116) target = $region68
      $region67: #{tpu_custom_call.1} parent=63 // pred_region
        %s3119 = smul.u32 8, %s27
      $region68: #{tpu_custom_call.1} parent=63 // pred_fallthru
        _
    $region64: #{tpu_custom_call.1} parent=5 // pred_fallthru
      _
    %p3120 = scmp.le.s32.totalorder 2, %s17
    // Predicated region
    $region69: #{tpu_custom_call.1} parent=5 // pred_check
      %p3121 = pneg %p3120
    $region70: #{tpu_custom_call.1} parent=5 // pred_check_branch
      %3123 = sbr.rel (%p3121) target = $region72
    $region71: #{tpu_custom_call.1} parent=5 // pred_region
      %s3124 = ssub.s32 %s17, 2
      // Predicated region
      $region73: #{tpu_custom_call.1} parent=71 // pred_check
        %p3125 = pneg %p307
      $region74: #{tpu_custom_call.1} parent=71 // pred_check_branch
        %3127 = sbr.rel (%p3125) target = $region76
      $region75: #{tpu_custom_call.1} parent=71 // pred_region
        %s3128 = smul.u32 8, %s29
        %p3129 = scmp.lt.s32.totalorder %s28, 1
        %s3130 = scalar_select %p3129, %s28, 1
        %p3131 = scmp.lt.s32.totalorder %s3128, 15
        %s3132 = scalar_select %p3131, %s3128, 15
        %s3133 = smul.addr %s3132, 2
        %s3134 = smul.addr %s3130, 32
        %s3135 = sadd.s32 %s3133, %s3134
        %s3136 = smul.addr %s3135, 8
        %s3137 = scalar_lea.vmem %s11, %s3136
      $region76: #{tpu_custom_call.1} parent=71 // pred_fallthru
        _
    $region72: #{tpu_custom_call.1} parent=5 // pred_fallthru
      _
  $region6: #{tpu_custom_call.1} parent=0 // loop_footer
    %s21 = sadd.s32 1, %s17
  $region7: #{tpu_custom_call.1} parent=0 // loop_footer_branch
    %16 = sbr.rel target = $region3
  $region8: #{tpu_custom_call.1} parent=0 // loop_exit
    _

</llo_original>
